<compile_context>
chip_gen: v5e
topology: v5e:2x2
jax: 0.10.0
libtpu: 0.0.40
codegen_flags: <defaults>
</compile_context>

<pallas_src>
import numpy as np

import jax
import jax.numpy as jnp
from jax.experimental import pallas as pl
from jax.experimental.pallas import tpu as pltpu


# ----------------------------------------------------------------------------
# Fused forward kernel (one grid step == one sample)
# ----------------------------------------------------------------------------
def _net_fwd_kernel(xc_ref, t1_ref, b1_ref, s1_ref, t2_ref, b2_ref, s2_ref,
                    w1r_ref, bf1_ref, w2_ref, bf2_ref, o_ref):
    f32 = jnp.float32

    # ---- conv1 (1->10, k=5), computed in 4 row-parity classes --------------
    # xc_ref: (1, 4, 7, 28); class a holds image rows y = 4r + a.
    x_cls = [xc_ref[0, a] for a in range(4)]            # each (7, 28)
    t1 = [t1_ref[k] for k in range(5)]                  # each (28, 240)
    out1 = []                                           # out1[a][r, x*10+c]
    for a in range(4):
        acc = None
        for ki in range(5):
            src = (a + ki) % 4
            q = (a + ki) // 4
            xs = x_cls[src][q:q + 6, :]                 # (6, 28), contiguous
            term = jnp.dot(xs, t1[ki], preferred_element_type=f32)
            acc = term if acc is None else acc + term
        out1.append(acc + b1_ref[...])                  # (6, 240)

    # ---- maxpool 2x2 + relu (fused, no strided access) ----------------------
    se1 = s1_ref[0]                                     # (240, 120) even cols
    so1 = s1_ref[1]                                     # (240, 120) odd cols
    mw = [jnp.maximum(jnp.dot(o, se1, preferred_element_type=f32),
                      jnp.dot(o, so1, preferred_element_type=f32))
          for o in out1]                                # (6, 120) each
    # row pooling = elementwise max across row-parity classes, then relu
    p1 = [jnp.maximum(jnp.maximum(mw[2 * e], mw[2 * e + 1]), 0.0)
          for e in range(2)]                            # (6, 120); rows 2s+e

    # ---- conv2 (10->20, k=5), 2 row-parity classes --------------------------
    t2 = [t2_ref[k] for k in range(5)]                  # each (120, 160)
    out2 = []
    for f in range(2):
        acc = None
        for ki in range(5):
            src = (f + ki) % 2
            q = (f + ki) // 2
            ps = p1[src][q:q + 4, :]                    # (4, 120)
            term = jnp.dot(ps, t2[ki], preferred_element_type=f32)
            acc = term if acc is None else acc + term
        out2.append(acc + b2_ref[...])                  # (4, 160)
    # TODO(synk): nn.Dropout2d after conv2 omitted (eval mode => identity).

    # ---- maxpool 2x2 + relu --------------------------------------------------
    se2 = s2_ref[0]                                     # (160, 80)
    so2 = s2_ref[1]
    m2 = jnp.maximum(out2[0], out2[1])                  # (4, 160)
    p2 = jnp.maximum(
        jnp.maximum(jnp.dot(m2, se2, preferred_element_type=f32),
                    jnp.dot(m2, so2, preferred_element_type=f32)), 0.0)
    # p2: (4, 80) with lane index = v*20 + d  (v = col, d = channel)

    # ---- fc1 (320->50) + relu (weights pre-permuted: no flatten transpose) --
    h = bf1_ref[...]                                    # (1, 50)
    for u in range(4):
        h = h + jnp.dot(p2[u:u + 1, :], w1r_ref[u],
                        preferred_element_type=f32)     # (1,80)@(80,50)
    h = jnp.maximum(h, 0.0)
    # TODO(synk): F.dropout after fc1 omitted (inference mode => identity).

    # ---- fc2 (50->10) + log_softmax (fused) ----------------------------------
    z = jnp.dot(h, w2_ref[...], preferred_element_type=f32) + bf2_ref[...]
    z = z - jnp.max(z, axis=-1, keepdims=True)
    z = z - jnp.log(jnp.sum(jnp.exp(z), axis=-1, keepdims=True))
    o_ref[0] = z.astype(o_ref.dtype)                    # (1, 10)


# ----------------------------------------------------------------------------
# Wrapper: one pallas_call for the whole network
# ----------------------------------------------------------------------------
def net_forward(kw, x_nchw):
    B = x_nchw.shape[0]
    x = x_nchw[:, 0]                                    # (B, 28, 28)
    # split rows by (row index mod 4): xc[b, a, r, :] = x[b, 4r + a, :]
    xc = x.reshape(B, 7, 4, 28).transpose(0, 2, 1, 3)   # (B, 4, 7, 28)

    out = pl.pallas_call(
        _net_fwd_kernel,
        out_shape=jax.ShapeDtypeStruct((B, 1, 10), jnp.float32),
        grid=(B,),
        in_specs=[
            pl.BlockSpec((1, 4, 7, 28), lambda b: (b, 0, 0, 0)),   # image
            pl.BlockSpec((5, 28, 240), lambda b: (0, 0, 0)),       # t1
            pl.BlockSpec((1, 240), lambda b: (0, 0)),              # b1
            pl.BlockSpec((2, 240, 120), lambda b: (0, 0, 0)),      # pool1 sel
            pl.BlockSpec((5, 120, 160), lambda b: (0, 0, 0)),      # t2
            pl.BlockSpec((1, 160), lambda b: (0, 0)),              # b2
            pl.BlockSpec((2, 160, 80), lambda b: (0, 0, 0)),       # pool2 sel
            pl.BlockSpec((4, 80, 50), lambda b: (0, 0, 0)),        # fc1 (perm)
            pl.BlockSpec((1, 50), lambda b: (0, 0)),               # fc1 bias
            pl.BlockSpec((50, 10), lambda b: (0, 0)),              # fc2
            pl.BlockSpec((1, 10), lambda b: (0, 0)),               # fc2 bias
        ],
        out_specs=pl.BlockSpec((1, 1, 10), lambda b: (b, 0, 0)),
        compiler_params=pltpu.CompilerParams(
            dimension_semantics=("parallel",),
            vmem_limit_bytes=32 * 1024 * 1024),
    )(xc, kw["t1"], kw["b1"], kw["s1"], kw["t2"], kw["b2"], kw["s2"],
      kw["w1r"], kw["bf1"], kw["w2"], kw["bf2"])
    return out.reshape(B, 10)


# ----------------------------------------------------------------------------
# One-time (host-side) preparation of kernel-ready weights
# ----------------------------------------------------------------------------
def prepare_weights(params):
    w1 = np.asarray(params["conv1_w"])[:, 0]        # (10, 5, 5)
    b1 = np.asarray(params["conv1_b"])              # (10,)
    w2 = np.asarray(params["conv2_w"])              # (20, 10, 5, 5)
    b2 = np.asarray(params["conv2_b"])              # (20,)
    fc1_w = np.asarray(params["fc1_w"])             # (50, 320)
    fc1_b = np.asarray(params["fc1_b"])             # (50,)
    fc2_w = np.asarray(params["fc2_w"])             # (10, 50)
    fc2_b = np.asarray(params["fc2_b"])             # (10,)

    # Banded conv1 matrices: t1[ki, x_in, x_out*10 + c] = w1[c, ki, x_in-x_out]
    t1 = np.zeros((5, 28, 240), np.float32)
    for ki in range(5):
        for kj in range(5):
            for xo in range(24):
                t1[ki, xo + kj, xo * 10:(xo + 1) * 10] = w1[:, ki, kj]

    # Banded conv2 matrices: t2[ki, j_in*10 + c, j_out*20 + d]
    t2 = np.zeros((5, 120, 160), np.float32)
    for ki in range(5):
        for kj in range(5):
            for jo in range(8):
                t2[ki, (jo + kj) * 10:(jo + kj) * 10 + 10,
                   jo * 20:(jo + 1) * 20] = w2[:, :, ki, kj].T

    # 0/1 column selectors for 2x2 max-pool along the lane axis.
    s1 = np.zeros((2, 240, 120), np.float32)
    for par in range(2):
        for xp in range(12):
            for c in range(10):
                s1[par, (2 * xp + par) * 10 + c, xp * 10 + c] = 1.0
    s2 = np.zeros((2, 160, 80), np.float32)
    for par in range(2):
        for vp in range(4):
            for d in range(20):
                s2[par, (2 * vp + par) * 20 + d, vp * 20 + d] = 1.0

    # fc1 weights permuted so the kernel's (u; v*20+d) layout maps to
    # PyTorch's NCHW flatten index d*16 + u*4 + v (kills the transpose).
    w1r = np.zeros((4, 80, 50), np.float32)
    for u in range(4):
        for v in range(4):
            for d in range(20):
                w1r[u, v * 20 + d, :] = fc1_w[:, d * 16 + u * 4 + v]

    return {
        "t1": jnp.asarray(t1),
        "b1": jnp.asarray(np.tile(b1, 24)[None, :].astype(np.float32)),
        "s1": jnp.asarray(s1),
        "t2": jnp.asarray(t2),
        "b2": jnp.asarray(np.tile(b2, 8)[None, :].astype(np.float32)),
        "s2": jnp.asarray(s2),
        "w1r": jnp.asarray(w1r),
        "bf1": jnp.asarray(fc1_b[None, :].astype(np.float32)),
        "w2": jnp.asarray(fc2_w.T.copy().astype(np.float32)),
        "bf2": jnp.asarray(fc2_b[None, :].astype(np.float32)),
    }


# ----------------------------------------------------------------------------
# Parameter init (PyTorch-like uniform(-1/sqrt(fan_in), 1/sqrt(fan_in)))
# ----------------------------------------------------------------------------
def init_params(key):
    ks = jax.random.split(key, 8)

    def u(k, shape, fan_in):
        bound = 1.0 / float(np.sqrt(fan_in))
        return jax.random.uniform(k, shape, jnp.float32, -bound, bound)

    return {
        "conv1_w": u(ks[0], (10, 1, 5, 5), 25),
        "conv1_b": u(ks[1], (10,), 25),
        "conv2_w": u(ks[2], (20, 10, 5, 5), 250),
        "conv2_b": u(ks[3], (20,), 250),
        "fc1_w": u(ks[4], (50, 320), 320),
        "fc1_b": u(ks[5], (50,), 320),
        "fc2_w": u(ks[6], (10, 50), 50),
        "fc2_b": u(ks[7], (10,), 50),
    }


# ----------------------------------------------------------------------------
# Pure-JAX reference (for correctness check only)
# ----------------------------------------------------------------------------
def net_forward_reference(params, x):
    dn1 = jax.lax.conv_dimension_numbers(
        x.shape, params["conv1_w"].shape, ("NCHW", "OIHW", "NCHW"))
    y = jax.lax.conv_general_dilated(x, params["conv1_w"], (1, 1), "VALID",
                                     dimension_numbers=dn1)
    y = y + params["conv1_b"][None, :, None, None]
    y = jax.lax.reduce_window(y, -jnp.inf, jax.lax.max,
                              (1, 1, 2, 2), (1, 1, 2, 2), "VALID")
    y = jnp.maximum(y, 0.0)
    dn2 = jax.lax.conv_dimension_numbers(
        y.shape, params["conv2_w"].shape, ("NCHW", "OIHW", "NCHW"))
    y = jax.lax.conv_general_dilated(y, params["conv2_w"], (1, 1), "VALID",
                                     dimension_numbers=dn2)
    y = y + params["conv2_b"][None, :, None, None]
    y = jax.lax.reduce_window(y, -jnp.inf, jax.lax.max,
                              (1, 1, 2, 2), (1, 1, 2, 2), "VALID")
    y = jnp.maximum(y, 0.0)
    y = y.reshape(y.shape[0], -1)                    # NCHW flatten -> (B, 320)
    y = jnp.maximum(y @ params["fc1_w"].T + params["fc1_b"], 0.0)
    y = y @ params["fc2_w"].T + params["fc2_b"]
    return jax.nn.log_softmax(y, axis=1)


if __name__ == "__main__":
    key = jax.random.PRNGKey(0)
    pkey, xkey = jax.random.split(key)
    params = init_params(pkey)
    kweights = prepare_weights(params)      # host-side, once

    # MNIST-shaped input so that view(-1, 320) is exact: (B, 1, 28, 28)
    x = jax.random.normal(xkey, (2, 1, 28, 28), dtype=jnp.float32)

    fwd = jax.jit(net_forward)
    out = jax.block_until_ready(fwd(kweights, x))

    assert out.shape == (2, 10)
    assert bool(jnp.all(jnp.isfinite(out)))
    # log_softmax rows exponentiate-sum to ~1
    assert bool(jnp.allclose(jnp.sum(jnp.exp(out), axis=1), 1.0, atol=1e-4))
    # match pure-JAX reference of the original module
    ref = jax.block_until_ready(net_forward_reference(params, x))
    assert bool(jnp.allclose(out, ref, atol=2e-4, rtol=2e-4))
    print("KERNEL_OK")
</pallas_src>

<mosaic_0001>
module attributes {stable_mosaic.version = 11 : i64} {
  func.func @_net_fwd_kernel(%arg0: i32, %arg1: memref<1x4x7x28xf32, #tpu.memory_space<vmem>>, %arg2: memref<5x28x240xf32, #tpu.memory_space<vmem>>, %arg3: memref<1x240xf32, #tpu.memory_space<vmem>>, %arg4: memref<2x240x120xf32, #tpu.memory_space<vmem>>, %arg5: memref<5x120x160xf32, #tpu.memory_space<vmem>>, %arg6: memref<1x160xf32, #tpu.memory_space<vmem>>, %arg7: memref<2x160x80xf32, #tpu.memory_space<vmem>>, %arg8: memref<4x80x50xf32, #tpu.memory_space<vmem>>, %arg9: memref<1x50xf32, #tpu.memory_space<vmem>>, %arg10: memref<50x10xf32, #tpu.memory_space<vmem>>, %arg11: memref<1x10xf32, #tpu.memory_space<vmem>>, %arg12: memref<1x1x10xf32, #tpu.memory_space<vmem>>) attributes {dimension_semantics = [#tpu.dimension_semantics<parallel>], iteration_bounds = array<i64: 2>, scalar_prefetch = 0 : i64, scratch_operands = 0 : i64, tpu.core_type = #tpu.core_type<tc>, window_params = [{transform_indices = @transform_0, window_bounds = array<i64: 1, 4, 7, 28>}, {pipeline_mode = #tpu.pipeline_mode<synchronous>, transform_indices = @transform_1, window_bounds = array<i64: 5, 28, 240>}, {pipeline_mode = #tpu.pipeline_mode<synchronous>, transform_indices = @transform_2, window_bounds = array<i64: 1, 240>}, {pipeline_mode = #tpu.pipeline_mode<synchronous>, transform_indices = @transform_3, window_bounds = array<i64: 2, 240, 120>}, {pipeline_mode = #tpu.pipeline_mode<synchronous>, transform_indices = @transform_4, window_bounds = array<i64: 5, 120, 160>}, {pipeline_mode = #tpu.pipeline_mode<synchronous>, transform_indices = @transform_5, window_bounds = array<i64: 1, 160>}, {pipeline_mode = #tpu.pipeline_mode<synchronous>, transform_indices = @transform_6, window_bounds = array<i64: 2, 160, 80>}, {pipeline_mode = #tpu.pipeline_mode<synchronous>, transform_indices = @transform_7, window_bounds = array<i64: 4, 80, 50>}, {pipeline_mode = #tpu.pipeline_mode<synchronous>, transform_indices = @transform_8, window_bounds = array<i64: 1, 50>}, {pipeline_mode = #tpu.pipeline_mode<synchronous>, transform_indices = @transform_9, window_bounds = array<i64: 50, 10>}, {pipeline_mode = #tpu.pipeline_mode<synchronous>, transform_indices = @transform_10, window_bounds = array<i64: 1, 10>}, {transform_indices = @transform_11, window_bounds = array<i64: 1, 1, 10>}]} {
    %c0 = arith.constant 0 : index
    %c0_0 = arith.constant 0 : index
    %c0_1 = arith.constant 0 : index
    %c0_2 = arith.constant 0 : index
    %0 = vector.load %arg1[%c0, %c0_0, %c0_1, %c0_2] : memref<1x4x7x28xf32, #tpu.memory_space<vmem>>, vector<1x1x7x28xf32>
    %1 = vector.shape_cast %0 : vector<1x1x7x28xf32> to vector<7x28xf32>
    %c0_3 = arith.constant 0 : index
    %c1 = arith.constant 1 : index
    %c0_4 = arith.constant 0 : index
    %c0_5 = arith.constant 0 : index
    %2 = vector.load %arg1[%c0_3, %c1, %c0_4, %c0_5] : memref<1x4x7x28xf32, #tpu.memory_space<vmem>>, vector<1x1x7x28xf32>
    %3 = vector.shape_cast %2 : vector<1x1x7x28xf32> to vector<7x28xf32>
    %c0_6 = arith.constant 0 : index
    %c2 = arith.constant 2 : index
    %c0_7 = arith.constant 0 : index
    %c0_8 = arith.constant 0 : index
    %4 = vector.load %arg1[%c0_6, %c2, %c0_7, %c0_8] : memref<1x4x7x28xf32, #tpu.memory_space<vmem>>, vector<1x1x7x28xf32>
    %5 = vector.shape_cast %4 : vector<1x1x7x28xf32> to vector<7x28xf32>
    %c0_9 = arith.constant 0 : index
    %c3 = arith.constant 3 : index
    %c0_10 = arith.constant 0 : index
    %c0_11 = arith.constant 0 : index
    %6 = vector.load %arg1[%c0_9, %c3, %c0_10, %c0_11] : memref<1x4x7x28xf32, #tpu.memory_space<vmem>>, vector<1x1x7x28xf32>
    %7 = vector.shape_cast %6 : vector<1x1x7x28xf32> to vector<7x28xf32>
    %c0_12 = arith.constant 0 : index
    %c0_13 = arith.constant 0 : index
    %c0_14 = arith.constant 0 : index
    %8 = vector.load %arg2[%c0_12, %c0_13, %c0_14] : memref<5x28x240xf32, #tpu.memory_space<vmem>>, vector<1x28x240xf32>
    %9 = vector.shape_cast %8 : vector<1x28x240xf32> to vector<28x240xf32>
    %c1_15 = arith.constant 1 : index
    %c0_16 = arith.constant 0 : index
    %c0_17 = arith.constant 0 : index
    %10 = vector.load %arg2[%c1_15, %c0_16, %c0_17] : memref<5x28x240xf32, #tpu.memory_space<vmem>>, vector<1x28x240xf32>
    %11 = vector.shape_cast %10 : vector<1x28x240xf32> to vector<28x240xf32>
    %c2_18 = arith.constant 2 : index
    %c0_19 = arith.constant 0 : index
    %c0_20 = arith.constant 0 : index
    %12 = vector.load %arg2[%c2_18, %c0_19, %c0_20] : memref<5x28x240xf32, #tpu.memory_space<vmem>>, vector<1x28x240xf32>
    %13 = vector.shape_cast %12 : vector<1x28x240xf32> to vector<28x240xf32>
    %c3_21 = arith.constant 3 : index
    %c0_22 = arith.constant 0 : index
    %c0_23 = arith.constant 0 : index
    %14 = vector.load %arg2[%c3_21, %c0_22, %c0_23] : memref<5x28x240xf32, #tpu.memory_space<vmem>>, vector<1x28x240xf32>
    %15 = vector.shape_cast %14 : vector<1x28x240xf32> to vector<28x240xf32>
    %c4 = arith.constant 4 : index
    %c0_24 = arith.constant 0 : index
    %c0_25 = arith.constant 0 : index
    %16 = vector.load %arg2[%c4, %c0_24, %c0_25] : memref<5x28x240xf32, #tpu.memory_space<vmem>>, vector<1x28x240xf32>
    %17 = vector.shape_cast %16 : vector<1x28x240xf32> to vector<28x240xf32>
    %18 = vector.extract_strided_slice %1 {offsets = [0, 0], sizes = [6, 28], strides = [1, 1]} : vector<7x28xf32> to vector<6x28xf32>
    %cst = arith.constant dense<0.000000e+00> : vector<6x240xf32>
    %19 = tpu.matmul %18, %9, %cst {dimension_numbers = #tpu.dot_dimension_numbers<[1], [0], [0], [1], [0, 0, 1, 1], [], []>} : vector<6x28xf32>, vector<28x240xf32>, vector<6x240xf32> -> vector<6x240xf32>
    %20 = vector.extract_strided_slice %3 {offsets = [0, 0], sizes = [6, 28], strides = [1, 1]} : vector<7x28xf32> to vector<6x28xf32>
    %cst_26 = arith.constant dense<0.000000e+00> : vector<6x240xf32>
    %21 = tpu.matmul %20, %11, %cst_26 {dimension_numbers = #tpu.dot_dimension_numbers<[1], [0], [0], [1], [0, 0, 1, 1], [], []>} : vector<6x28xf32>, vector<28x240xf32>, vector<6x240xf32> -> vector<6x240xf32>
    %22 = arith.addf %19, %21 : vector<6x240xf32>
    %23 = vector.extract_strided_slice %5 {offsets = [0, 0], sizes = [6, 28], strides = [1, 1]} : vector<7x28xf32> to vector<6x28xf32>
    %cst_27 = arith.constant dense<0.000000e+00> : vector<6x240xf32>
    %24 = tpu.matmul %23, %13, %cst_27 {dimension_numbers = #tpu.dot_dimension_numbers<[1], [0], [0], [1], [0, 0, 1, 1], [], []>} : vector<6x28xf32>, vector<28x240xf32>, vector<6x240xf32> -> vector<6x240xf32>
    %25 = arith.addf %22, %24 : vector<6x240xf32>
    %26 = vector.extract_strided_slice %7 {offsets = [0, 0], sizes = [6, 28], strides = [1, 1]} : vector<7x28xf32> to vector<6x28xf32>
    %cst_28 = arith.constant dense<0.000000e+00> : vector<6x240xf32>
    %27 = tpu.matmul %26, %15, %cst_28 {dimension_numbers = #tpu.dot_dimension_numbers<[1], [0], [0], [1], [0, 0, 1, 1], [], []>} : vector<6x28xf32>, vector<28x240xf32>, vector<6x240xf32> -> vector<6x240xf32>
    %28 = arith.addf %25, %27 : vector<6x240xf32>
    %29 = vector.extract_strided_slice %1 {offsets = [1, 0], sizes = [6, 28], strides = [1, 1]} : vector<7x28xf32> to vector<6x28xf32>
    %cst_29 = arith.constant dense<0.000000e+00> : vector<6x240xf32>
    %30 = tpu.matmul %29, %17, %cst_29 {dimension_numbers = #tpu.dot_dimension_numbers<[1], [0], [0], [1], [0, 0, 1, 1], [], []>} : vector<6x28xf32>, vector<28x240xf32>, vector<6x240xf32> -> vector<6x240xf32>
    %31 = arith.addf %28, %30 : vector<6x240xf32>
    %c0_30 = arith.constant 0 : index
    %c0_31 = arith.constant 0 : index
    %32 = vector.load %arg3[%c0_30, %c0_31] : memref<1x240xf32, #tpu.memory_space<vmem>>, vector<1x240xf32>
    %33 = vector.broadcast %32 : vector<1x240xf32> to vector<6x240xf32>
    %34 = arith.addf %31, %33 : vector<6x240xf32>
    %35 = vector.extract_strided_slice %3 {offsets = [0, 0], sizes = [6, 28], strides = [1, 1]} : vector<7x28xf32> to vector<6x28xf32>
    %cst_32 = arith.constant dense<0.000000e+00> : vector<6x240xf32>
    %36 = tpu.matmul %35, %9, %cst_32 {dimension_numbers = #tpu.dot_dimension_numbers<[1], [0], [0], [1], [0, 0, 1, 1], [], []>} : vector<6x28xf32>, vector<28x240xf32>, vector<6x240xf32> -> vector<6x240xf32>
    %37 = vector.extract_strided_slice %5 {offsets = [0, 0], sizes = [6, 28], strides = [1, 1]} : vector<7x28xf32> to vector<6x28xf32>
    %cst_33 = arith.constant dense<0.000000e+00> : vector<6x240xf32>
    %38 = tpu.matmul %37, %11, %cst_33 {dimension_numbers = #tpu.dot_dimension_numbers<[1], [0], [0], [1], [0, 0, 1, 1], [], []>} : vector<6x28xf32>, vector<28x240xf32>, vector<6x240xf32> -> vector<6x240xf32>
    %39 = arith.addf %36, %38 : vector<6x240xf32>
    %40 = vector.extract_strided_slice %7 {offsets = [0, 0], sizes = [6, 28], strides = [1, 1]} : vector<7x28xf32> to vector<6x28xf32>
    %cst_34 = arith.constant dense<0.000000e+00> : vector<6x240xf32>
    %41 = tpu.matmul %40, %13, %cst_34 {dimension_numbers = #tpu.dot_dimension_numbers<[1], [0], [0], [1], [0, 0, 1, 1], [], []>} : vector<6x28xf32>, vector<28x240xf32>, vector<6x240xf32> -> vector<6x240xf32>
    %42 = arith.addf %39, %41 : vector<6x240xf32>
    %43 = vector.extract_strided_slice %1 {offsets = [1, 0], sizes = [6, 28], strides = [1, 1]} : vector<7x28xf32> to vector<6x28xf32>
    %cst_35 = arith.constant dense<0.000000e+00> : vector<6x240xf32>
    %44 = tpu.matmul %43, %15, %cst_35 {dimension_numbers = #tpu.dot_dimension_numbers<[1], [0], [0], [1], [0, 0, 1, 1], [], []>} : vector<6x28xf32>, vector<28x240xf32>, vector<6x240xf32> -> vector<6x240xf32>
    %45 = arith.addf %42, %44 : vector<6x240xf32>
    %46 = vector.extract_strided_slice %3 {offsets = [1, 0], sizes = [6, 28], strides = [1, 1]} : vector<7x28xf32> to vector<6x28xf32>
    %cst_36 = arith.constant dense<0.000000e+00> : vector<6x240xf32>
    %47 = tpu.matmul %46, %17, %cst_36 {dimension_numbers = #tpu.dot_dimension_numbers<[1], [0], [0], [1], [0, 0, 1, 1], [], []>} : vector<6x28xf32>, vector<28x240xf32>, vector<6x240xf32> -> vector<6x240xf32>
    %48 = arith.addf %45, %47 : vector<6x240xf32>
    %c0_37 = arith.constant 0 : index
    %c0_38 = arith.constant 0 : index
    %49 = vector.load %arg3[%c0_37, %c0_38] : memref<1x240xf32, #tpu.memory_space<vmem>>, vector<1x240xf32>
    %50 = vector.broadcast %49 : vector<1x240xf32> to vector<6x240xf32>
    %51 = arith.addf %48, %50 : vector<6x240xf32>
    %52 = vector.extract_strided_slice %5 {offsets = [0, 0], sizes = [6, 28], strides = [1, 1]} : vector<7x28xf32> to vector<6x28xf32>
    %cst_39 = arith.constant dense<0.000000e+00> : vector<6x240xf32>
    %53 = tpu.matmul %52, %9, %cst_39 {dimension_numbers = #tpu.dot_dimension_numbers<[1], [0], [0], [1], [0, 0, 1, 1], [], []>} : vector<6x28xf32>, vector<28x240xf32>, vector<6x240xf32> -> vector<6x240xf32>
    %54 = vector.extract_strided_slice %7 {offsets = [0, 0], sizes = [6, 28], strides = [1, 1]} : vector<7x28xf32> to vector<6x28xf32>
    %cst_40 = arith.constant dense<0.000000e+00> : vector<6x240xf32>
    %55 = tpu.matmul %54, %11, %cst_40 {dimension_numbers = #tpu.dot_dimension_numbers<[1], [0], [0], [1], [0, 0, 1, 1], [], []>} : vector<6x28xf32>, vector<28x240xf32>, vector<6x240xf32> -> vector<6x240xf32>
    %56 = arith.addf %53, %55 : vector<6x240xf32>
    %57 = vector.extract_strided_slice %1 {offsets = [1, 0], sizes = [6, 28], strides = [1, 1]} : vector<7x28xf32> to vector<6x28xf32>
    %cst_41 = arith.constant dense<0.000000e+00> : vector<6x240xf32>
    %58 = tpu.matmul %57, %13, %cst_41 {dimension_numbers = #tpu.dot_dimension_numbers<[1], [0], [0], [1], [0, 0, 1, 1], [], []>} : vector<6x28xf32>, vector<28x240xf32>, vector<6x240xf32> -> vector<6x240xf32>
    %59 = arith.addf %56, %58 : vector<6x240xf32>
    %60 = vector.extract_strided_slice %3 {offsets = [1, 0], sizes = [6, 28], strides = [1, 1]} : vector<7x28xf32> to vector<6x28xf32>
    %cst_42 = arith.constant dense<0.000000e+00> : vector<6x240xf32>
    %61 = tpu.matmul %60, %15, %cst_42 {dimension_numbers = #tpu.dot_dimension_numbers<[1], [0], [0], [1], [0, 0, 1, 1], [], []>} : vector<6x28xf32>, vector<28x240xf32>, vector<6x240xf32> -> vector<6x240xf32>
    %62 = arith.addf %59, %61 : vector<6x240xf32>
    %63 = vector.extract_strided_slice %5 {offsets = [1, 0], sizes = [6, 28], strides = [1, 1]} : vector<7x28xf32> to vector<6x28xf32>
    %cst_43 = arith.constant dense<0.000000e+00> : vector<6x240xf32>
    %64 = tpu.matmul %63, %17, %cst_43 {dimension_numbers = #tpu.dot_dimension_numbers<[1], [0], [0], [1], [0, 0, 1, 1], [], []>} : vector<6x28xf32>, vector<28x240xf32>, vector<6x240xf32> -> vector<6x240xf32>
    %65 = arith.addf %62, %64 : vector<6x240xf32>
    %c0_44 = arith.constant 0 : index
    %c0_45 = arith.constant 0 : index
    %66 = vector.load %arg3[%c0_44, %c0_45] : memref<1x240xf32, #tpu.memory_space<vmem>>, vector<1x240xf32>
    %67 = vector.broadcast %66 : vector<1x240xf32> to vector<6x240xf32>
    %68 = arith.addf %65, %67 : vector<6x240xf32>
    %69 = vector.extract_strided_slice %7 {offsets = [0, 0], sizes = [6, 28], strides = [1, 1]} : vector<7x28xf32> to vector<6x28xf32>
    %cst_46 = arith.constant dense<0.000000e+00> : vector<6x240xf32>
    %70 = tpu.matmul %69, %9, %cst_46 {dimension_numbers = #tpu.dot_dimension_numbers<[1], [0], [0], [1], [0, 0, 1, 1], [], []>} : vector<6x28xf32>, vector<28x240xf32>, vector<6x240xf32> -> vector<6x240xf32>
    %71 = vector.extract_strided_slice %1 {offsets = [1, 0], sizes = [6, 28], strides = [1, 1]} : vector<7x28xf32> to vector<6x28xf32>
    %cst_47 = arith.constant dense<0.000000e+00> : vector<6x240xf32>
    %72 = tpu.matmul %71, %11, %cst_47 {dimension_numbers = #tpu.dot_dimension_numbers<[1], [0], [0], [1], [0, 0, 1, 1], [], []>} : vector<6x28xf32>, vector<28x240xf32>, vector<6x240xf32> -> vector<6x240xf32>
    %73 = arith.addf %70, %72 : vector<6x240xf32>
    %74 = vector.extract_strided_slice %3 {offsets = [1, 0], sizes = [6, 28], strides = [1, 1]} : vector<7x28xf32> to vector<6x28xf32>
    %cst_48 = arith.constant dense<0.000000e+00> : vector<6x240xf32>
    %75 = tpu.matmul %74, %13, %cst_48 {dimension_numbers = #tpu.dot_dimension_numbers<[1], [0], [0], [1], [0, 0, 1, 1], [], []>} : vector<6x28xf32>, vector<28x240xf32>, vector<6x240xf32> -> vector<6x240xf32>
    %76 = arith.addf %73, %75 : vector<6x240xf32>
    %77 = vector.extract_strided_slice %5 {offsets = [1, 0], sizes = [6, 28], strides = [1, 1]} : vector<7x28xf32> to vector<6x28xf32>
    %cst_49 = arith.constant dense<0.000000e+00> : vector<6x240xf32>
    %78 = tpu.matmul %77, %15, %cst_49 {dimension_numbers = #tpu.dot_dimension_numbers<[1], [0], [0], [1], [0, 0, 1, 1], [], []>} : vector<6x28xf32>, vector<28x240xf32>, vector<6x240xf32> -> vector<6x240xf32>
    %79 = arith.addf %76, %78 : vector<6x240xf32>
    %80 = vector.extract_strided_slice %7 {offsets = [1, 0], sizes = [6, 28], strides = [1, 1]} : vector<7x28xf32> to vector<6x28xf32>
    %cst_50 = arith.constant dense<0.000000e+00> : vector<6x240xf32>
    %81 = tpu.matmul %80, %17, %cst_50 {dimension_numbers = #tpu.dot_dimension_numbers<[1], [0], [0], [1], [0, 0, 1, 1], [], []>} : vector<6x28xf32>, vector<28x240xf32>, vector<6x240xf32> -> vector<6x240xf32>
    %82 = arith.addf %79, %81 : vector<6x240xf32>
    %c0_51 = arith.constant 0 : index
    %c0_52 = arith.constant 0 : index
    %83 = vector.load %arg3[%c0_51, %c0_52] : memref<1x240xf32, #tpu.memory_space<vmem>>, vector<1x240xf32>
    %84 = vector.broadcast %83 : vector<1x240xf32> to vector<6x240xf32>
    %85 = arith.addf %82, %84 : vector<6x240xf32>
    %c0_53 = arith.constant 0 : index
    %c0_54 = arith.constant 0 : index
    %c0_55 = arith.constant 0 : index
    %86 = vector.load %arg4[%c0_53, %c0_54, %c0_55] : memref<2x240x120xf32, #tpu.memory_space<vmem>>, vector<1x240x120xf32>
    %87 = vector.shape_cast %86 : vector<1x240x120xf32> to vector<240x120xf32>
    %c1_56 = arith.constant 1 : index
    %c0_57 = arith.constant 0 : index
    %c0_58 = arith.constant 0 : index
    %88 = vector.load %arg4[%c1_56, %c0_57, %c0_58] : memref<2x240x120xf32, #tpu.memory_space<vmem>>, vector<1x240x120xf32>
    %89 = vector.shape_cast %88 : vector<1x240x120xf32> to vector<240x120xf32>
    %cst_59 = arith.constant dense<0.000000e+00> : vector<6x120xf32>
    %90 = tpu.matmul %34, %87, %cst_59 {dimension_numbers = #tpu.dot_dimension_numbers<[1], [0], [0], [1], [0, 0, 1, 1], [], []>} : vector<6x240xf32>, vector<240x120xf32>, vector<6x120xf32> -> vector<6x120xf32>
    %cst_60 = arith.constant dense<0.000000e+00> : vector<6x120xf32>
    %91 = tpu.matmul %34, %89, %cst_60 {dimension_numbers = #tpu.dot_dimension_numbers<[1], [0], [0], [1], [0, 0, 1, 1], [], []>} : vector<6x240xf32>, vector<240x120xf32>, vector<6x120xf32> -> vector<6x120xf32>
    %92 = arith.maximumf %90, %91 : vector<6x120xf32>
    %cst_61 = arith.constant dense<0.000000e+00> : vector<6x120xf32>
    %93 = tpu.matmul %51, %87, %cst_61 {dimension_numbers = #tpu.dot_dimension_numbers<[1], [0], [0], [1], [0, 0, 1, 1], [], []>} : vector<6x240xf32>, vector<240x120xf32>, vector<6x120xf32> -> vector<6x120xf32>
    %cst_62 = arith.constant dense<0.000000e+00> : vector<6x120xf32>
    %94 = tpu.matmul %51, %89, %cst_62 {dimension_numbers = #tpu.dot_dimension_numbers<[1], [0], [0], [1], [0, 0, 1, 1], [], []>} : vector<6x240xf32>, vector<240x120xf32>, vector<6x120xf32> -> vector<6x120xf32>
    %95 = arith.maximumf %93, %94 : vector<6x120xf32>
    %cst_63 = arith.constant dense<0.000000e+00> : vector<6x120xf32>
    %96 = tpu.matmul %68, %87, %cst_63 {dimension_numbers = #tpu.dot_dimension_numbers<[1], [0], [0], [1], [0, 0, 1, 1], [], []>} : vector<6x240xf32>, vector<240x120xf32>, vector<6x120xf32> -> vector<6x120xf32>
    %cst_64 = arith.constant dense<0.000000e+00> : vector<6x120xf32>
    %97 = tpu.matmul %68, %89, %cst_64 {dimension_numbers = #tpu.dot_dimension_numbers<[1], [0], [0], [1], [0, 0, 1, 1], [], []>} : vector<6x240xf32>, vector<240x120xf32>, vector<6x120xf32> -> vector<6x120xf32>
    %98 = arith.maximumf %96, %97 : vector<6x120xf32>
    %cst_65 = arith.constant dense<0.000000e+00> : vector<6x120xf32>
    %99 = tpu.matmul %85, %87, %cst_65 {dimension_numbers = #tpu.dot_dimension_numbers<[1], [0], [0], [1], [0, 0, 1, 1], [], []>} : vector<6x240xf32>, vector<240x120xf32>, vector<6x120xf32> -> vector<6x120xf32>
    %cst_66 = arith.constant dense<0.000000e+00> : vector<6x120xf32>
    %100 = tpu.matmul %85, %89, %cst_66 {dimension_numbers = #tpu.dot_dimension_numbers<[1], [0], [0], [1], [0, 0, 1, 1], [], []>} : vector<6x240xf32>, vector<240x120xf32>, vector<6x120xf32> -> vector<6x120xf32>
    %101 = arith.maximumf %99, %100 : vector<6x120xf32>
    %102 = arith.maximumf %92, %95 : vector<6x120xf32>
    %cst_67 = arith.constant 0.000000e+00 : f32
    %103 = vector.broadcast %cst_67 : f32 to vector<6x120xf32>
    %104 = arith.maximumf %102, %103 : vector<6x120xf32>
    %105 = arith.maximumf %98, %101 : vector<6x120xf32>
    %cst_68 = arith.constant 0.000000e+00 : f32
    %106 = vector.broadcast %cst_68 : f32 to vector<6x120xf32>
    %107 = arith.maximumf %105, %106 : vector<6x120xf32>
    %c0_69 = arith.constant 0 : index
    %c0_70 = arith.constant 0 : index
    %c0_71 = arith.constant 0 : index
    %108 = vector.load %arg5[%c0_69, %c0_70, %c0_71] : memref<5x120x160xf32, #tpu.memory_space<vmem>>, vector<1x120x160xf32>
    %109 = vector.shape_cast %108 : vector<1x120x160xf32> to vector<120x160xf32>
    %c1_72 = arith.constant 1 : index
    %c0_73 = arith.constant 0 : index
    %c0_74 = arith.constant 0 : index
    %110 = vector.load %arg5[%c1_72, %c0_73, %c0_74] : memref<5x120x160xf32, #tpu.memory_space<vmem>>, vector<1x120x160xf32>
    %111 = vector.shape_cast %110 : vector<1x120x160xf32> to vector<120x160xf32>
    %c2_75 = arith.constant 2 : index
    %c0_76 = arith.constant 0 : index
    %c0_77 = arith.constant 0 : index
    %112 = vector.load %arg5[%c2_75, %c0_76, %c0_77] : memref<5x120x160xf32, #tpu.memory_space<vmem>>, vector<1x120x160xf32>
    %113 = vector.shape_cast %112 : vector<1x120x160xf32> to vector<120x160xf32>
    %c3_78 = arith.constant 3 : index
    %c0_79 = arith.constant 0 : index
    %c0_80 = arith.constant 0 : index
    %114 = vector.load %arg5[%c3_78, %c0_79, %c0_80] : memref<5x120x160xf32, #tpu.memory_space<vmem>>, vector<1x120x160xf32>
    %115 = vector.shape_cast %114 : vector<1x120x160xf32> to vector<120x160xf32>
    %c4_81 = arith.constant 4 : index
    %c0_82 = arith.constant 0 : index
    %c0_83 = arith.constant 0 : index
    %116 = vector.load %arg5[%c4_81, %c0_82, %c0_83] : memref<5x120x160xf32, #tpu.memory_space<vmem>>, vector<1x120x160xf32>
    %117 = vector.shape_cast %116 : vector<1x120x160xf32> to vector<120x160xf32>
    %118 = vector.extract_strided_slice %104 {offsets = [0, 0], sizes = [4, 120], strides = [1, 1]} : vector<6x120xf32> to vector<4x120xf32>
    %cst_84 = arith.constant dense<0.000000e+00> : vector<4x160xf32>
    %119 = tpu.matmul %118, %109, %cst_84 {dimension_numbers = #tpu.dot_dimension_numbers<[1], [0], [0], [1], [0, 0, 1, 1], [], []>} : vector<4x120xf32>, vector<120x160xf32>, vector<4x160xf32> -> vector<4x160xf32>
    %120 = vector.extract_strided_slice %107 {offsets = [0, 0], sizes = [4, 120], strides = [1, 1]} : vector<6x120xf32> to vector<4x120xf32>
    %cst_85 = arith.constant dense<0.000000e+00> : vector<4x160xf32>
    %121 = tpu.matmul %120, %111, %cst_85 {dimension_numbers = #tpu.dot_dimension_numbers<[1], [0], [0], [1], [0, 0, 1, 1], [], []>} : vector<4x120xf32>, vector<120x160xf32>, vector<4x160xf32> -> vector<4x160xf32>
    %122 = arith.addf %119, %121 : vector<4x160xf32>
    %123 = vector.extract_strided_slice %104 {offsets = [1, 0], sizes = [4, 120], strides = [1, 1]} : vector<6x120xf32> to vector<4x120xf32>
    %cst_86 = arith.constant dense<0.000000e+00> : vector<4x160xf32>
    %124 = tpu.matmul %123, %113, %cst_86 {dimension_numbers = #tpu.dot_dimension_numbers<[1], [0], [0], [1], [0, 0, 1, 1], [], []>} : vector<4x120xf32>, vector<120x160xf32>, vector<4x160xf32> -> vector<4x160xf32>
    %125 = arith.addf %122, %124 : vector<4x160xf32>
    %126 = vector.extract_strided_slice %107 {offsets = [1, 0], sizes = [4, 120], strides = [1, 1]} : vector<6x120xf32> to vector<4x120xf32>
    %cst_87 = arith.constant dense<0.000000e+00> : vector<4x160xf32>
    %127 = tpu.matmul %126, %115, %cst_87 {dimension_numbers = #tpu.dot_dimension_numbers<[1], [0], [0], [1], [0, 0, 1, 1], [], []>} : vector<4x120xf32>, vector<120x160xf32>, vector<4x160xf32> -> vector<4x160xf32>
    %128 = arith.addf %125, %127 : vector<4x160xf32>
    %129 = vector.extract_strided_slice %104 {offsets = [2, 0], sizes = [4, 120], strides = [1, 1]} : vector<6x120xf32> to vector<4x120xf32>
    %cst_88 = arith.constant dense<0.000000e+00> : vector<4x160xf32>
    %130 = tpu.matmul %129, %117, %cst_88 {dimension_numbers = #tpu.dot_dimension_numbers<[1], [0], [0], [1], [0, 0, 1, 1], [], []>} : vector<4x120xf32>, vector<120x160xf32>, vector<4x160xf32> -> vector<4x160xf32>
    %131 = arith.addf %128, %130 : vector<4x160xf32>
    %c0_89 = arith.constant 0 : index
    %c0_90 = arith.constant 0 : index
    %132 = vector.load %arg6[%c0_89, %c0_90] : memref<1x160xf32, #tpu.memory_space<vmem>>, vector<1x160xf32>
    %133 = vector.broadcast %132 : vector<1x160xf32> to vector<4x160xf32>
    %134 = arith.addf %131, %133 : vector<4x160xf32>
    %135 = vector.extract_strided_slice %107 {offsets = [0, 0], sizes = [4, 120], strides = [1, 1]} : vector<6x120xf32> to vector<4x120xf32>
    %cst_91 = arith.constant dense<0.000000e+00> : vector<4x160xf32>
    %136 = tpu.matmul %135, %109, %cst_91 {dimension_numbers = #tpu.dot_dimension_numbers<[1], [0], [0], [1], [0, 0, 1, 1], [], []>} : vector<4x120xf32>, vector<120x160xf32>, vector<4x160xf32> -> vector<4x160xf32>
    %137 = vector.extract_strided_slice %104 {offsets = [1, 0], sizes = [4, 120], strides = [1, 1]} : vector<6x120xf32> to vector<4x120xf32>
    %cst_92 = arith.constant dense<0.000000e+00> : vector<4x160xf32>
    %138 = tpu.matmul %137, %111, %cst_92 {dimension_numbers = #tpu.dot_dimension_numbers<[1], [0], [0], [1], [0, 0, 1, 1], [], []>} : vector<4x120xf32>, vector<120x160xf32>, vector<4x160xf32> -> vector<4x160xf32>
    %139 = arith.addf %136, %138 : vector<4x160xf32>
    %140 = vector.extract_strided_slice %107 {offsets = [1, 0], sizes = [4, 120], strides = [1, 1]} : vector<6x120xf32> to vector<4x120xf32>
    %cst_93 = arith.constant dense<0.000000e+00> : vector<4x160xf32>
    %141 = tpu.matmul %140, %113, %cst_93 {dimension_numbers = #tpu.dot_dimension_numbers<[1], [0], [0], [1], [0, 0, 1, 1], [], []>} : vector<4x120xf32>, vector<120x160xf32>, vector<4x160xf32> -> vector<4x160xf32>
    %142 = arith.addf %139, %141 : vector<4x160xf32>
    %143 = vector.extract_strided_slice %104 {offsets = [2, 0], sizes = [4, 120], strides = [1, 1]} : vector<6x120xf32> to vector<4x120xf32>
    %cst_94 = arith.constant dense<0.000000e+00> : vector<4x160xf32>
    %144 = tpu.matmul %143, %115, %cst_94 {dimension_numbers = #tpu.dot_dimension_numbers<[1], [0], [0], [1], [0, 0, 1, 1], [], []>} : vector<4x120xf32>, vector<120x160xf32>, vector<4x160xf32> -> vector<4x160xf32>
    %145 = arith.addf %142, %144 : vector<4x160xf32>
    %146 = vector.extract_strided_slice %107 {offsets = [2, 0], sizes = [4, 120], strides = [1, 1]} : vector<6x120xf32> to vector<4x120xf32>
    %cst_95 = arith.constant dense<0.000000e+00> : vector<4x160xf32>
    %147 = tpu.matmul %146, %117, %cst_95 {dimension_numbers = #tpu.dot_dimension_numbers<[1], [0], [0], [1], [0, 0, 1, 1], [], []>} : vector<4x120xf32>, vector<120x160xf32>, vector<4x160xf32> -> vector<4x160xf32>
    %148 = arith.addf %145, %147 : vector<4x160xf32>
    %c0_96 = arith.constant 0 : index
    %c0_97 = arith.constant 0 : index
    %149 = vector.load %arg6[%c0_96, %c0_97] : memref<1x160xf32, #tpu.memory_space<vmem>>, vector<1x160xf32>
    %150 = vector.broadcast %149 : vector<1x160xf32> to vector<4x160xf32>
    %151 = arith.addf %148, %150 : vector<4x160xf32>
    %c0_98 = arith.constant 0 : index
    %c0_99 = arith.constant 0 : index
    %c0_100 = arith.constant 0 : index
    %152 = vector.load %arg7[%c0_98, %c0_99, %c0_100] : memref<2x160x80xf32, #tpu.memory_space<vmem>>, vector<1x160x80xf32>
    %153 = vector.shape_cast %152 : vector<1x160x80xf32> to vector<160x80xf32>
    %c1_101 = arith.constant 1 : index
    %c0_102 = arith.constant 0 : index
    %c0_103 = arith.constant 0 : index
    %154 = vector.load %arg7[%c1_101, %c0_102, %c0_103] : memref<2x160x80xf32, #tpu.memory_space<vmem>>, vector<1x160x80xf32>
    %155 = vector.shape_cast %154 : vector<1x160x80xf32> to vector<160x80xf32>
    %156 = arith.maximumf %134, %151 : vector<4x160xf32>
    %cst_104 = arith.constant dense<0.000000e+00> : vector<4x80xf32>
    %157 = tpu.matmul %156, %153, %cst_104 {dimension_numbers = #tpu.dot_dimension_numbers<[1], [0], [0], [1], [0, 0, 1, 1], [], []>} : vector<4x160xf32>, vector<160x80xf32>, vector<4x80xf32> -> vector<4x80xf32>
    %cst_105 = arith.constant dense<0.000000e+00> : vector<4x80xf32>
    %158 = tpu.matmul %156, %155, %cst_105 {dimension_numbers = #tpu.dot_dimension_numbers<[1], [0], [0], [1], [0, 0, 1, 1], [], []>} : vector<4x160xf32>, vector<160x80xf32>, vector<4x80xf32> -> vector<4x80xf32>
    %159 = arith.maximumf %157, %158 : vector<4x80xf32>
    %cst_106 = arith.constant 0.000000e+00 : f32
    %160 = vector.broadcast %cst_106 : f32 to vector<4x80xf32>
    %161 = arith.maximumf %159, %160 : vector<4x80xf32>
    %c0_107 = arith.constant 0 : index
    %c0_108 = arith.constant 0 : index
    %162 = vector.load %arg9[%c0_107, %c0_108] : memref<1x50xf32, #tpu.memory_space<vmem>>, vector<1x50xf32>
    %163 = vector.extract_strided_slice %161 {offsets = [0, 0], sizes = [1, 80], strides = [1, 1]} : vector<4x80xf32> to vector<1x80xf32>
    %c0_109 = arith.constant 0 : index
    %c0_110 = arith.constant 0 : index
    %c0_111 = arith.constant 0 : index
    %164 = vector.load %arg8[%c0_109, %c0_110, %c0_111] : memref<4x80x50xf32, #tpu.memory_space<vmem>>, vector<1x80x50xf32>
    %165 = vector.shape_cast %164 : vector<1x80x50xf32> to vector<80x50xf32>
    %cst_112 = arith.constant dense<0.000000e+00> : vector<1x50xf32>
    %166 = tpu.matmul %163, %165, %cst_112 {dimension_numbers = #tpu.dot_dimension_numbers<[1], [0], [0], [1], [0, 0, 1, 1], [], []>} : vector<1x80xf32>, vector<80x50xf32>, vector<1x50xf32> -> vector<1x50xf32>
    %167 = arith.addf %162, %166 : vector<1x50xf32>
    %168 = vector.extract_strided_slice %161 {offsets = [1, 0], sizes = [1, 80], strides = [1, 1]} : vector<4x80xf32> to vector<1x80xf32>
    %c1_113 = arith.constant 1 : index
    %c0_114 = arith.constant 0 : index
    %c0_115 = arith.constant 0 : index
    %169 = vector.load %arg8[%c1_113, %c0_114, %c0_115] : memref<4x80x50xf32, #tpu.memory_space<vmem>>, vector<1x80x50xf32>
    %170 = vector.shape_cast %169 : vector<1x80x50xf32> to vector<80x50xf32>
    %cst_116 = arith.constant dense<0.000000e+00> : vector<1x50xf32>
    %171 = tpu.matmul %168, %170, %cst_116 {dimension_numbers = #tpu.dot_dimension_numbers<[1], [0], [0], [1], [0, 0, 1, 1], [], []>} : vector<1x80xf32>, vector<80x50xf32>, vector<1x50xf32> -> vector<1x50xf32>
    %172 = arith.addf %167, %171 : vector<1x50xf32>
    %173 = vector.extract_strided_slice %161 {offsets = [2, 0], sizes = [1, 80], strides = [1, 1]} : vector<4x80xf32> to vector<1x80xf32>
    %c2_117 = arith.constant 2 : index
    %c0_118 = arith.constant 0 : index
    %c0_119 = arith.constant 0 : index
    %174 = vector.load %arg8[%c2_117, %c0_118, %c0_119] : memref<4x80x50xf32, #tpu.memory_space<vmem>>, vector<1x80x50xf32>
    %175 = vector.shape_cast %174 : vector<1x80x50xf32> to vector<80x50xf32>
    %cst_120 = arith.constant dense<0.000000e+00> : vector<1x50xf32>
    %176 = tpu.matmul %173, %175, %cst_120 {dimension_numbers = #tpu.dot_dimension_numbers<[1], [0], [0], [1], [0, 0, 1, 1], [], []>} : vector<1x80xf32>, vector<80x50xf32>, vector<1x50xf32> -> vector<1x50xf32>
    %177 = arith.addf %172, %176 : vector<1x50xf32>
    %178 = vector.extract_strided_slice %161 {offsets = [3, 0], sizes = [1, 80], strides = [1, 1]} : vector<4x80xf32> to vector<1x80xf32>
    %c3_121 = arith.constant 3 : index
    %c0_122 = arith.constant 0 : index
    %c0_123 = arith.constant 0 : index
    %179 = vector.load %arg8[%c3_121, %c0_122, %c0_123] : memref<4x80x50xf32, #tpu.memory_space<vmem>>, vector<1x80x50xf32>
    %180 = vector.shape_cast %179 : vector<1x80x50xf32> to vector<80x50xf32>
    %cst_124 = arith.constant dense<0.000000e+00> : vector<1x50xf32>
    %181 = tpu.matmul %178, %180, %cst_124 {dimension_numbers = #tpu.dot_dimension_numbers<[1], [0], [0], [1], [0, 0, 1, 1], [], []>} : vector<1x80xf32>, vector<80x50xf32>, vector<1x50xf32> -> vector<1x50xf32>
    %182 = arith.addf %177, %181 : vector<1x50xf32>
    %cst_125 = arith.constant 0.000000e+00 : f32
    %183 = vector.broadcast %cst_125 : f32 to vector<1x50xf32>
    %184 = arith.maximumf %182, %183 : vector<1x50xf32>
    %c0_126 = arith.constant 0 : index
    %c0_127 = arith.constant 0 : index
    %185 = vector.load %arg10[%c0_126, %c0_127] : memref<50x10xf32, #tpu.memory_space<vmem>>, vector<50x10xf32>
    %cst_128 = arith.constant dense<0.000000e+00> : vector<1x10xf32>
    %186 = tpu.matmul %184, %185, %cst_128 {dimension_numbers = #tpu.dot_dimension_numbers<[1], [0], [0], [1], [0, 0, 1, 1], [], []>} : vector<1x50xf32>, vector<50x10xf32>, vector<1x10xf32> -> vector<1x10xf32>
    %c0_129 = arith.constant 0 : index
    %c0_130 = arith.constant 0 : index
    %187 = vector.load %arg11[%c0_129, %c0_130] : memref<1x10xf32, #tpu.memory_space<vmem>>, vector<1x10xf32>
    %188 = arith.addf %186, %187 : vector<1x10xf32>
    %cst_131 = arith.constant dense<0xFF800000> : vector<1xf32>
    %189 = vector.multi_reduction <maximumf>, %188, %cst_131 [1] : vector<1x10xf32> to vector<1xf32>
    %190 = vector.shape_cast %189 : vector<1xf32> to vector<1x1xf32>
    %191 = vector.broadcast %190 : vector<1x1xf32> to vector<1x10xf32>
    %192 = arith.subf %188, %191 : vector<1x10xf32>
    %193 = math.exp %192 : vector<1x10xf32>
    %cst_132 = arith.constant dense<0.000000e+00> : vector<1xf32>
    %194 = vector.multi_reduction <add>, %193, %cst_132 [1] : vector<1x10xf32> to vector<1xf32>
    %195 = vector.shape_cast %194 : vector<1xf32> to vector<1x1xf32>
    %196 = math.log %195 : vector<1x1xf32>
    %197 = vector.broadcast %196 : vector<1x1xf32> to vector<1x10xf32>
    %198 = arith.subf %192, %197 : vector<1x10xf32>
    %c0_133 = arith.constant 0 : index
    %c0_134 = arith.constant 0 : index
    %c0_135 = arith.constant 0 : index
    %199 = vector.load %arg12[%c0_133, %c0_134, %c0_135] : memref<1x1x10xf32, #tpu.memory_space<vmem>>, vector<1x1x10xf32>
    %200 = vector.shape_cast %199 : vector<1x1x10xf32> to vector<1x10xf32>
    %201 = vector.shape_cast %198 : vector<1x10xf32> to vector<1x1x10xf32>
    tpu.vector_store %arg12[%c0_133, %c0_134, %c0_135], %201 {strides = array<i32>} : memref<1x1x10xf32, #tpu.memory_space<vmem>>, vector<1x1x10xf32>,
    return
  }
  func.func @transform_0(%arg0: i32) -> (i32, i32, i32, i32) {
    %c0_i32 = arith.constant 0 : i32
    %c0_i32_0 = arith.constant 0 : i32
    %c0_i32_1 = arith.constant 0 : i32
    %c0_i32_2 = arith.constant 0 : i32
    return %arg0, %c0_i32, %c0_i32_0, %c0_i32_1 : i32, i32, i32, i32
  }
  func.func @transform_1(%arg0: i32) -> (i32, i32, i32) {
    %c0_i32 = arith.constant 0 : i32
    %c0_i32_0 = arith.constant 0 : i32
    %c0_i32_1 = arith.constant 0 : i32
    %c0_i32_2 = arith.constant 0 : i32
    return %c0_i32, %c0_i32_0, %c0_i32_1 : i32, i32, i32
  }
  func.func @transform_2(%arg0: i32) -> (i32, i32) {
    %c0_i32 = arith.constant 0 : i32
    %c0_i32_0 = arith.constant 0 : i32
    %c0_i32_1 = arith.constant 0 : i32
    return %c0_i32, %c0_i32_0 : i32, i32
  }
  func.func @transform_3(%arg0: i32) -> (i32, i32, i32) {
    %c0_i32 = arith.constant 0 : i32
    %c0_i32_0 = arith.constant 0 : i32
    %c0_i32_1 = arith.constant 0 : i32
    %c0_i32_2 = arith.constant 0 : i32
    return %c0_i32, %c0_i32_0, %c0_i32_1 : i32, i32, i32
  }
  func.func @transform_4(%arg0: i32) -> (i32, i32, i32) {
    %c0_i32 = arith.constant 0 : i32
    %c0_i32_0 = arith.constant 0 : i32
    %c0_i32_1 = arith.constant 0 : i32
    %c0_i32_2 = arith.constant 0 : i32
    return %c0_i32, %c0_i32_0, %c0_i32_1 : i32, i32, i32
  }
  func.func @transform_5(%arg0: i32) -> (i32, i32) {
    %c0_i32 = arith.constant 0 : i32
    %c0_i32_0 = arith.constant 0 : i32
    %c0_i32_1 = arith.constant 0 : i32
    return %c0_i32, %c0_i32_0 : i32, i32
  }
  func.func @transform_6(%arg0: i32) -> (i32, i32, i32) {
    %c0_i32 = arith.constant 0 : i32
    %c0_i32_0 = arith.constant 0 : i32
    %c0_i32_1 = arith.constant 0 : i32
    %c0_i32_2 = arith.constant 0 : i32
    return %c0_i32, %c0_i32_0, %c0_i32_1 : i32, i32, i32
  }
  func.func @transform_7(%arg0: i32) -> (i32, i32, i32) {
    %c0_i32 = arith.constant 0 : i32
    %c0_i32_0 = arith.constant 0 : i32
    %c0_i32_1 = arith.constant 0 : i32
    %c0_i32_2 = arith.constant 0 : i32
    return %c0_i32, %c0_i32_0, %c0_i32_1 : i32, i32, i32
  }
  func.func @transform_8(%arg0: i32) -> (i32, i32) {
    %c0_i32 = arith.constant 0 : i32
    %c0_i32_0 = arith.constant 0 : i32
    %c0_i32_1 = arith.constant 0 : i32
    return %c0_i32, %c0_i32_0 : i32, i32
  }
  func.func @transform_9(%arg0: i32) -> (i32, i32) {
    %c0_i32 = arith.constant 0 : i32
    %c0_i32_0 = arith.constant 0 : i32
    %c0_i32_1 = arith.constant 0 : i32
    return %c0_i32, %c0_i32_0 : i32, i32
  }
  func.func @transform_10(%arg0: i32) -> (i32, i32) {
    %c0_i32 = arith.constant 0 : i32
    %c0_i32_0 = arith.constant 0 : i32
    %c0_i32_1 = arith.constant 0 : i32
    return %c0_i32, %c0_i32_0 : i32, i32
  }
  func.func @transform_11(%arg0: i32) -> (i32, i32, i32) {
    %c0_i32 = arith.constant 0 : i32
    %c0_i32_0 = arith.constant 0 : i32
    %c0_i32_1 = arith.constant 0 : i32
    return %arg0, %c0_i32, %c0_i32_0 : i32, i32, i32
  }
}

</mosaic_0001>

<llo_original>
// kernel: net_forward.1
$region0: #{net_forward.1}
  #allocation0 [shape = 'u32[]', space=smem, size = 0x4, offset = 0x4, fixed_abs, tag = 'smem constant byte address 0x4 - core index']
  #allocation1 [shape = 'u32[72,128]{1,0:T(1,128)}', space=vmem, size = 0x9000, scoped, tag = 'internal scratch']
  %s0 = inlined_call_operand.vmem [shape: f32[2,4,7,28], index: 0, kind: input, shape index: {}]
  %s1 = inlined_call_operand.vmem [shape: f32[5,28,240], index: 1, kind: input, shape index: {}]
  %s2 = inlined_call_operand.vmem [shape: f32[1,240], index: 2, kind: input, shape index: {}]
  %s3 = inlined_call_operand.vmem [shape: f32[2,240,120], index: 3, kind: input, shape index: {}]
  %s4 = inlined_call_operand.vmem [shape: f32[5,120,160], index: 4, kind: input, shape index: {}]
  %s5 = inlined_call_operand.vmem [shape: f32[1,160], index: 5, kind: input, shape index: {}]
  %s6 = inlined_call_operand.vmem [shape: f32[2,160,80], index: 6, kind: input, shape index: {}]
  %s7 = inlined_call_operand.vmem [shape: f32[4,80,50], index: 7, kind: input, shape index: {}]
  %s8 = inlined_call_operand.vmem [shape: f32[1,50], index: 8, kind: input, shape index: {}]
  %s9 = inlined_call_operand.vmem [shape: f32[50,10], index: 9, kind: input, shape index: {}]
  %s10 = inlined_call_operand.vmem [shape: f32[1,10], index: 10, kind: input, shape index: {}]
  %s11 = inlined_call_operand.hbm [shape: f32[2,1,10], index: 11, kind: output, shape index: {}]
  %s12 = sld [smem:[#allocation0]]
  $region77: #{net_forward.1} parent=0
    _
  %s14 = ssub.s32 1, %s12
  %s15 = scalar_select 0, %s14, %s12
  $region1: #{net_forward.1} parent=0
    #allocation2 [shape = 'u8[1024]{0}', space=vmem, size = 0x400, scoped, tag = 'output window, operand 0']
    #allocation3 [shape = 's32[2]{0}', space=sflag, size = 0x8, scoped, tag = 'scoped memory for net_forward.1']
    %16 = vsyncpa [#allocation3], 0
    %s17 = scalar_lea.sflag [#allocation3], 1
    %18 = vsyncpa %s17, 0
    loop: start=0, step=1, limit=4
    $region2: #{net_forward.1} parent=1 // loop_pre_header
      _
    $region3: #{net_forward.1} parent=1 // loop_header
      %s20 = sphi 0, %s24
      %p21 = scmp.ge.s32.totalorder %s20, 4
      %s30 = sphi 0, %s32
      %s33 = sphi 0, %s30
      %s34 = sphi 0, %s33
      %s50 = sphi 0, %s34
      %s54 = sphi 0, %s54
      %s56 = sphi 0, %s54
      %s57 = sphi 0, %s56
      %s71 = sphi 0, %s57
      %s75 = sphi 0, %s75
      %s77 = sphi 0, %s75
      %s78 = sphi 0, %s77
      %s92 = sphi 0, %s78
      %s96 = sphi 0, %s96
      %s98 = sphi 0, %s96
      %s99 = sphi 0, %s98
      %s113 = sphi 0, %s99
      %s117 = sphi 0, %s117
      %s119 = sphi 0, %s117
      %s120 = sphi 0, %s119
      %s134 = sphi 0, %s120
      %s138 = sphi 0, %s138
      %s140 = sphi 0, %s138
      %s141 = sphi 0, %s140
      %s155 = sphi 0, %s141
      %s159 = sphi 0, %s159
      %s161 = sphi 0, %s159
      %s162 = sphi 0, %s161
      %s176 = sphi 0, %s162
      %s180 = sphi 0, %s180
      %s182 = sphi 0, %s180
      %s183 = sphi 0, %s182
      %s197 = sphi 0, %s183
      %s201 = sphi 0, %s201
      %s203 = sphi 0, %s201
      %s204 = sphi 0, %s203
      %s218 = sphi 0, %s204
      %s222 = sphi 0, %s222
      %s224 = sphi 0, %s222
      %s225 = sphi 0, %s224
      %s239 = sphi 0, %s225
      %s243 = sphi 0, %s243
      %s245 = sphi 0, %s243
      %s246 = sphi 0, %s245
      %s260 = sphi 0, %s246
      %s266 = sphi 0, %s268
      %s269 = sphi 0, %s266
      %s270 = sphi 0, %s269
      %s286 = sphi 0, %s270
    $region4: #{net_forward.1} parent=1 // loop_header_branch
      %23 = sbr.rel (%p21) target = $region8
    $region5: #{net_forward.1} parent=1 // loop_body
      %s25 = ssub.s32 %s20, 1
      %s26 = ssub.s32 %s20, 2
      %s27 = sadd.s32 %s20, 1
      %s28 = ssub.s32 %s20, %s27
      %p29 = scmp.eq.s32.totalorder %s28, 0
      %s31 = sadd.s32 %s30, 1
      %s32 = scalar_select %p29, %s30, %s31
      %p35 = pneg %p29
      %p36 = scmp.eq.s32.totalorder %s20, 1
      %p37 = por %p35, %p36
      %p38 = scmp.ne.s32.totalorder %s30, %s33
      %p39 = scmp.eq.s32.totalorder %s20, 0
      %p40 = por %p38, %p39
      %p41 = scmp.ne.s32.totalorder %s30, %s33
      %p42 = scmp.eq.s32.totalorder %s25, 1
      %p43 = por %p41, %p42
      %p44 = scmp.ne.s32.totalorder %s33, %s34
      %p45 = scmp.eq.s32.totalorder %s25, 0
      %p46 = por %p44, %p45
      %p47 = scmp.ne.s32.totalorder %s33, %s34
      %p48 = scmp.eq.s32.totalorder %s26, 1
      %p49 = por %p47, %p48
      %p51 = scmp.ne.s32.totalorder %s34, %s50
      %p52 = scmp.eq.s32.totalorder %s26, 0
      %p53 = por %p51, %p52
      %s55 = sadd.s32 %s54, 1
      %p58 = scmp.eq.s32.totalorder %s20, 1
      %p59 = scmp.ne.s32.totalorder %s54, %s56
      %p60 = scmp.eq.s32.totalorder %s20, 0
      %p61 = por %p59, %p60
      %p62 = scmp.ne.s32.totalorder %s54, %s56
      %p63 = scmp.eq.s32.totalorder %s25, 1
      %p64 = por %p62, %p63
      %p65 = scmp.ne.s32.totalorder %s56, %s57
      %p66 = scmp.eq.s32.totalorder %s25, 0
      %p67 = por %p65, %p66
      %p68 = scmp.ne.s32.totalorder %s56, %s57
      %p69 = scmp.eq.s32.totalorder %s26, 1
      %p70 = por %p68, %p69
      %p72 = scmp.ne.s32.totalorder %s57, %s71
      %p73 = scmp.eq.s32.totalorder %s26, 0
      %p74 = por %p72, %p73
      %s76 = sadd.s32 %s75, 1
      %p79 = scmp.eq.s32.totalorder %s20, 1
      %p80 = scmp.ne.s32.totalorder %s75, %s77
      %p81 = scmp.eq.s32.totalorder %s20, 0
      %p82 = por %p80, %p81
      %p83 = scmp.ne.s32.totalorder %s75, %s77
      %p84 = scmp.eq.s32.totalorder %s25, 1
      %p85 = por %p83, %p84
      %p86 = scmp.ne.s32.totalorder %s77, %s78
      %p87 = scmp.eq.s32.totalorder %s25, 0
      %p88 = por %p86, %p87
      %p89 = scmp.ne.s32.totalorder %s77, %s78
      %p90 = scmp.eq.s32.totalorder %s26, 1
      %p91 = por %p89, %p90
      %p93 = scmp.ne.s32.totalorder %s78, %s92
      %p94 = scmp.eq.s32.totalorder %s26, 0
      %p95 = por %p93, %p94
      %s97 = sadd.s32 %s96, 1
      %p100 = scmp.eq.s32.totalorder %s20, 1
      %p101 = scmp.ne.s32.totalorder %s96, %s98
      %p102 = scmp.eq.s32.totalorder %s20, 0
      %p103 = por %p101, %p102
      %p104 = scmp.ne.s32.totalorder %s96, %s98
      %p105 = scmp.eq.s32.totalorder %s25, 1
      %p106 = por %p104, %p105
      %p107 = scmp.ne.s32.totalorder %s98, %s99
      %p108 = scmp.eq.s32.totalorder %s25, 0
      %p109 = por %p107, %p108
      %p110 = scmp.ne.s32.totalorder %s98, %s99
      %p111 = scmp.eq.s32.totalorder %s26, 1
      %p112 = por %p110, %p111
      %p114 = scmp.ne.s32.totalorder %s99, %s113
      %p115 = scmp.eq.s32.totalorder %s26, 0
      %p116 = por %p114, %p115
      %s118 = sadd.s32 %s117, 1
      %p121 = scmp.eq.s32.totalorder %s20, 1
      %p122 = scmp.ne.s32.totalorder %s117, %s119
      %p123 = scmp.eq.s32.totalorder %s20, 0
      %p124 = por %p122, %p123
      %p125 = scmp.ne.s32.totalorder %s117, %s119
      %p126 = scmp.eq.s32.totalorder %s25, 1
      %p127 = por %p125, %p126
      %p128 = scmp.ne.s32.totalorder %s119, %s120
      %p129 = scmp.eq.s32.totalorder %s25, 0
      %p130 = por %p128, %p129
      %p131 = scmp.ne.s32.totalorder %s119, %s120
      %p132 = scmp.eq.s32.totalorder %s26, 1
      %p133 = por %p131, %p132
      %p135 = scmp.ne.s32.totalorder %s120, %s134
      %p136 = scmp.eq.s32.totalorder %s26, 0
      %p137 = por %p135, %p136
      %s139 = sadd.s32 %s138, 1
      %p142 = scmp.eq.s32.totalorder %s20, 1
      %p143 = scmp.ne.s32.totalorder %s138, %s140
      %p144 = scmp.eq.s32.totalorder %s20, 0
      %p145 = por %p143, %p144
      %p146 = scmp.ne.s32.totalorder %s138, %s140
      %p147 = scmp.eq.s32.totalorder %s25, 1
      %p148 = por %p146, %p147
      %p149 = scmp.ne.s32.totalorder %s140, %s141
      %p150 = scmp.eq.s32.totalorder %s25, 0
      %p151 = por %p149, %p150
      %p152 = scmp.ne.s32.totalorder %s140, %s141
      %p153 = scmp.eq.s32.totalorder %s26, 1
      %p154 = por %p152, %p153
      %p156 = scmp.ne.s32.totalorder %s141, %s155
      %p157 = scmp.eq.s32.totalorder %s26, 0
      %p158 = por %p156, %p157
      %s160 = sadd.s32 %s159, 1
      %p163 = scmp.eq.s32.totalorder %s20, 1
      %p164 = scmp.ne.s32.totalorder %s159, %s161
      %p165 = scmp.eq.s32.totalorder %s20, 0
      %p166 = por %p164, %p165
      %p167 = scmp.ne.s32.totalorder %s159, %s161
      %p168 = scmp.eq.s32.totalorder %s25, 1
      %p169 = por %p167, %p168
      %p170 = scmp.ne.s32.totalorder %s161, %s162
      %p171 = scmp.eq.s32.totalorder %s25, 0
      %p172 = por %p170, %p171
      %p173 = scmp.ne.s32.totalorder %s161, %s162
      %p174 = scmp.eq.s32.totalorder %s26, 1
      %p175 = por %p173, %p174
      %p177 = scmp.ne.s32.totalorder %s162, %s176
      %p178 = scmp.eq.s32.totalorder %s26, 0
      %p179 = por %p177, %p178
      %s181 = sadd.s32 %s180, 1
      %p184 = scmp.eq.s32.totalorder %s20, 1
      %p185 = scmp.ne.s32.totalorder %s180, %s182
      %p186 = scmp.eq.s32.totalorder %s20, 0
      %p187 = por %p185, %p186
      %p188 = scmp.ne.s32.totalorder %s180, %s182
      %p189 = scmp.eq.s32.totalorder %s25, 1
      %p190 = por %p188, %p189
      %p191 = scmp.ne.s32.totalorder %s182, %s183
      %p192 = scmp.eq.s32.totalorder %s25, 0
      %p193 = por %p191, %p192
      %p194 = scmp.ne.s32.totalorder %s182, %s183
      %p195 = scmp.eq.s32.totalorder %s26, 1
      %p196 = por %p194, %p195
      %p198 = scmp.ne.s32.totalorder %s183, %s197
      %p199 = scmp.eq.s32.totalorder %s26, 0
      %p200 = por %p198, %p199
      %s202 = sadd.s32 %s201, 1
      %p205 = scmp.eq.s32.totalorder %s20, 1
      %p206 = scmp.ne.s32.totalorder %s201, %s203
      %p207 = scmp.eq.s32.totalorder %s20, 0
      %p208 = por %p206, %p207
      %p209 = scmp.ne.s32.totalorder %s201, %s203
      %p210 = scmp.eq.s32.totalorder %s25, 1
      %p211 = por %p209, %p210
      %p212 = scmp.ne.s32.totalorder %s203, %s204
      %p213 = scmp.eq.s32.totalorder %s25, 0
      %p214 = por %p212, %p213
      %p215 = scmp.ne.s32.totalorder %s203, %s204
      %p216 = scmp.eq.s32.totalorder %s26, 1
      %p217 = por %p215, %p216
      %p219 = scmp.ne.s32.totalorder %s204, %s218
      %p220 = scmp.eq.s32.totalorder %s26, 0
      %p221 = por %p219, %p220
      %s223 = sadd.s32 %s222, 1
      %p226 = scmp.eq.s32.totalorder %s20, 1
      %p227 = scmp.ne.s32.totalorder %s222, %s224
      %p228 = scmp.eq.s32.totalorder %s20, 0
      %p229 = por %p227, %p228
      %p230 = scmp.ne.s32.totalorder %s222, %s224
      %p231 = scmp.eq.s32.totalorder %s25, 1
      %p232 = por %p230, %p231
      %p233 = scmp.ne.s32.totalorder %s224, %s225
      %p234 = scmp.eq.s32.totalorder %s25, 0
      %p235 = por %p233, %p234
      %p236 = scmp.ne.s32.totalorder %s224, %s225
      %p237 = scmp.eq.s32.totalorder %s26, 1
      %p238 = por %p236, %p237
      %p240 = scmp.ne.s32.totalorder %s225, %s239
      %p241 = scmp.eq.s32.totalorder %s26, 0
      %p242 = por %p240, %p241
      %s244 = sadd.s32 %s243, 1
      %p247 = scmp.eq.s32.totalorder %s20, 1
      %p248 = scmp.ne.s32.totalorder %s243, %s245
      %p249 = scmp.eq.s32.totalorder %s20, 0
      %p250 = por %p248, %p249
      %p251 = scmp.ne.s32.totalorder %s243, %s245
      %p252 = scmp.eq.s32.totalorder %s25, 1
      %p253 = por %p251, %p252
      %p254 = scmp.ne.s32.totalorder %s245, %s246
      %p255 = scmp.eq.s32.totalorder %s25, 0
      %p256 = por %p254, %p255
      %p257 = scmp.ne.s32.totalorder %s245, %s246
      %p258 = scmp.eq.s32.totalorder %s26, 1
      %p259 = por %p257, %p258
      %p261 = scmp.ne.s32.totalorder %s246, %s260
      %p262 = scmp.eq.s32.totalorder %s26, 0
      %p263 = por %p261, %p262
      %s264 = ssub.s32 %s20, %s27
      %p265 = scmp.eq.s32.totalorder %s264, 0
      %s267 = sadd.s32 %s266, 1
      %s268 = scalar_select %p265, %s266, %s267
      %p271 = pneg %p265
      %p272 = scmp.eq.s32.totalorder %s20, 1
      %p273 = por %p271, %p272
      %p274 = scmp.ne.s32.totalorder %s266, %s269
      %p275 = scmp.eq.s32.totalorder %s20, 0
      %p276 = por %p274, %p275
      %p277 = scmp.ne.s32.totalorder %s266, %s269
      %p278 = scmp.eq.s32.totalorder %s25, 1
      %p279 = por %p277, %p278
      %p280 = scmp.ne.s32.totalorder %s269, %s270
      %p281 = scmp.eq.s32.totalorder %s25, 0
      %p282 = por %p280, %p281
      %p283 = scmp.ne.s32.totalorder %s269, %s270
      %p284 = scmp.eq.s32.totalorder %s26, 1
      %p285 = por %p283, %p284
      %p287 = scmp.ne.s32.totalorder %s270, %s286
      %p288 = scmp.eq.s32.totalorder %s26, 0
      %p289 = por %p287, %p288
      %p290 = scmp.le.s32.totalorder 1, %s20
      %p291 = scmp.lt.s32.totalorder %s20, 3
      %p292 = pnand %p290, %p291
      %p293 = pneg %p292
      // Predicated region
      $region9: #{net_forward.1} parent=5 // pred_check
        _
      $region10: #{net_forward.1} parent=5 // pred_check_branch
        %295 = sbr.rel (%p292) target = $region12
      $region11: #{net_forward.1} parent=5 // pred_region
        %s296 = ssub.s32 %s20, 1
        // Predicated region
        $region13: #{net_forward.1} parent=11 // pred_check
          %p297 = pneg %p67
        $region14: #{net_forward.1} parent=11 // pred_check_branch
          %299 = sbr.rel (%p297) target = $region16
        $region15: #{net_forward.1} parent=11 // pred_region
          _
        $region16: #{net_forward.1} parent=11 // pred_fallthru
          _
        // Predicated region
        $region17: #{net_forward.1} parent=11 // pred_check
          %p300 = pneg %p88
        $region18: #{net_forward.1} parent=11 // pred_check_branch
          %302 = sbr.rel (%p300) target = $region20
        $region19: #{net_forward.1} parent=11 // pred_region
          _
        $region20: #{net_forward.1} parent=11 // pred_fallthru
          _
        // Predicated region
        $region21: #{net_forward.1} parent=11 // pred_check
          %p303 = pneg %p109
        $region22: #{net_forward.1} parent=11 // pred_check_branch
          %305 = sbr.rel (%p303) target = $region24
        $region23: #{net_forward.1} parent=11 // pred_region
          _
        $region24: #{net_forward.1} parent=11 // pred_fallthru
          _
        // Predicated region
        $region25: #{net_forward.1} parent=11 // pred_check
          %p306 = pneg %p130
        $region26: #{net_forward.1} parent=11 // pred_check_branch
          %308 = sbr.rel (%p306) target = $region28
        $region27: #{net_forward.1} parent=11 // pred_region
          _
        $region28: #{net_forward.1} parent=11 // pred_fallthru
          _
        // Predicated region
        $region29: #{net_forward.1} parent=11 // pred_check
          %p309 = pneg %p151
        $region30: #{net_forward.1} parent=11 // pred_check_branch
          %311 = sbr.rel (%p309) target = $region32
        $region31: #{net_forward.1} parent=11 // pred_region
          _
        $region32: #{net_forward.1} parent=11 // pred_fallthru
          _
        // Predicated region
        $region33: #{net_forward.1} parent=11 // pred_check
          %p312 = pneg %p172
        $region34: #{net_forward.1} parent=11 // pred_check_branch
          %314 = sbr.rel (%p312) target = $region36
        $region35: #{net_forward.1} parent=11 // pred_region
          _
        $region36: #{net_forward.1} parent=11 // pred_fallthru
          _
        // Predicated region
        $region37: #{net_forward.1} parent=11 // pred_check
          %p315 = pneg %p193
        $region38: #{net_forward.1} parent=11 // pred_check_branch
          %317 = sbr.rel (%p315) target = $region40
        $region39: #{net_forward.1} parent=11 // pred_region
          _
        $region40: #{net_forward.1} parent=11 // pred_fallthru
          _
        // Predicated region
        $region41: #{net_forward.1} parent=11 // pred_check
          %p318 = pneg %p214
        $region42: #{net_forward.1} parent=11 // pred_check_branch
          %320 = sbr.rel (%p318) target = $region44
        $region43: #{net_forward.1} parent=11 // pred_region
          _
        $region44: #{net_forward.1} parent=11 // pred_fallthru
          _
        // Predicated region
        $region45: #{net_forward.1} parent=11 // pred_check
          %p321 = pneg %p235
        $region46: #{net_forward.1} parent=11 // pred_check_branch
          %323 = sbr.rel (%p321) target = $region48
        $region47: #{net_forward.1} parent=11 // pred_region
          _
        $region48: #{net_forward.1} parent=11 // pred_fallthru
          _
        // Predicated region
        $region49: #{net_forward.1} parent=11 // pred_check
          %p324 = pneg %p256
        $region50: #{net_forward.1} parent=11 // pred_check_branch
          %326 = sbr.rel (%p324) target = $region52
        $region51: #{net_forward.1} parent=11 // pred_region
          _
        $region52: #{net_forward.1} parent=11 // pred_fallthru
          _
      $region12: #{net_forward.1} parent=5 // pred_fallthru
        _
      %p327 = scmp.lt.s32.totalorder %s20, 2
      // Predicated region
      $region53: #{net_forward.1} parent=5 // pred_check
        %p328 = pneg %p327
      $region54: #{net_forward.1} parent=5 // pred_check_branch
        %330 = sbr.rel (%p328) target = $region56
      $region55: #{net_forward.1} parent=5 // pred_region
        // Predicated region
        $region57: #{net_forward.1} parent=55 // pred_check
          %p331 = pneg %p40
        $region58: #{net_forward.1} parent=55 // pred_check_branch
          %333 = sbr.rel (%p331) target = $region60
        $region59: #{net_forward.1} parent=55 // pred_region
          %p334 = scmp.lt.s32.totalorder %s20, 1
          %s335 = scalar_select %p334, %s20, 1
          %s336 = smul.addr %s335, 4
          %s337 = smul.addr %s336, 8
          %s338 = scalar_lea.vmem %s0, %s337
        $region60: #{net_forward.1} parent=55 // pred_fallthru
          _
      $region56: #{net_forward.1} parent=5 // pred_fallthru
        _
      %p339 = scmp.le.s32.totalorder 1, %s20
      %p340 = scmp.lt.s32.totalorder %s20, 3
      %p341 = pnand %p339, %p340
      %p342 = pneg %p341
      // Predicated region
      $region61: #{net_forward.1} parent=5 // pred_check
        _
      $region62: #{net_forward.1} parent=5 // pred_check_branch
        %344 = sbr.rel (%p341) target = $region64
      $region63: #{net_forward.1} parent=5 // pred_region
        %s345 = ssub.s32 %s20, 1
        %p346 = scmp.lt.s32.totalorder %s25, 1
        %s347 = scalar_select %p346, %s25, 1
        %s348 = smul.addr %s347, 4
        %s349 = smul.addr %s348, 8
        %s350 = scalar_lea.vmem %s0, %s349
        %p351 = pneg %p46
        %p352 = pneg %p43
        %p353 = pneg %p67
        %p354 = pneg %p64
        %p355 = pneg %p88
        %p356 = pneg %p85
        %p357 = pneg %p109
        %p358 = pneg %p106
        %p359 = pneg %p130
        %p360 = pneg %p127
        %p361 = pneg %p151
        %p362 = pneg %p148
        %p363 = pneg %p172
        %p364 = pneg %p169
        %p365 = pneg %p193
        %p366 = pneg %p190
        %p367 = pneg %p214
        %p368 = pneg %p211
        %p369 = pneg %p235
        %p370 = pneg %p232
        %p371 = pneg %p256
        %p372 = pneg %p253
        %p373 = pneg %p282
        %p374 = pneg %p279
        %s375 = sand.u32 %s269, 1
        %s376 = scalar_lea.sflag [#allocation3], %s375
        %s377 = sand.u32 %s269, 1
        %s378 = scalar_lea.vmem [#allocation2], %s377
        %p379 = scmp.lt.s32.totalorder %s25, 1
        %s380 = scalar_select %p379, %s25, 1
        %s381 = smul.addr %s380, 4
        %s382 = smul.addr %s381, 8
        %s383 = scalar_lea.vmem %s0, %s382
        %v384 = vld [vmem:[%s383] sm:$0x7f]
        %s385 = scalar_lea.vmem %s383, 8
        %v386 = vld [vmem:[%s385] sm:$0x7f]
        %s387 = scalar_lea.vmem %s383, 16
        %v388 = vld [vmem:[%s387] sm:$0x7f]
        %s389 = scalar_lea.vmem %s383, 24
        %v390 = vld [vmem:[%s389] sm:$0x7f]
        %v391 = vld [vmem:[%s1] sm:$0xff]
        %v392 = vld [vmem:[%s1 + $0x8] sm:$0xff]
        %v393 = vld [vmem:[%s1 + $0x10] sm:$0xff]
        %v394 = vld [vmem:[%s1 + $0x18] sm:$0xff]
        %v395 = vld [vmem:[%s1 + $0x20] sm:$0xff]
        %v396 = vld [vmem:[%s1 + $0x28] sm:$0xff]
        %v397 = vld [vmem:[%s1 + $0x30] sm:$0xf]
        %v398 = vld [vmem:[%s1 + $0x38] sm:$0xf]
        %s399 = scalar_lea.vmem %s1, 64
        %v400 = vld [vmem:[%s399] sm:$0xff]
        %v401 = vld [vmem:[%s399 + $0x8] sm:$0xff]
        %v402 = vld [vmem:[%s399 + $0x10] sm:$0xff]
        %v403 = vld [vmem:[%s399 + $0x18] sm:$0xff]
        %v404 = vld [vmem:[%s399 + $0x20] sm:$0xff]
        %v405 = vld [vmem:[%s399 + $0x28] sm:$0xff]
        %v406 = vld [vmem:[%s399 + $0x30] sm:$0xf]
        %v407 = vld [vmem:[%s399 + $0x38] sm:$0xf]
        %s408 = scalar_lea.vmem %s1, 128
        %v409 = vld [vmem:[%s408] sm:$0xff]
        %v410 = vld [vmem:[%s408 + $0x8] sm:$0xff]
        %v411 = vld [vmem:[%s408 + $0x10] sm:$0xff]
        %v412 = vld [vmem:[%s408 + $0x18] sm:$0xff]
        %v413 = vld [vmem:[%s408 + $0x20] sm:$0xff]
        %v414 = vld [vmem:[%s408 + $0x28] sm:$0xff]
        %v415 = vld [vmem:[%s408 + $0x30] sm:$0xf]
        %v416 = vld [vmem:[%s408 + $0x38] sm:$0xf]
        %s417 = scalar_lea.vmem %s1, 192
        %v418 = vld [vmem:[%s417] sm:$0xff]
        %v419 = vld [vmem:[%s417 + $0x8] sm:$0xff]
        %v420 = vld [vmem:[%s417 + $0x10] sm:$0xff]
        %v421 = vld [vmem:[%s417 + $0x18] sm:$0xff]
        %v422 = vld [vmem:[%s417 + $0x20] sm:$0xff]
        %v423 = vld [vmem:[%s417 + $0x28] sm:$0xff]
        %v424 = vld [vmem:[%s417 + $0x30] sm:$0xf]
        %v425 = vld [vmem:[%s417 + $0x38] sm:$0xf]
        %s426 = scalar_lea.vmem %s1, 256
        %v427 = vld [vmem:[%s426] sm:$0xff]
        %v428 = vld [vmem:[%s426 + $0x8] sm:$0xff]
        %v429 = vld [vmem:[%s426 + $0x10] sm:$0xff]
        %v430 = vld [vmem:[%s426 + $0x18] sm:$0xff]
        %v431 = vld [vmem:[%s426 + $0x20] sm:$0xff]
        %v432 = vld [vmem:[%s426 + $0x28] sm:$0xff]
        %v433 = vld [vmem:[%s426 + $0x30] sm:$0xf]
        %v434 = vld [vmem:[%s426 + $0x38] sm:$0xf]
        %vm435 = vcmask 228352
        %v437 = vsel %vm435, %v386, 0
        %vm439 = vcmask 1043456
        %v441 = vsel %vm439, %v406, 0
        %v444 = vsel %vm439, %v407, 0
        %446 = vmatpush.msra.mxu0 0.0
        %447 = vmatpush.msra.mxu0 0.0
        %448 = vmatpush.msra.mxu0 0.0
        %449 = vmatpush.msra.mxu0 0.0
        %450 = vmatpush.msra.mxu0 0.0
        %451 = vmatpush.msra.mxu0 0.0
        %452 = vmatpush.msra.mxu0 0.0
        %453 = vmatpush.msra.mxu0 0.0
        %454 = vmatpush.msra.mxu0 0.0
        %455 = vmatpush.msra.mxu0 0.0
        %456 = vmatpush.msra.mxu0 0.0
        %457 = vmatpush.msra.mxu0 0.0
        %458 = vmatpush.msra.mxu0 %v441
        %459 = vmatpush.msra.mxu0 %v404
        %460 = vmatpush.msra.mxu0 %v402
        %461 = vmatpush.msra.mxu0 %v400
        %462 = vmatmul.f32.gmra.mxu0 %v437
        %v463 = vpop.f32.mrf.mxu0
        %v464 = vadd.f32 0.0, %v463
        %465 = vdwg.mxu0
        %466 = vmatpush.msra.mxu0 0.0
        %467 = vmatpush.msra.mxu0 0.0
        %468 = vmatpush.msra.mxu0 0.0
        %469 = vmatpush.msra.mxu0 0.0
        %470 = vmatpush.msra.mxu0 0.0
        %471 = vmatpush.msra.mxu0 0.0
        %472 = vmatpush.msra.mxu0 0.0
        %473 = vmatpush.msra.mxu0 0.0
        %474 = vmatpush.msra.mxu0 0.0
        %475 = vmatpush.msra.mxu0 0.0
        %476 = vmatpush.msra.mxu0 0.0
        %477 = vmatpush.msra.mxu0 0.0
        %478 = vmatpush.msra.mxu0 %v444
        %479 = vmatpush.msra.mxu0 %v405
        %480 = vmatpush.msra.mxu0 %v403
        %481 = vmatpush.msra.mxu0 %v401
        %482 = vmatmul.f32.gmra.mxu0 %v437
        %v483 = vpop.f32.mrf.mxu0
        %v484 = vadd.f32 0.0, %v483
        %485 = vdwg.mxu0
        %v487 = vsel %vm435, %v384, 0
        %v490 = vsel %vm439, %v397, 0
        %v493 = vsel %vm439, %v398, 0
        %495 = vmatpush.msra.mxu0 0.0
        %496 = vmatpush.msra.mxu0 0.0
        %497 = vmatpush.msra.mxu0 0.0
        %498 = vmatpush.msra.mxu0 0.0
        %499 = vmatpush.msra.mxu0 0.0
        %500 = vmatpush.msra.mxu0 0.0
        %501 = vmatpush.msra.mxu0 0.0
        %502 = vmatpush.msra.mxu0 0.0
        %503 = vmatpush.msra.mxu0 0.0
        %504 = vmatpush.msra.mxu0 0.0
        %505 = vmatpush.msra.mxu0 0.0
        %506 = vmatpush.msra.mxu0 0.0
        %507 = vmatpush.msra.mxu0 %v490
        %508 = vmatpush.msra.mxu0 %v395
        %509 = vmatpush.msra.mxu0 %v393
        %510 = vmatpush.msra.mxu0 %v391
        %511 = vmatmul.f32.gmra.mxu0 %v487
        %v512 = vpop.f32.mrf.mxu0
        %v513 = vadd.f32 %v464, %v512
        %514 = vdwg.mxu0
        %515 = vmatpush.msra.mxu0 0.0
        %516 = vmatpush.msra.mxu0 0.0
        %517 = vmatpush.msra.mxu0 0.0
        %518 = vmatpush.msra.mxu0 0.0
        %519 = vmatpush.msra.mxu0 0.0
        %520 = vmatpush.msra.mxu0 0.0
        %521 = vmatpush.msra.mxu0 0.0
        %522 = vmatpush.msra.mxu0 0.0
        %523 = vmatpush.msra.mxu0 0.0
        %524 = vmatpush.msra.mxu0 0.0
        %525 = vmatpush.msra.mxu0 0.0
        %526 = vmatpush.msra.mxu0 0.0
        %527 = vmatpush.msra.mxu0 %v493
        %528 = vmatpush.msra.mxu0 %v396
        %529 = vmatpush.msra.mxu0 %v394
        %530 = vmatpush.msra.mxu0 %v392
        %531 = vmatmul.f32.gmra.mxu0 %v487
        %v532 = vpop.f32.mrf.mxu0
        %v533 = vadd.f32 %v484, %v532
        %534 = vdwg.mxu0
        %v536 = vsel %vm435, %v388, 0
        %v539 = vsel %vm439, %v415, 0
        %v542 = vsel %vm439, %v416, 0
        %544 = vmatpush.msra.mxu0 0.0
        %545 = vmatpush.msra.mxu0 0.0
        %546 = vmatpush.msra.mxu0 0.0
        %547 = vmatpush.msra.mxu0 0.0
        %548 = vmatpush.msra.mxu0 0.0
        %549 = vmatpush.msra.mxu0 0.0
        %550 = vmatpush.msra.mxu0 0.0
        %551 = vmatpush.msra.mxu0 0.0
        %552 = vmatpush.msra.mxu0 0.0
        %553 = vmatpush.msra.mxu0 0.0
        %554 = vmatpush.msra.mxu0 0.0
        %555 = vmatpush.msra.mxu0 0.0
        %556 = vmatpush.msra.mxu0 %v539
        %557 = vmatpush.msra.mxu0 %v413
        %558 = vmatpush.msra.mxu0 %v411
        %559 = vmatpush.msra.mxu0 %v409
        %560 = vmatmul.f32.gmra.mxu0 %v536
        %v561 = vpop.f32.mrf.mxu0
        %v562 = vadd.f32 0.0, %v561
        %563 = vdwg.mxu0
        %564 = vmatpush.msra.mxu0 0.0
        %565 = vmatpush.msra.mxu0 0.0
        %566 = vmatpush.msra.mxu0 0.0
        %567 = vmatpush.msra.mxu0 0.0
        %568 = vmatpush.msra.mxu0 0.0
        %569 = vmatpush.msra.mxu0 0.0
        %570 = vmatpush.msra.mxu0 0.0
        %571 = vmatpush.msra.mxu0 0.0
        %572 = vmatpush.msra.mxu0 0.0
        %573 = vmatpush.msra.mxu0 0.0
        %574 = vmatpush.msra.mxu0 0.0
        %575 = vmatpush.msra.mxu0 0.0
        %576 = vmatpush.msra.mxu0 %v542
        %577 = vmatpush.msra.mxu0 %v414
        %578 = vmatpush.msra.mxu0 %v412
        %579 = vmatpush.msra.mxu0 %v410
        %580 = vmatmul.f32.gmra.mxu0 %v536
        %v581 = vpop.f32.mrf.mxu0
        %v582 = vadd.f32 0.0, %v581
        %583 = vdwg.mxu0
        %v584 = vadd.f32 %v513, %v562
        %v585 = vadd.f32 %v533, %v582
        %v587 = vsel %vm435, %v390, 0
        %v590 = vsel %vm439, %v424, 0
        %v593 = vsel %vm439, %v425, 0
        %595 = vmatpush.msra.mxu0 0.0
        %596 = vmatpush.msra.mxu0 0.0
        %597 = vmatpush.msra.mxu0 0.0
        %598 = vmatpush.msra.mxu0 0.0
        %599 = vmatpush.msra.mxu0 0.0
        %600 = vmatpush.msra.mxu0 0.0
        %601 = vmatpush.msra.mxu0 0.0
        %602 = vmatpush.msra.mxu0 0.0
        %603 = vmatpush.msra.mxu0 0.0
        %604 = vmatpush.msra.mxu0 0.0
        %605 = vmatpush.msra.mxu0 0.0
        %606 = vmatpush.msra.mxu0 0.0
        %607 = vmatpush.msra.mxu0 %v590
        %608 = vmatpush.msra.mxu0 %v422
        %609 = vmatpush.msra.mxu0 %v420
        %610 = vmatpush.msra.mxu0 %v418
        %611 = vmatmul.f32.gmra.mxu0 %v587
        %v612 = vpop.f32.mrf.mxu0
        %v613 = vadd.f32 0.0, %v612
        %614 = vdwg.mxu0
        %615 = vmatpush.msra.mxu0 0.0
        %616 = vmatpush.msra.mxu0 0.0
        %617 = vmatpush.msra.mxu0 0.0
        %618 = vmatpush.msra.mxu0 0.0
        %619 = vmatpush.msra.mxu0 0.0
        %620 = vmatpush.msra.mxu0 0.0
        %621 = vmatpush.msra.mxu0 0.0
        %622 = vmatpush.msra.mxu0 0.0
        %623 = vmatpush.msra.mxu0 0.0
        %624 = vmatpush.msra.mxu0 0.0
        %625 = vmatpush.msra.mxu0 0.0
        %626 = vmatpush.msra.mxu0 0.0
        %627 = vmatpush.msra.mxu0 %v593
        %628 = vmatpush.msra.mxu0 %v423
        %629 = vmatpush.msra.mxu0 %v421
        %630 = vmatpush.msra.mxu0 %v419
        %631 = vmatmul.f32.gmra.mxu0 %v587
        %v632 = vpop.f32.mrf.mxu0
        %v633 = vadd.f32 0.0, %v632
        %634 = vdwg.mxu0
        %v635 = vadd.f32 %v584, %v613
        %v636 = vadd.f32 %v585, %v633
        %v637 = vrot.slane %v384, 1
        %v638 = vsel %vm435, %v637, 0
        %v641 = vsel %vm439, %v433, 0
        %v644 = vsel %vm439, %v434, 0
        %646 = vmatpush.msra.mxu0 0.0
        %647 = vmatpush.msra.mxu0 0.0
        %648 = vmatpush.msra.mxu0 0.0
        %649 = vmatpush.msra.mxu0 0.0
        %650 = vmatpush.msra.mxu0 0.0
        %651 = vmatpush.msra.mxu0 0.0
        %652 = vmatpush.msra.mxu0 0.0
        %653 = vmatpush.msra.mxu0 0.0
        %654 = vmatpush.msra.mxu0 0.0
        %655 = vmatpush.msra.mxu0 0.0
        %656 = vmatpush.msra.mxu0 0.0
        %657 = vmatpush.msra.mxu0 0.0
        %658 = vmatpush.msra.mxu0 %v641
        %659 = vmatpush.msra.mxu0 %v431
        %660 = vmatpush.msra.mxu0 %v429
        %661 = vmatpush.msra.mxu0 %v427
        %662 = vmatmul.f32.gmra.mxu0 %v638
        %v663 = vpop.f32.mrf.mxu0
        %v664 = vadd.f32 0.0, %v663
        %665 = vdwg.mxu0
        %666 = vmatpush.msra.mxu0 0.0
        %667 = vmatpush.msra.mxu0 0.0
        %668 = vmatpush.msra.mxu0 0.0
        %669 = vmatpush.msra.mxu0 0.0
        %670 = vmatpush.msra.mxu0 0.0
        %671 = vmatpush.msra.mxu0 0.0
        %672 = vmatpush.msra.mxu0 0.0
        %673 = vmatpush.msra.mxu0 0.0
        %674 = vmatpush.msra.mxu0 0.0
        %675 = vmatpush.msra.mxu0 0.0
        %676 = vmatpush.msra.mxu0 0.0
        %677 = vmatpush.msra.mxu0 0.0
        %678 = vmatpush.msra.mxu0 %v644
        %679 = vmatpush.msra.mxu0 %v432
        %680 = vmatpush.msra.mxu0 %v430
        %681 = vmatpush.msra.mxu0 %v428
        %682 = vmatmul.f32.gmra.mxu0 %v638
        %v683 = vpop.f32.mrf.mxu0
        %v684 = vadd.f32 0.0, %v683
        %685 = vdwg.mxu0
        %v686 = vadd.f32 %v635, %v664
        %v687 = vadd.f32 %v636, %v684
        %v688 = vld [vmem:[%s2] sm:$0x3]
        %v690 = vperm.slane %v688, 0
        %v691 = vperm.slane %v688, 1
        %v694 = vadd.f32 %v686, %v690
        %v695 = vadd.f32 %v687, %v691
        %696 = vmatpush.msra.mxu0 0.0
        %697 = vmatpush.msra.mxu0 0.0
        %698 = vmatpush.msra.mxu0 0.0
        %699 = vmatpush.msra.mxu0 0.0
        %700 = vmatpush.msra.mxu0 0.0
        %701 = vmatpush.msra.mxu0 0.0
        %702 = vmatpush.msra.mxu0 0.0
        %703 = vmatpush.msra.mxu0 0.0
        %704 = vmatpush.msra.mxu0 0.0
        %705 = vmatpush.msra.mxu0 0.0
        %706 = vmatpush.msra.mxu0 0.0
        %707 = vmatpush.msra.mxu0 0.0
        %708 = vmatpush.msra.mxu0 %v441
        %709 = vmatpush.msra.mxu0 %v404
        %710 = vmatpush.msra.mxu0 %v402
        %711 = vmatpush.msra.mxu0 %v400
        %712 = vmatmul.f32.gmra.mxu0 %v536
        %v713 = vpop.f32.mrf.mxu0
        %v714 = vadd.f32 0.0, %v713
        %715 = vdwg.mxu0
        %716 = vmatpush.msra.mxu0 0.0
        %717 = vmatpush.msra.mxu0 0.0
        %718 = vmatpush.msra.mxu0 0.0
        %719 = vmatpush.msra.mxu0 0.0
        %720 = vmatpush.msra.mxu0 0.0
        %721 = vmatpush.msra.mxu0 0.0
        %722 = vmatpush.msra.mxu0 0.0
        %723 = vmatpush.msra.mxu0 0.0
        %724 = vmatpush.msra.mxu0 0.0
        %725 = vmatpush.msra.mxu0 0.0
        %726 = vmatpush.msra.mxu0 0.0
        %727 = vmatpush.msra.mxu0 0.0
        %728 = vmatpush.msra.mxu0 %v444
        %729 = vmatpush.msra.mxu0 %v405
        %730 = vmatpush.msra.mxu0 %v403
        %731 = vmatpush.msra.mxu0 %v401
        %732 = vmatmul.f32.gmra.mxu0 %v536
        %v733 = vpop.f32.mrf.mxu0
        %v734 = vadd.f32 0.0, %v733
        %735 = vdwg.mxu0
        %736 = vmatpush.msra.mxu0 0.0
        %737 = vmatpush.msra.mxu0 0.0
        %738 = vmatpush.msra.mxu0 0.0
        %739 = vmatpush.msra.mxu0 0.0
        %740 = vmatpush.msra.mxu0 0.0
        %741 = vmatpush.msra.mxu0 0.0
        %742 = vmatpush.msra.mxu0 0.0
        %743 = vmatpush.msra.mxu0 0.0
        %744 = vmatpush.msra.mxu0 0.0
        %745 = vmatpush.msra.mxu0 0.0
        %746 = vmatpush.msra.mxu0 0.0
        %747 = vmatpush.msra.mxu0 0.0
        %748 = vmatpush.msra.mxu0 %v490
        %749 = vmatpush.msra.mxu0 %v395
        %750 = vmatpush.msra.mxu0 %v393
        %751 = vmatpush.msra.mxu0 %v391
        %752 = vmatmul.f32.gmra.mxu0 %v437
        %v753 = vpop.f32.mrf.mxu0
        %v754 = vadd.f32 %v714, %v753
        %755 = vdwg.mxu0
        %756 = vmatpush.msra.mxu0 0.0
        %757 = vmatpush.msra.mxu0 0.0
        %758 = vmatpush.msra.mxu0 0.0
        %759 = vmatpush.msra.mxu0 0.0
        %760 = vmatpush.msra.mxu0 0.0
        %761 = vmatpush.msra.mxu0 0.0
        %762 = vmatpush.msra.mxu0 0.0
        %763 = vmatpush.msra.mxu0 0.0
        %764 = vmatpush.msra.mxu0 0.0
        %765 = vmatpush.msra.mxu0 0.0
        %766 = vmatpush.msra.mxu0 0.0
        %767 = vmatpush.msra.mxu0 0.0
        %768 = vmatpush.msra.mxu0 %v493
        %769 = vmatpush.msra.mxu0 %v396
        %770 = vmatpush.msra.mxu0 %v394
        %771 = vmatpush.msra.mxu0 %v392
        %772 = vmatmul.f32.gmra.mxu0 %v437
        %v773 = vpop.f32.mrf.mxu0
        %v774 = vadd.f32 %v734, %v773
        %775 = vdwg.mxu0
        %776 = vmatpush.msra.mxu0 0.0
        %777 = vmatpush.msra.mxu0 0.0
        %778 = vmatpush.msra.mxu0 0.0
        %779 = vmatpush.msra.mxu0 0.0
        %780 = vmatpush.msra.mxu0 0.0
        %781 = vmatpush.msra.mxu0 0.0
        %782 = vmatpush.msra.mxu0 0.0
        %783 = vmatpush.msra.mxu0 0.0
        %784 = vmatpush.msra.mxu0 0.0
        %785 = vmatpush.msra.mxu0 0.0
        %786 = vmatpush.msra.mxu0 0.0
        %787 = vmatpush.msra.mxu0 0.0
        %788 = vmatpush.msra.mxu0 %v539
        %789 = vmatpush.msra.mxu0 %v413
        %790 = vmatpush.msra.mxu0 %v411
        %791 = vmatpush.msra.mxu0 %v409
        %792 = vmatmul.f32.gmra.mxu0 %v587
        %v793 = vpop.f32.mrf.mxu0
        %v794 = vadd.f32 0.0, %v793
        %795 = vdwg.mxu0
        %796 = vmatpush.msra.mxu0 0.0
        %797 = vmatpush.msra.mxu0 0.0
        %798 = vmatpush.msra.mxu0 0.0
        %799 = vmatpush.msra.mxu0 0.0
        %800 = vmatpush.msra.mxu0 0.0
        %801 = vmatpush.msra.mxu0 0.0
        %802 = vmatpush.msra.mxu0 0.0
        %803 = vmatpush.msra.mxu0 0.0
        %804 = vmatpush.msra.mxu0 0.0
        %805 = vmatpush.msra.mxu0 0.0
        %806 = vmatpush.msra.mxu0 0.0
        %807 = vmatpush.msra.mxu0 0.0
        %808 = vmatpush.msra.mxu0 %v542
        %809 = vmatpush.msra.mxu0 %v414
        %810 = vmatpush.msra.mxu0 %v412
        %811 = vmatpush.msra.mxu0 %v410
        %812 = vmatmul.f32.gmra.mxu0 %v587
        %v813 = vpop.f32.mrf.mxu0
        %v814 = vadd.f32 0.0, %v813
        %815 = vdwg.mxu0
        %v816 = vadd.f32 %v754, %v794
        %v817 = vadd.f32 %v774, %v814
        %818 = vmatpush.msra.mxu0 0.0
        %819 = vmatpush.msra.mxu0 0.0
        %820 = vmatpush.msra.mxu0 0.0
        %821 = vmatpush.msra.mxu0 0.0
        %822 = vmatpush.msra.mxu0 0.0
        %823 = vmatpush.msra.mxu0 0.0
        %824 = vmatpush.msra.mxu0 0.0
        %825 = vmatpush.msra.mxu0 0.0
        %826 = vmatpush.msra.mxu0 0.0
        %827 = vmatpush.msra.mxu0 0.0
        %828 = vmatpush.msra.mxu0 0.0
        %829 = vmatpush.msra.mxu0 0.0
        %830 = vmatpush.msra.mxu0 %v590
        %831 = vmatpush.msra.mxu0 %v422
        %832 = vmatpush.msra.mxu0 %v420
        %833 = vmatpush.msra.mxu0 %v418
        %834 = vmatmul.f32.gmra.mxu0 %v638
        %v835 = vpop.f32.mrf.mxu0
        %v836 = vadd.f32 0.0, %v835
        %837 = vdwg.mxu0
        %838 = vmatpush.msra.mxu0 0.0
        %839 = vmatpush.msra.mxu0 0.0
        %840 = vmatpush.msra.mxu0 0.0
        %841 = vmatpush.msra.mxu0 0.0
        %842 = vmatpush.msra.mxu0 0.0
        %843 = vmatpush.msra.mxu0 0.0
        %844 = vmatpush.msra.mxu0 0.0
        %845 = vmatpush.msra.mxu0 0.0
        %846 = vmatpush.msra.mxu0 0.0
        %847 = vmatpush.msra.mxu0 0.0
        %848 = vmatpush.msra.mxu0 0.0
        %849 = vmatpush.msra.mxu0 0.0
        %850 = vmatpush.msra.mxu0 %v593
        %851 = vmatpush.msra.mxu0 %v423
        %852 = vmatpush.msra.mxu0 %v421
        %853 = vmatpush.msra.mxu0 %v419
        %854 = vmatmul.f32.gmra.mxu0 %v638
        %v855 = vpop.f32.mrf.mxu0
        %v856 = vadd.f32 0.0, %v855
        %857 = vdwg.mxu0
        %v858 = vadd.f32 %v816, %v836
        %v859 = vadd.f32 %v817, %v856
        %v860 = vrot.slane %v386, 1
        %v861 = vsel %vm435, %v860, 0
        %863 = vmatpush.msra.mxu0 0.0
        %864 = vmatpush.msra.mxu0 0.0
        %865 = vmatpush.msra.mxu0 0.0
        %866 = vmatpush.msra.mxu0 0.0
        %867 = vmatpush.msra.mxu0 0.0
        %868 = vmatpush.msra.mxu0 0.0
        %869 = vmatpush.msra.mxu0 0.0
        %870 = vmatpush.msra.mxu0 0.0
        %871 = vmatpush.msra.mxu0 0.0
        %872 = vmatpush.msra.mxu0 0.0
        %873 = vmatpush.msra.mxu0 0.0
        %874 = vmatpush.msra.mxu0 0.0
        %875 = vmatpush.msra.mxu0 %v641
        %876 = vmatpush.msra.mxu0 %v431
        %877 = vmatpush.msra.mxu0 %v429
        %878 = vmatpush.msra.mxu0 %v427
        %879 = vmatmul.f32.gmra.mxu0 %v861
        %v880 = vpop.f32.mrf.mxu0
        %v881 = vadd.f32 0.0, %v880
        %882 = vdwg.mxu0
        %883 = vmatpush.msra.mxu0 0.0
        %884 = vmatpush.msra.mxu0 0.0
        %885 = vmatpush.msra.mxu0 0.0
        %886 = vmatpush.msra.mxu0 0.0
        %887 = vmatpush.msra.mxu0 0.0
        %888 = vmatpush.msra.mxu0 0.0
        %889 = vmatpush.msra.mxu0 0.0
        %890 = vmatpush.msra.mxu0 0.0
        %891 = vmatpush.msra.mxu0 0.0
        %892 = vmatpush.msra.mxu0 0.0
        %893 = vmatpush.msra.mxu0 0.0
        %894 = vmatpush.msra.mxu0 0.0
        %895 = vmatpush.msra.mxu0 %v644
        %896 = vmatpush.msra.mxu0 %v432
        %897 = vmatpush.msra.mxu0 %v430
        %898 = vmatpush.msra.mxu0 %v428
        %899 = vmatmul.f32.gmra.mxu0 %v861
        %v900 = vpop.f32.mrf.mxu0
        %v901 = vadd.f32 0.0, %v900
        %902 = vdwg.mxu0
        %v903 = vadd.f32 %v858, %v881
        %v904 = vadd.f32 %v859, %v901
        %v905 = vadd.f32 %v903, %v690
        %v906 = vadd.f32 %v904, %v691
        %907 = vmatpush.msra.mxu0 0.0
        %908 = vmatpush.msra.mxu0 0.0
        %909 = vmatpush.msra.mxu0 0.0
        %910 = vmatpush.msra.mxu0 0.0
        %911 = vmatpush.msra.mxu0 0.0
        %912 = vmatpush.msra.mxu0 0.0
        %913 = vmatpush.msra.mxu0 0.0
        %914 = vmatpush.msra.mxu0 0.0
        %915 = vmatpush.msra.mxu0 0.0
        %916 = vmatpush.msra.mxu0 0.0
        %917 = vmatpush.msra.mxu0 0.0
        %918 = vmatpush.msra.mxu0 0.0
        %919 = vmatpush.msra.mxu0 %v441
        %920 = vmatpush.msra.mxu0 %v404
        %921 = vmatpush.msra.mxu0 %v402
        %922 = vmatpush.msra.mxu0 %v400
        %923 = vmatmul.f32.gmra.mxu0 %v587
        %v924 = vpop.f32.mrf.mxu0
        %v925 = vadd.f32 0.0, %v924
        %926 = vdwg.mxu0
        %927 = vmatpush.msra.mxu0 0.0
        %928 = vmatpush.msra.mxu0 0.0
        %929 = vmatpush.msra.mxu0 0.0
        %930 = vmatpush.msra.mxu0 0.0
        %931 = vmatpush.msra.mxu0 0.0
        %932 = vmatpush.msra.mxu0 0.0
        %933 = vmatpush.msra.mxu0 0.0
        %934 = vmatpush.msra.mxu0 0.0
        %935 = vmatpush.msra.mxu0 0.0
        %936 = vmatpush.msra.mxu0 0.0
        %937 = vmatpush.msra.mxu0 0.0
        %938 = vmatpush.msra.mxu0 0.0
        %939 = vmatpush.msra.mxu0 %v444
        %940 = vmatpush.msra.mxu0 %v405
        %941 = vmatpush.msra.mxu0 %v403
        %942 = vmatpush.msra.mxu0 %v401
        %943 = vmatmul.f32.gmra.mxu0 %v587
        %v944 = vpop.f32.mrf.mxu0
        %v945 = vadd.f32 0.0, %v944
        %946 = vdwg.mxu0
        %947 = vmatpush.msra.mxu0 0.0
        %948 = vmatpush.msra.mxu0 0.0
        %949 = vmatpush.msra.mxu0 0.0
        %950 = vmatpush.msra.mxu0 0.0
        %951 = vmatpush.msra.mxu0 0.0
        %952 = vmatpush.msra.mxu0 0.0
        %953 = vmatpush.msra.mxu0 0.0
        %954 = vmatpush.msra.mxu0 0.0
        %955 = vmatpush.msra.mxu0 0.0
        %956 = vmatpush.msra.mxu0 0.0
        %957 = vmatpush.msra.mxu0 0.0
        %958 = vmatpush.msra.mxu0 0.0
        %959 = vmatpush.msra.mxu0 %v490
        %960 = vmatpush.msra.mxu0 %v395
        %961 = vmatpush.msra.mxu0 %v393
        %962 = vmatpush.msra.mxu0 %v391
        %963 = vmatmul.f32.gmra.mxu0 %v536
        %v964 = vpop.f32.mrf.mxu0
        %v965 = vadd.f32 %v925, %v964
        %966 = vdwg.mxu0
        %967 = vmatpush.msra.mxu0 0.0
        %968 = vmatpush.msra.mxu0 0.0
        %969 = vmatpush.msra.mxu0 0.0
        %970 = vmatpush.msra.mxu0 0.0
        %971 = vmatpush.msra.mxu0 0.0
        %972 = vmatpush.msra.mxu0 0.0
        %973 = vmatpush.msra.mxu0 0.0
        %974 = vmatpush.msra.mxu0 0.0
        %975 = vmatpush.msra.mxu0 0.0
        %976 = vmatpush.msra.mxu0 0.0
        %977 = vmatpush.msra.mxu0 0.0
        %978 = vmatpush.msra.mxu0 0.0
        %979 = vmatpush.msra.mxu0 %v493
        %980 = vmatpush.msra.mxu0 %v396
        %981 = vmatpush.msra.mxu0 %v394
        %982 = vmatpush.msra.mxu0 %v392
        %983 = vmatmul.f32.gmra.mxu0 %v536
        %v984 = vpop.f32.mrf.mxu0
        %v985 = vadd.f32 %v945, %v984
        %986 = vdwg.mxu0
        %987 = vmatpush.msra.mxu0 0.0
        %988 = vmatpush.msra.mxu0 0.0
        %989 = vmatpush.msra.mxu0 0.0
        %990 = vmatpush.msra.mxu0 0.0
        %991 = vmatpush.msra.mxu0 0.0
        %992 = vmatpush.msra.mxu0 0.0
        %993 = vmatpush.msra.mxu0 0.0
        %994 = vmatpush.msra.mxu0 0.0
        %995 = vmatpush.msra.mxu0 0.0
        %996 = vmatpush.msra.mxu0 0.0
        %997 = vmatpush.msra.mxu0 0.0
        %998 = vmatpush.msra.mxu0 0.0
        %999 = vmatpush.msra.mxu0 %v539
        %1000 = vmatpush.msra.mxu0 %v413
        %1001 = vmatpush.msra.mxu0 %v411
        %1002 = vmatpush.msra.mxu0 %v409
        %1003 = vmatmul.f32.gmra.mxu0 %v638
        %v1004 = vpop.f32.mrf.mxu0
        %v1005 = vadd.f32 0.0, %v1004
        %1006 = vdwg.mxu0
        %1007 = vmatpush.msra.mxu0 0.0
        %1008 = vmatpush.msra.mxu0 0.0
        %1009 = vmatpush.msra.mxu0 0.0
        %1010 = vmatpush.msra.mxu0 0.0
        %1011 = vmatpush.msra.mxu0 0.0
        %1012 = vmatpush.msra.mxu0 0.0
        %1013 = vmatpush.msra.mxu0 0.0
        %1014 = vmatpush.msra.mxu0 0.0
        %1015 = vmatpush.msra.mxu0 0.0
        %1016 = vmatpush.msra.mxu0 0.0
        %1017 = vmatpush.msra.mxu0 0.0
        %1018 = vmatpush.msra.mxu0 0.0
        %1019 = vmatpush.msra.mxu0 %v542
        %1020 = vmatpush.msra.mxu0 %v414
        %1021 = vmatpush.msra.mxu0 %v412
        %1022 = vmatpush.msra.mxu0 %v410
        %1023 = vmatmul.f32.gmra.mxu0 %v638
        %v1024 = vpop.f32.mrf.mxu0
        %v1025 = vadd.f32 0.0, %v1024
        %1026 = vdwg.mxu0
        %v1027 = vadd.f32 %v965, %v1005
        %v1028 = vadd.f32 %v985, %v1025
        %1029 = vmatpush.msra.mxu0 0.0
        %1030 = vmatpush.msra.mxu0 0.0
        %1031 = vmatpush.msra.mxu0 0.0
        %1032 = vmatpush.msra.mxu0 0.0
        %1033 = vmatpush.msra.mxu0 0.0
        %1034 = vmatpush.msra.mxu0 0.0
        %1035 = vmatpush.msra.mxu0 0.0
        %1036 = vmatpush.msra.mxu0 0.0
        %1037 = vmatpush.msra.mxu0 0.0
        %1038 = vmatpush.msra.mxu0 0.0
        %1039 = vmatpush.msra.mxu0 0.0
        %1040 = vmatpush.msra.mxu0 0.0
        %1041 = vmatpush.msra.mxu0 %v590
        %1042 = vmatpush.msra.mxu0 %v422
        %1043 = vmatpush.msra.mxu0 %v420
        %1044 = vmatpush.msra.mxu0 %v418
        %1045 = vmatmul.f32.gmra.mxu0 %v861
        %v1046 = vpop.f32.mrf.mxu0
        %v1047 = vadd.f32 0.0, %v1046
        %1048 = vdwg.mxu0
        %1049 = vmatpush.msra.mxu0 0.0
        %1050 = vmatpush.msra.mxu0 0.0
        %1051 = vmatpush.msra.mxu0 0.0
        %1052 = vmatpush.msra.mxu0 0.0
        %1053 = vmatpush.msra.mxu0 0.0
        %1054 = vmatpush.msra.mxu0 0.0
        %1055 = vmatpush.msra.mxu0 0.0
        %1056 = vmatpush.msra.mxu0 0.0
        %1057 = vmatpush.msra.mxu0 0.0
        %1058 = vmatpush.msra.mxu0 0.0
        %1059 = vmatpush.msra.mxu0 0.0
        %1060 = vmatpush.msra.mxu0 0.0
        %1061 = vmatpush.msra.mxu0 %v593
        %1062 = vmatpush.msra.mxu0 %v423
        %1063 = vmatpush.msra.mxu0 %v421
        %1064 = vmatpush.msra.mxu0 %v419
        %1065 = vmatmul.f32.gmra.mxu0 %v861
        %v1066 = vpop.f32.mrf.mxu0
        %v1067 = vadd.f32 0.0, %v1066
        %1068 = vdwg.mxu0
        %v1069 = vadd.f32 %v1027, %v1047
        %v1070 = vadd.f32 %v1028, %v1067
        %v1071 = vrot.slane %v388, 1
        %v1072 = vsel %vm435, %v1071, 0
        %1074 = vmatpush.msra.mxu0 0.0
        %1075 = vmatpush.msra.mxu0 0.0
        %1076 = vmatpush.msra.mxu0 0.0
        %1077 = vmatpush.msra.mxu0 0.0
        %1078 = vmatpush.msra.mxu0 0.0
        %1079 = vmatpush.msra.mxu0 0.0
        %1080 = vmatpush.msra.mxu0 0.0
        %1081 = vmatpush.msra.mxu0 0.0
        %1082 = vmatpush.msra.mxu0 0.0
        %1083 = vmatpush.msra.mxu0 0.0
        %1084 = vmatpush.msra.mxu0 0.0
        %1085 = vmatpush.msra.mxu0 0.0
        %1086 = vmatpush.msra.mxu0 %v641
        %1087 = vmatpush.msra.mxu0 %v431
        %1088 = vmatpush.msra.mxu0 %v429
        %1089 = vmatpush.msra.mxu0 %v427
        %1090 = vmatmul.f32.gmra.mxu0 %v1072
        %v1091 = vpop.f32.mrf.mxu0
        %v1092 = vadd.f32 0.0, %v1091
        %1093 = vdwg.mxu0
        %1094 = vmatpush.msra.mxu0 0.0
        %1095 = vmatpush.msra.mxu0 0.0
        %1096 = vmatpush.msra.mxu0 0.0
        %1097 = vmatpush.msra.mxu0 0.0
        %1098 = vmatpush.msra.mxu0 0.0
        %1099 = vmatpush.msra.mxu0 0.0
        %1100 = vmatpush.msra.mxu0 0.0
        %1101 = vmatpush.msra.mxu0 0.0
        %1102 = vmatpush.msra.mxu0 0.0
        %1103 = vmatpush.msra.mxu0 0.0
        %1104 = vmatpush.msra.mxu0 0.0
        %1105 = vmatpush.msra.mxu0 0.0
        %1106 = vmatpush.msra.mxu0 %v644
        %1107 = vmatpush.msra.mxu0 %v432
        %1108 = vmatpush.msra.mxu0 %v430
        %1109 = vmatpush.msra.mxu0 %v428
        %1110 = vmatmul.f32.gmra.mxu0 %v1072
        %v1111 = vpop.f32.mrf.mxu0
        %v1112 = vadd.f32 0.0, %v1111
        %1113 = vdwg.mxu0
        %v1114 = vadd.f32 %v1069, %v1092
        %v1115 = vadd.f32 %v1070, %v1112
        %v1116 = vadd.f32 %v1114, %v690
        %v1117 = vadd.f32 %v1115, %v691
        %1118 = vmatpush.msra.mxu0 0.0
        %1119 = vmatpush.msra.mxu0 0.0
        %1120 = vmatpush.msra.mxu0 0.0
        %1121 = vmatpush.msra.mxu0 0.0
        %1122 = vmatpush.msra.mxu0 0.0
        %1123 = vmatpush.msra.mxu0 0.0
        %1124 = vmatpush.msra.mxu0 0.0
        %1125 = vmatpush.msra.mxu0 0.0
        %1126 = vmatpush.msra.mxu0 0.0
        %1127 = vmatpush.msra.mxu0 0.0
        %1128 = vmatpush.msra.mxu0 0.0
        %1129 = vmatpush.msra.mxu0 0.0
        %1130 = vmatpush.msra.mxu0 %v441
        %1131 = vmatpush.msra.mxu0 %v404
        %1132 = vmatpush.msra.mxu0 %v402
        %1133 = vmatpush.msra.mxu0 %v400
        %1134 = vmatmul.f32.gmra.mxu0 %v638
        %v1135 = vpop.f32.mrf.mxu0
        %v1136 = vadd.f32 0.0, %v1135
        %1137 = vdwg.mxu0
        %1138 = vmatpush.msra.mxu0 0.0
        %1139 = vmatpush.msra.mxu0 0.0
        %1140 = vmatpush.msra.mxu0 0.0
        %1141 = vmatpush.msra.mxu0 0.0
        %1142 = vmatpush.msra.mxu0 0.0
        %1143 = vmatpush.msra.mxu0 0.0
        %1144 = vmatpush.msra.mxu0 0.0
        %1145 = vmatpush.msra.mxu0 0.0
        %1146 = vmatpush.msra.mxu0 0.0
        %1147 = vmatpush.msra.mxu0 0.0
        %1148 = vmatpush.msra.mxu0 0.0
        %1149 = vmatpush.msra.mxu0 0.0
        %1150 = vmatpush.msra.mxu0 %v444
        %1151 = vmatpush.msra.mxu0 %v405
        %1152 = vmatpush.msra.mxu0 %v403
        %1153 = vmatpush.msra.mxu0 %v401
        %1154 = vmatmul.f32.gmra.mxu0 %v638
        %v1155 = vpop.f32.mrf.mxu0
        %v1156 = vadd.f32 0.0, %v1155
        %1157 = vdwg.mxu0
        %1158 = vmatpush.msra.mxu0 0.0
        %1159 = vmatpush.msra.mxu0 0.0
        %1160 = vmatpush.msra.mxu0 0.0
        %1161 = vmatpush.msra.mxu0 0.0
        %1162 = vmatpush.msra.mxu0 0.0
        %1163 = vmatpush.msra.mxu0 0.0
        %1164 = vmatpush.msra.mxu0 0.0
        %1165 = vmatpush.msra.mxu0 0.0
        %1166 = vmatpush.msra.mxu0 0.0
        %1167 = vmatpush.msra.mxu0 0.0
        %1168 = vmatpush.msra.mxu0 0.0
        %1169 = vmatpush.msra.mxu0 0.0
        %1170 = vmatpush.msra.mxu0 %v490
        %1171 = vmatpush.msra.mxu0 %v395
        %1172 = vmatpush.msra.mxu0 %v393
        %1173 = vmatpush.msra.mxu0 %v391
        %1174 = vmatmul.f32.gmra.mxu0 %v587
        %v1175 = vpop.f32.mrf.mxu0
        %v1176 = vadd.f32 %v1136, %v1175
        %1177 = vdwg.mxu0
        %1178 = vmatpush.msra.mxu0 0.0
        %1179 = vmatpush.msra.mxu0 0.0
        %1180 = vmatpush.msra.mxu0 0.0
        %1181 = vmatpush.msra.mxu0 0.0
        %1182 = vmatpush.msra.mxu0 0.0
        %1183 = vmatpush.msra.mxu0 0.0
        %1184 = vmatpush.msra.mxu0 0.0
        %1185 = vmatpush.msra.mxu0 0.0
        %1186 = vmatpush.msra.mxu0 0.0
        %1187 = vmatpush.msra.mxu0 0.0
        %1188 = vmatpush.msra.mxu0 0.0
        %1189 = vmatpush.msra.mxu0 0.0
        %1190 = vmatpush.msra.mxu0 %v493
        %1191 = vmatpush.msra.mxu0 %v396
        %1192 = vmatpush.msra.mxu0 %v394
        %1193 = vmatpush.msra.mxu0 %v392
        %1194 = vmatmul.f32.gmra.mxu0 %v587
        %v1195 = vpop.f32.mrf.mxu0
        %v1196 = vadd.f32 %v1156, %v1195
        %1197 = vdwg.mxu0
        %1198 = vmatpush.msra.mxu0 0.0
        %1199 = vmatpush.msra.mxu0 0.0
        %1200 = vmatpush.msra.mxu0 0.0
        %1201 = vmatpush.msra.mxu0 0.0
        %1202 = vmatpush.msra.mxu0 0.0
        %1203 = vmatpush.msra.mxu0 0.0
        %1204 = vmatpush.msra.mxu0 0.0
        %1205 = vmatpush.msra.mxu0 0.0
        %1206 = vmatpush.msra.mxu0 0.0
        %1207 = vmatpush.msra.mxu0 0.0
        %1208 = vmatpush.msra.mxu0 0.0
        %1209 = vmatpush.msra.mxu0 0.0
        %1210 = vmatpush.msra.mxu0 %v539
        %1211 = vmatpush.msra.mxu0 %v413
        %1212 = vmatpush.msra.mxu0 %v411
        %1213 = vmatpush.msra.mxu0 %v409
        %1214 = vmatmul.f32.gmra.mxu0 %v861
        %v1215 = vpop.f32.mrf.mxu0
        %v1216 = vadd.f32 0.0, %v1215
        %1217 = vdwg.mxu0
        %1218 = vmatpush.msra.mxu0 0.0
        %1219 = vmatpush.msra.mxu0 0.0
        %1220 = vmatpush.msra.mxu0 0.0
        %1221 = vmatpush.msra.mxu0 0.0
        %1222 = vmatpush.msra.mxu0 0.0
        %1223 = vmatpush.msra.mxu0 0.0
        %1224 = vmatpush.msra.mxu0 0.0
        %1225 = vmatpush.msra.mxu0 0.0
        %1226 = vmatpush.msra.mxu0 0.0
        %1227 = vmatpush.msra.mxu0 0.0
        %1228 = vmatpush.msra.mxu0 0.0
        %1229 = vmatpush.msra.mxu0 0.0
        %1230 = vmatpush.msra.mxu0 %v542
        %1231 = vmatpush.msra.mxu0 %v414
        %1232 = vmatpush.msra.mxu0 %v412
        %1233 = vmatpush.msra.mxu0 %v410
        %1234 = vmatmul.f32.gmra.mxu0 %v861
        %v1235 = vpop.f32.mrf.mxu0
        %v1236 = vadd.f32 0.0, %v1235
        %1237 = vdwg.mxu0
        %v1238 = vadd.f32 %v1176, %v1216
        %v1239 = vadd.f32 %v1196, %v1236
        %1240 = vmatpush.msra.mxu0 0.0
        %1241 = vmatpush.msra.mxu0 0.0
        %1242 = vmatpush.msra.mxu0 0.0
        %1243 = vmatpush.msra.mxu0 0.0
        %1244 = vmatpush.msra.mxu0 0.0
        %1245 = vmatpush.msra.mxu0 0.0
        %1246 = vmatpush.msra.mxu0 0.0
        %1247 = vmatpush.msra.mxu0 0.0
        %1248 = vmatpush.msra.mxu0 0.0
        %1249 = vmatpush.msra.mxu0 0.0
        %1250 = vmatpush.msra.mxu0 0.0
        %1251 = vmatpush.msra.mxu0 0.0
        %1252 = vmatpush.msra.mxu0 %v590
        %1253 = vmatpush.msra.mxu0 %v422
        %1254 = vmatpush.msra.mxu0 %v420
        %1255 = vmatpush.msra.mxu0 %v418
        %1256 = vmatmul.f32.gmra.mxu0 %v1072
        %v1257 = vpop.f32.mrf.mxu0
        %v1258 = vadd.f32 0.0, %v1257
        %1259 = vdwg.mxu0
        %1260 = vmatpush.msra.mxu0 0.0
        %1261 = vmatpush.msra.mxu0 0.0
        %1262 = vmatpush.msra.mxu0 0.0
        %1263 = vmatpush.msra.mxu0 0.0
        %1264 = vmatpush.msra.mxu0 0.0
        %1265 = vmatpush.msra.mxu0 0.0
        %1266 = vmatpush.msra.mxu0 0.0
        %1267 = vmatpush.msra.mxu0 0.0
        %1268 = vmatpush.msra.mxu0 0.0
        %1269 = vmatpush.msra.mxu0 0.0
        %1270 = vmatpush.msra.mxu0 0.0
        %1271 = vmatpush.msra.mxu0 0.0
        %1272 = vmatpush.msra.mxu0 %v593
        %1273 = vmatpush.msra.mxu0 %v423
        %1274 = vmatpush.msra.mxu0 %v421
        %1275 = vmatpush.msra.mxu0 %v419
        %1276 = vmatmul.f32.gmra.mxu0 %v1072
        %v1277 = vpop.f32.mrf.mxu0
        %v1278 = vadd.f32 0.0, %v1277
        %1279 = vdwg.mxu0
        %v1280 = vadd.f32 %v1238, %v1258
        %v1281 = vadd.f32 %v1239, %v1278
        %v1282 = vrot.slane %v390, 1
        %v1283 = vsel %vm435, %v1282, 0
        %1285 = vmatpush.msra.mxu0 0.0
        %1286 = vmatpush.msra.mxu0 0.0
        %1287 = vmatpush.msra.mxu0 0.0
        %1288 = vmatpush.msra.mxu0 0.0
        %1289 = vmatpush.msra.mxu0 0.0
        %1290 = vmatpush.msra.mxu0 0.0
        %1291 = vmatpush.msra.mxu0 0.0
        %1292 = vmatpush.msra.mxu0 0.0
        %1293 = vmatpush.msra.mxu0 0.0
        %1294 = vmatpush.msra.mxu0 0.0
        %1295 = vmatpush.msra.mxu0 0.0
        %1296 = vmatpush.msra.mxu0 0.0
        %1297 = vmatpush.msra.mxu0 %v641
        %1298 = vmatpush.msra.mxu0 %v431
        %1299 = vmatpush.msra.mxu0 %v429
        %1300 = vmatpush.msra.mxu0 %v427
        %1301 = vmatmul.f32.gmra.mxu0 %v1283
        %v1302 = vpop.f32.mrf.mxu0
        %v1303 = vadd.f32 0.0, %v1302
        %1304 = vdwg.mxu0
        %1305 = vmatpush.msra.mxu0 0.0
        %1306 = vmatpush.msra.mxu0 0.0
        %1307 = vmatpush.msra.mxu0 0.0
        %1308 = vmatpush.msra.mxu0 0.0
        %1309 = vmatpush.msra.mxu0 0.0
        %1310 = vmatpush.msra.mxu0 0.0
        %1311 = vmatpush.msra.mxu0 0.0
        %1312 = vmatpush.msra.mxu0 0.0
        %1313 = vmatpush.msra.mxu0 0.0
        %1314 = vmatpush.msra.mxu0 0.0
        %1315 = vmatpush.msra.mxu0 0.0
        %1316 = vmatpush.msra.mxu0 0.0
        %1317 = vmatpush.msra.mxu0 %v644
        %1318 = vmatpush.msra.mxu0 %v432
        %1319 = vmatpush.msra.mxu0 %v430
        %1320 = vmatpush.msra.mxu0 %v428
        %1321 = vmatmul.f32.gmra.mxu0 %v1283
        %v1322 = vpop.f32.mrf.mxu0
        %v1323 = vadd.f32 0.0, %v1322
        %1324 = vdwg.mxu0
        %v1325 = vadd.f32 %v1280, %v1303
        %v1326 = vadd.f32 %v1281, %v1323
        %v1327 = vadd.f32 %v1325, %v690
        %v1328 = vadd.f32 %v1326, %v691
        %v1329 = vld [vmem:[%s3] sm:$0xff]
        %v1330 = vld [vmem:[%s3 + $0x8] sm:$0xff]
        %v1331 = vld [vmem:[%s3 + $0x10] sm:$0xff]
        %v1332 = vld [vmem:[%s3 + $0x18] sm:$0xff]
        %v1333 = vld [vmem:[%s3 + $0x20] sm:$0xff]
        %v1334 = vld [vmem:[%s3 + $0x28] sm:$0xff]
        %v1335 = vld [vmem:[%s3 + $0x30] sm:$0xff]
        %v1336 = vld [vmem:[%s3 + $0x38] sm:$0xff]
        %v1337 = vld [vmem:[%s3 + $0x40] sm:$0xff]
        %v1338 = vld [vmem:[%s3 + $0x48] sm:$0xff]
        %v1339 = vld [vmem:[%s3 + $0x50] sm:$0xff]
        %v1340 = vld [vmem:[%s3 + $0x58] sm:$0xff]
        %v1341 = vld [vmem:[%s3 + $0x60] sm:$0xff]
        %v1342 = vld [vmem:[%s3 + $0x68] sm:$0xff]
        %v1343 = vld [vmem:[%s3 + $0x70] sm:$0xff]
        %v1344 = vld [vmem:[%s3 + $0x78] sm:$0xff]
        %v1345 = vld [vmem:[%s3 + $0x80] sm:$0xff]
        %v1346 = vld [vmem:[%s3 + $0x88] sm:$0xff]
        %v1347 = vld [vmem:[%s3 + $0x90] sm:$0xff]
        %v1348 = vld [vmem:[%s3 + $0x98] sm:$0xff]
        %v1349 = vld [vmem:[%s3 + $0xa0] sm:$0xff]
        %v1350 = vld [vmem:[%s3 + $0xa8] sm:$0xff]
        %v1351 = vld [vmem:[%s3 + $0xb0] sm:$0xff]
        %v1352 = vld [vmem:[%s3 + $0xb8] sm:$0xff]
        %v1353 = vld [vmem:[%s3 + $0xc0] sm:$0xff]
        %v1354 = vld [vmem:[%s3 + $0xc8] sm:$0xff]
        %v1355 = vld [vmem:[%s3 + $0xd0] sm:$0xff]
        %v1356 = vld [vmem:[%s3 + $0xd8] sm:$0xff]
        %v1357 = vld [vmem:[%s3 + $0xe0] sm:$0xff]
        %v1358 = vld [vmem:[%s3 + $0xe8] sm:$0xff]
        %s1359 = scalar_lea.vmem %s3, 240
        %v1360 = vld [vmem:[%s1359] sm:$0xff]
        %v1361 = vld [vmem:[%s1359 + $0x8] sm:$0xff]
        %v1362 = vld [vmem:[%s1359 + $0x10] sm:$0xff]
        %v1363 = vld [vmem:[%s1359 + $0x18] sm:$0xff]
        %v1364 = vld [vmem:[%s1359 + $0x20] sm:$0xff]
        %v1365 = vld [vmem:[%s1359 + $0x28] sm:$0xff]
        %v1366 = vld [vmem:[%s1359 + $0x30] sm:$0xff]
        %v1367 = vld [vmem:[%s1359 + $0x38] sm:$0xff]
        %v1368 = vld [vmem:[%s1359 + $0x40] sm:$0xff]
        %v1369 = vld [vmem:[%s1359 + $0x48] sm:$0xff]
        %v1370 = vld [vmem:[%s1359 + $0x50] sm:$0xff]
        %v1371 = vld [vmem:[%s1359 + $0x58] sm:$0xff]
        %v1372 = vld [vmem:[%s1359 + $0x60] sm:$0xff]
        %v1373 = vld [vmem:[%s1359 + $0x68] sm:$0xff]
        %v1374 = vld [vmem:[%s1359 + $0x70] sm:$0xff]
        %v1375 = vld [vmem:[%s1359 + $0x78] sm:$0xff]
        %v1376 = vld [vmem:[%s1359 + $0x80] sm:$0xff]
        %v1377 = vld [vmem:[%s1359 + $0x88] sm:$0xff]
        %v1378 = vld [vmem:[%s1359 + $0x90] sm:$0xff]
        %v1379 = vld [vmem:[%s1359 + $0x98] sm:$0xff]
        %v1380 = vld [vmem:[%s1359 + $0xa0] sm:$0xff]
        %v1381 = vld [vmem:[%s1359 + $0xa8] sm:$0xff]
        %v1382 = vld [vmem:[%s1359 + $0xb0] sm:$0xff]
        %v1383 = vld [vmem:[%s1359 + $0xb8] sm:$0xff]
        %v1384 = vld [vmem:[%s1359 + $0xc0] sm:$0xff]
        %v1385 = vld [vmem:[%s1359 + $0xc8] sm:$0xff]
        %v1386 = vld [vmem:[%s1359 + $0xd0] sm:$0xff]
        %v1387 = vld [vmem:[%s1359 + $0xd8] sm:$0xff]
        %v1388 = vld [vmem:[%s1359 + $0xe0] sm:$0xff]
        %v1389 = vld [vmem:[%s1359 + $0xe8] sm:$0xff]
        %vm1390 = vcmask 916480
        %v1392 = vsel %vm1390, %v695, 0
        %1394 = vmatpush.msra.mxu0 %v1344
        %1395 = vmatpush.msra.mxu0 %v1343
        %1396 = vmatpush.msra.mxu0 %v1342
        %1397 = vmatpush.msra.mxu0 %v1341
        %1398 = vmatpush.msra.mxu0 %v1340
        %1399 = vmatpush.msra.mxu0 %v1339
        %1400 = vmatpush.msra.mxu0 %v1338
        %1401 = vmatpush.msra.mxu0 %v1337
        %1402 = vmatpush.msra.mxu0 %v1336
        %1403 = vmatpush.msra.mxu0 %v1335
        %1404 = vmatpush.msra.mxu0 %v1334
        %1405 = vmatpush.msra.mxu0 %v1333
        %1406 = vmatpush.msra.mxu0 %v1332
        %1407 = vmatpush.msra.mxu0 %v1331
        %1408 = vmatpush.msra.mxu0 %v1330
        %1409 = vmatpush.msra.mxu0 %v1329
        %1410 = vmatmul.f32.gmra.mxu0 %v694
        %v1411 = vpop.f32.mrf.mxu0
        %v1412 = vadd.f32 0.0, %v1411
        %1413 = vdwg.mxu0
        %1414 = vmatpush.msra.mxu0 0.0
        %1415 = vmatpush.msra.mxu0 0.0
        %1416 = vmatpush.msra.mxu0 %v1358
        %1417 = vmatpush.msra.mxu0 %v1357
        %1418 = vmatpush.msra.mxu0 %v1356
        %1419 = vmatpush.msra.mxu0 %v1355
        %1420 = vmatpush.msra.mxu0 %v1354
        %1421 = vmatpush.msra.mxu0 %v1353
        %1422 = vmatpush.msra.mxu0 %v1352
        %1423 = vmatpush.msra.mxu0 %v1351
        %1424 = vmatpush.msra.mxu0 %v1350
        %1425 = vmatpush.msra.mxu0 %v1349
        %1426 = vmatpush.msra.mxu0 %v1348
        %1427 = vmatpush.msra.mxu0 %v1347
        %1428 = vmatpush.msra.mxu0 %v1346
        %1429 = vmatpush.msra.mxu0 %v1345
        %1430 = vmatmul.f32.gmra.mxu0 %v1392
        %v1431 = vpop.f32.mrf.mxu0
        %v1432 = vadd.f32 %v1412, %v1431
        %1433 = vdwg.mxu0
        %1434 = vmatpush.msra.mxu0 %v1375
        %1435 = vmatpush.msra.mxu0 %v1374
        %1436 = vmatpush.msra.mxu0 %v1373
        %1437 = vmatpush.msra.mxu0 %v1372
        %1438 = vmatpush.msra.mxu0 %v1371
        %1439 = vmatpush.msra.mxu0 %v1370
        %1440 = vmatpush.msra.mxu0 %v1369
        %1441 = vmatpush.msra.mxu0 %v1368
        %1442 = vmatpush.msra.mxu0 %v1367
        %1443 = vmatpush.msra.mxu0 %v1366
        %1444 = vmatpush.msra.mxu0 %v1365
        %1445 = vmatpush.msra.mxu0 %v1364
        %1446 = vmatpush.msra.mxu0 %v1363
        %1447 = vmatpush.msra.mxu0 %v1362
        %1448 = vmatpush.msra.mxu0 %v1361
        %1449 = vmatpush.msra.mxu0 %v1360
        %1450 = vmatmul.f32.gmra.mxu0 %v694
        %v1451 = vpop.f32.mrf.mxu0
        %v1452 = vadd.f32 0.0, %v1451
        %1453 = vdwg.mxu0
        %1454 = vmatpush.msra.mxu0 0.0
        %1455 = vmatpush.msra.mxu0 0.0
        %1456 = vmatpush.msra.mxu0 %v1389
        %1457 = vmatpush.msra.mxu0 %v1388
        %1458 = vmatpush.msra.mxu0 %v1387
        %1459 = vmatpush.msra.mxu0 %v1386
        %1460 = vmatpush.msra.mxu0 %v1385
        %1461 = vmatpush.msra.mxu0 %v1384
        %1462 = vmatpush.msra.mxu0 %v1383
        %1463 = vmatpush.msra.mxu0 %v1382
        %1464 = vmatpush.msra.mxu0 %v1381
        %1465 = vmatpush.msra.mxu0 %v1380
        %1466 = vmatpush.msra.mxu0 %v1379
        %1467 = vmatpush.msra.mxu0 %v1378
        %1468 = vmatpush.msra.mxu0 %v1377
        %1469 = vmatpush.msra.mxu0 %v1376
        %1470 = vmatmul.f32.gmra.mxu0 %v1392
        %v1471 = vpop.f32.mrf.mxu0
        %v1472 = vadd.f32 %v1452, %v1471
        %1473 = vdwg.mxu0
        %v1474 = vmax.f32 %v1432, %v1472
        %v1476 = vsel %vm1390, %v906, 0
        %1478 = vmatpush.msra.mxu0 %v1344
        %1479 = vmatpush.msra.mxu0 %v1343
        %1480 = vmatpush.msra.mxu0 %v1342
        %1481 = vmatpush.msra.mxu0 %v1341
        %1482 = vmatpush.msra.mxu0 %v1340
        %1483 = vmatpush.msra.mxu0 %v1339
        %1484 = vmatpush.msra.mxu0 %v1338
        %1485 = vmatpush.msra.mxu0 %v1337
        %1486 = vmatpush.msra.mxu0 %v1336
        %1487 = vmatpush.msra.mxu0 %v1335
        %1488 = vmatpush.msra.mxu0 %v1334
        %1489 = vmatpush.msra.mxu0 %v1333
        %1490 = vmatpush.msra.mxu0 %v1332
        %1491 = vmatpush.msra.mxu0 %v1331
        %1492 = vmatpush.msra.mxu0 %v1330
        %1493 = vmatpush.msra.mxu0 %v1329
        %1494 = vmatmul.f32.gmra.mxu0 %v905
        %v1495 = vpop.f32.mrf.mxu0
        %v1496 = vadd.f32 0.0, %v1495
        %1497 = vdwg.mxu0
        %1498 = vmatpush.msra.mxu0 0.0
        %1499 = vmatpush.msra.mxu0 0.0
        %1500 = vmatpush.msra.mxu0 %v1358
        %1501 = vmatpush.msra.mxu0 %v1357
        %1502 = vmatpush.msra.mxu0 %v1356
        %1503 = vmatpush.msra.mxu0 %v1355
        %1504 = vmatpush.msra.mxu0 %v1354
        %1505 = vmatpush.msra.mxu0 %v1353
        %1506 = vmatpush.msra.mxu0 %v1352
        %1507 = vmatpush.msra.mxu0 %v1351
        %1508 = vmatpush.msra.mxu0 %v1350
        %1509 = vmatpush.msra.mxu0 %v1349
        %1510 = vmatpush.msra.mxu0 %v1348
        %1511 = vmatpush.msra.mxu0 %v1347
        %1512 = vmatpush.msra.mxu0 %v1346
        %1513 = vmatpush.msra.mxu0 %v1345
        %1514 = vmatmul.f32.gmra.mxu0 %v1476
        %v1515 = vpop.f32.mrf.mxu0
        %v1516 = vadd.f32 %v1496, %v1515
        %1517 = vdwg.mxu0
        %1518 = vmatpush.msra.mxu0 %v1375
        %1519 = vmatpush.msra.mxu0 %v1374
        %1520 = vmatpush.msra.mxu0 %v1373
        %1521 = vmatpush.msra.mxu0 %v1372
        %1522 = vmatpush.msra.mxu0 %v1371
        %1523 = vmatpush.msra.mxu0 %v1370
        %1524 = vmatpush.msra.mxu0 %v1369
        %1525 = vmatpush.msra.mxu0 %v1368
        %1526 = vmatpush.msra.mxu0 %v1367
        %1527 = vmatpush.msra.mxu0 %v1366
        %1528 = vmatpush.msra.mxu0 %v1365
        %1529 = vmatpush.msra.mxu0 %v1364
        %1530 = vmatpush.msra.mxu0 %v1363
        %1531 = vmatpush.msra.mxu0 %v1362
        %1532 = vmatpush.msra.mxu0 %v1361
        %1533 = vmatpush.msra.mxu0 %v1360
        %1534 = vmatmul.f32.gmra.mxu0 %v905
        %v1535 = vpop.f32.mrf.mxu0
        %v1536 = vadd.f32 0.0, %v1535
        %1537 = vdwg.mxu0
        %1538 = vmatpush.msra.mxu0 0.0
        %1539 = vmatpush.msra.mxu0 0.0
        %1540 = vmatpush.msra.mxu0 %v1389
        %1541 = vmatpush.msra.mxu0 %v1388
        %1542 = vmatpush.msra.mxu0 %v1387
        %1543 = vmatpush.msra.mxu0 %v1386
        %1544 = vmatpush.msra.mxu0 %v1385
        %1545 = vmatpush.msra.mxu0 %v1384
        %1546 = vmatpush.msra.mxu0 %v1383
        %1547 = vmatpush.msra.mxu0 %v1382
        %1548 = vmatpush.msra.mxu0 %v1381
        %1549 = vmatpush.msra.mxu0 %v1380
        %1550 = vmatpush.msra.mxu0 %v1379
        %1551 = vmatpush.msra.mxu0 %v1378
        %1552 = vmatpush.msra.mxu0 %v1377
        %1553 = vmatpush.msra.mxu0 %v1376
        %1554 = vmatmul.f32.gmra.mxu0 %v1476
        %v1555 = vpop.f32.mrf.mxu0
        %v1556 = vadd.f32 %v1536, %v1555
        %1557 = vdwg.mxu0
        %v1558 = vmax.f32 %v1516, %v1556
        %v1560 = vsel %vm1390, %v1117, 0
        %1562 = vmatpush.msra.mxu0 %v1344
        %1563 = vmatpush.msra.mxu0 %v1343
        %1564 = vmatpush.msra.mxu0 %v1342
        %1565 = vmatpush.msra.mxu0 %v1341
        %1566 = vmatpush.msra.mxu0 %v1340
        %1567 = vmatpush.msra.mxu0 %v1339
        %1568 = vmatpush.msra.mxu0 %v1338
        %1569 = vmatpush.msra.mxu0 %v1337
        %1570 = vmatpush.msra.mxu0 %v1336
        %1571 = vmatpush.msra.mxu0 %v1335
        %1572 = vmatpush.msra.mxu0 %v1334
        %1573 = vmatpush.msra.mxu0 %v1333
        %1574 = vmatpush.msra.mxu0 %v1332
        %1575 = vmatpush.msra.mxu0 %v1331
        %1576 = vmatpush.msra.mxu0 %v1330
        %1577 = vmatpush.msra.mxu0 %v1329
        %1578 = vmatmul.f32.gmra.mxu0 %v1116
        %v1579 = vpop.f32.mrf.mxu0
        %v1580 = vadd.f32 0.0, %v1579
        %1581 = vdwg.mxu0
        %1582 = vmatpush.msra.mxu0 0.0
        %1583 = vmatpush.msra.mxu0 0.0
        %1584 = vmatpush.msra.mxu0 %v1358
        %1585 = vmatpush.msra.mxu0 %v1357
        %1586 = vmatpush.msra.mxu0 %v1356
        %1587 = vmatpush.msra.mxu0 %v1355
        %1588 = vmatpush.msra.mxu0 %v1354
        %1589 = vmatpush.msra.mxu0 %v1353
        %1590 = vmatpush.msra.mxu0 %v1352
        %1591 = vmatpush.msra.mxu0 %v1351
        %1592 = vmatpush.msra.mxu0 %v1350
        %1593 = vmatpush.msra.mxu0 %v1349
        %1594 = vmatpush.msra.mxu0 %v1348
        %1595 = vmatpush.msra.mxu0 %v1347
        %1596 = vmatpush.msra.mxu0 %v1346
        %1597 = vmatpush.msra.mxu0 %v1345
        %1598 = vmatmul.f32.gmra.mxu0 %v1560
        %v1599 = vpop.f32.mrf.mxu0
        %v1600 = vadd.f32 %v1580, %v1599
        %1601 = vdwg.mxu0
        %1602 = vmatpush.msra.mxu0 %v1375
        %1603 = vmatpush.msra.mxu0 %v1374
        %1604 = vmatpush.msra.mxu0 %v1373
        %1605 = vmatpush.msra.mxu0 %v1372
        %1606 = vmatpush.msra.mxu0 %v1371
        %1607 = vmatpush.msra.mxu0 %v1370
        %1608 = vmatpush.msra.mxu0 %v1369
        %1609 = vmatpush.msra.mxu0 %v1368
        %1610 = vmatpush.msra.mxu0 %v1367
        %1611 = vmatpush.msra.mxu0 %v1366
        %1612 = vmatpush.msra.mxu0 %v1365
        %1613 = vmatpush.msra.mxu0 %v1364
        %1614 = vmatpush.msra.mxu0 %v1363
        %1615 = vmatpush.msra.mxu0 %v1362
        %1616 = vmatpush.msra.mxu0 %v1361
        %1617 = vmatpush.msra.mxu0 %v1360
        %1618 = vmatmul.f32.gmra.mxu0 %v1116
        %v1619 = vpop.f32.mrf.mxu0
        %v1620 = vadd.f32 0.0, %v1619
        %1621 = vdwg.mxu0
        %1622 = vmatpush.msra.mxu0 0.0
        %1623 = vmatpush.msra.mxu0 0.0
        %1624 = vmatpush.msra.mxu0 %v1389
        %1625 = vmatpush.msra.mxu0 %v1388
        %1626 = vmatpush.msra.mxu0 %v1387
        %1627 = vmatpush.msra.mxu0 %v1386
        %1628 = vmatpush.msra.mxu0 %v1385
        %1629 = vmatpush.msra.mxu0 %v1384
        %1630 = vmatpush.msra.mxu0 %v1383
        %1631 = vmatpush.msra.mxu0 %v1382
        %1632 = vmatpush.msra.mxu0 %v1381
        %1633 = vmatpush.msra.mxu0 %v1380
        %1634 = vmatpush.msra.mxu0 %v1379
        %1635 = vmatpush.msra.mxu0 %v1378
        %1636 = vmatpush.msra.mxu0 %v1377
        %1637 = vmatpush.msra.mxu0 %v1376
        %1638 = vmatmul.f32.gmra.mxu0 %v1560
        %v1639 = vpop.f32.mrf.mxu0
        %v1640 = vadd.f32 %v1620, %v1639
        %1641 = vdwg.mxu0
        %v1642 = vmax.f32 %v1600, %v1640
        %v1644 = vsel %vm1390, %v1328, 0
        %1646 = vmatpush.msra.mxu0 %v1344
        %1647 = vmatpush.msra.mxu0 %v1343
        %1648 = vmatpush.msra.mxu0 %v1342
        %1649 = vmatpush.msra.mxu0 %v1341
        %1650 = vmatpush.msra.mxu0 %v1340
        %1651 = vmatpush.msra.mxu0 %v1339
        %1652 = vmatpush.msra.mxu0 %v1338
        %1653 = vmatpush.msra.mxu0 %v1337
        %1654 = vmatpush.msra.mxu0 %v1336
        %1655 = vmatpush.msra.mxu0 %v1335
        %1656 = vmatpush.msra.mxu0 %v1334
        %1657 = vmatpush.msra.mxu0 %v1333
        %1658 = vmatpush.msra.mxu0 %v1332
        %1659 = vmatpush.msra.mxu0 %v1331
        %1660 = vmatpush.msra.mxu0 %v1330
        %1661 = vmatpush.msra.mxu0 %v1329
        %1662 = vmatmul.f32.gmra.mxu0 %v1327
        %v1663 = vpop.f32.mrf.mxu0
        %v1664 = vadd.f32 0.0, %v1663
        %1665 = vdwg.mxu0
        %1666 = vmatpush.msra.mxu0 0.0
        %1667 = vmatpush.msra.mxu0 0.0
        %1668 = vmatpush.msra.mxu0 %v1358
        %1669 = vmatpush.msra.mxu0 %v1357
        %1670 = vmatpush.msra.mxu0 %v1356
        %1671 = vmatpush.msra.mxu0 %v1355
        %1672 = vmatpush.msra.mxu0 %v1354
        %1673 = vmatpush.msra.mxu0 %v1353
        %1674 = vmatpush.msra.mxu0 %v1352
        %1675 = vmatpush.msra.mxu0 %v1351
        %1676 = vmatpush.msra.mxu0 %v1350
        %1677 = vmatpush.msra.mxu0 %v1349
        %1678 = vmatpush.msra.mxu0 %v1348
        %1679 = vmatpush.msra.mxu0 %v1347
        %1680 = vmatpush.msra.mxu0 %v1346
        %1681 = vmatpush.msra.mxu0 %v1345
        %1682 = vmatmul.f32.gmra.mxu0 %v1644
        %v1683 = vpop.f32.mrf.mxu0
        %v1684 = vadd.f32 %v1664, %v1683
        %1685 = vdwg.mxu0
        %1686 = vmatpush.msra.mxu0 %v1375
        %1687 = vmatpush.msra.mxu0 %v1374
        %1688 = vmatpush.msra.mxu0 %v1373
        %1689 = vmatpush.msra.mxu0 %v1372
        %1690 = vmatpush.msra.mxu0 %v1371
        %1691 = vmatpush.msra.mxu0 %v1370
        %1692 = vmatpush.msra.mxu0 %v1369
        %1693 = vmatpush.msra.mxu0 %v1368
        %1694 = vmatpush.msra.mxu0 %v1367
        %1695 = vmatpush.msra.mxu0 %v1366
        %1696 = vmatpush.msra.mxu0 %v1365
        %1697 = vmatpush.msra.mxu0 %v1364
        %1698 = vmatpush.msra.mxu0 %v1363
        %1699 = vmatpush.msra.mxu0 %v1362
        %1700 = vmatpush.msra.mxu0 %v1361
        %1701 = vmatpush.msra.mxu0 %v1360
        %1702 = vmatmul.f32.gmra.mxu0 %v1327
        %v1703 = vpop.f32.mrf.mxu0
        %v1704 = vadd.f32 0.0, %v1703
        %1705 = vdwg.mxu0
        %1706 = vmatpush.msra.mxu0 0.0
        %1707 = vmatpush.msra.mxu0 0.0
        %1708 = vmatpush.msra.mxu0 %v1389
        %1709 = vmatpush.msra.mxu0 %v1388
        %1710 = vmatpush.msra.mxu0 %v1387
        %1711 = vmatpush.msra.mxu0 %v1386
        %1712 = vmatpush.msra.mxu0 %v1385
        %1713 = vmatpush.msra.mxu0 %v1384
        %1714 = vmatpush.msra.mxu0 %v1383
        %1715 = vmatpush.msra.mxu0 %v1382
        %1716 = vmatpush.msra.mxu0 %v1381
        %1717 = vmatpush.msra.mxu0 %v1380
        %1718 = vmatpush.msra.mxu0 %v1379
        %1719 = vmatpush.msra.mxu0 %v1378
        %1720 = vmatpush.msra.mxu0 %v1377
        %1721 = vmatpush.msra.mxu0 %v1376
        %1722 = vmatmul.f32.gmra.mxu0 %v1644
        %v1723 = vpop.f32.mrf.mxu0
        %v1724 = vadd.f32 %v1704, %v1723
        %1725 = vdwg.mxu0
        %v1726 = vmax.f32 %v1684, %v1724
        %v1727 = vmax.f32 %v1474, %v1558
        %v1728 = vmax.f32 %v1727, 0.0
        %v1729 = vmax.f32 %v1642, %v1726
        %v1730 = vmax.f32 %v1729, 0.0
        %v1731 = vld [vmem:[%s4] sm:$0xff]
        %v1732 = vld [vmem:[%s4 + $0x8] sm:$0xff]
        %v1733 = vld [vmem:[%s4 + $0x10] sm:$0xff]
        %v1734 = vld [vmem:[%s4 + $0x18] sm:$0xff]
        %v1735 = vld [vmem:[%s4 + $0x20] sm:$0xff]
        %v1736 = vld [vmem:[%s4 + $0x28] sm:$0xff]
        %v1737 = vld [vmem:[%s4 + $0x30] sm:$0xff]
        %v1738 = vld [vmem:[%s4 + $0x38] sm:$0xff]
        %v1739 = vld [vmem:[%s4 + $0x40] sm:$0xff]
        %v1740 = vld [vmem:[%s4 + $0x48] sm:$0xff]
        %v1741 = vld [vmem:[%s4 + $0x50] sm:$0xff]
        %v1742 = vld [vmem:[%s4 + $0x58] sm:$0xff]
        %v1743 = vld [vmem:[%s4 + $0x60] sm:$0xff]
        %v1744 = vld [vmem:[%s4 + $0x68] sm:$0xff]
        %v1745 = vld [vmem:[%s4 + $0x70] sm:$0xff]
        %v1746 = vld [vmem:[%s4 + $0x78] sm:$0xff]
        %v1747 = vld [vmem:[%s4 + $0x80] sm:$0xff]
        %v1748 = vld [vmem:[%s4 + $0x88] sm:$0xff]
        %v1749 = vld [vmem:[%s4 + $0x90] sm:$0xff]
        %v1750 = vld [vmem:[%s4 + $0x98] sm:$0xff]
        %v1751 = vld [vmem:[%s4 + $0xa0] sm:$0xff]
        %v1752 = vld [vmem:[%s4 + $0xa8] sm:$0xff]
        %v1753 = vld [vmem:[%s4 + $0xb0] sm:$0xff]
        %v1754 = vld [vmem:[%s4 + $0xb8] sm:$0xff]
        %v1755 = vld [vmem:[%s4 + $0xc0] sm:$0xff]
        %v1756 = vld [vmem:[%s4 + $0xc8] sm:$0xff]
        %v1757 = vld [vmem:[%s4 + $0xd0] sm:$0xff]
        %v1758 = vld [vmem:[%s4 + $0xd8] sm:$0xff]
        %v1759 = vld [vmem:[%s4 + $0xe0] sm:$0xff]
        %v1760 = vld [vmem:[%s4 + $0xe8] sm:$0xff]
        %s1761 = scalar_lea.vmem %s4, 240
        %v1762 = vld [vmem:[%s1761] sm:$0xff]
        %v1763 = vld [vmem:[%s1761 + $0x8] sm:$0xff]
        %v1764 = vld [vmem:[%s1761 + $0x10] sm:$0xff]
        %v1765 = vld [vmem:[%s1761 + $0x18] sm:$0xff]
        %v1766 = vld [vmem:[%s1761 + $0x20] sm:$0xff]
        %v1767 = vld [vmem:[%s1761 + $0x28] sm:$0xff]
        %v1768 = vld [vmem:[%s1761 + $0x30] sm:$0xff]
        %v1769 = vld [vmem:[%s1761 + $0x38] sm:$0xff]
        %v1770 = vld [vmem:[%s1761 + $0x40] sm:$0xff]
        %v1771 = vld [vmem:[%s1761 + $0x48] sm:$0xff]
        %v1772 = vld [vmem:[%s1761 + $0x50] sm:$0xff]
        %v1773 = vld [vmem:[%s1761 + $0x58] sm:$0xff]
        %v1774 = vld [vmem:[%s1761 + $0x60] sm:$0xff]
        %v1775 = vld [vmem:[%s1761 + $0x68] sm:$0xff]
        %v1776 = vld [vmem:[%s1761 + $0x70] sm:$0xff]
        %v1777 = vld [vmem:[%s1761 + $0x78] sm:$0xff]
        %v1778 = vld [vmem:[%s1761 + $0x80] sm:$0xff]
        %v1779 = vld [vmem:[%s1761 + $0x88] sm:$0xff]
        %v1780 = vld [vmem:[%s1761 + $0x90] sm:$0xff]
        %v1781 = vld [vmem:[%s1761 + $0x98] sm:$0xff]
        %v1782 = vld [vmem:[%s1761 + $0xa0] sm:$0xff]
        %v1783 = vld [vmem:[%s1761 + $0xa8] sm:$0xff]
        %v1784 = vld [vmem:[%s1761 + $0xb0] sm:$0xff]
        %v1785 = vld [vmem:[%s1761 + $0xb8] sm:$0xff]
        %v1786 = vld [vmem:[%s1761 + $0xc0] sm:$0xff]
        %v1787 = vld [vmem:[%s1761 + $0xc8] sm:$0xff]
        %v1788 = vld [vmem:[%s1761 + $0xd0] sm:$0xff]
        %v1789 = vld [vmem:[%s1761 + $0xd8] sm:$0xff]
        %v1790 = vld [vmem:[%s1761 + $0xe0] sm:$0xff]
        %v1791 = vld [vmem:[%s1761 + $0xe8] sm:$0xff]
        %s1792 = scalar_lea.vmem %s4, 480
        %v1793 = vld [vmem:[%s1792] sm:$0xff]
        %v1794 = vld [vmem:[%s1792 + $0x8] sm:$0xff]
        %v1795 = vld [vmem:[%s1792 + $0x10] sm:$0xff]
        %v1796 = vld [vmem:[%s1792 + $0x18] sm:$0xff]
        %v1797 = vld [vmem:[%s1792 + $0x20] sm:$0xff]
        %v1798 = vld [vmem:[%s1792 + $0x28] sm:$0xff]
        %v1799 = vld [vmem:[%s1792 + $0x30] sm:$0xff]
        %v1800 = vld [vmem:[%s1792 + $0x38] sm:$0xff]
        %v1801 = vld [vmem:[%s1792 + $0x40] sm:$0xff]
        %v1802 = vld [vmem:[%s1792 + $0x48] sm:$0xff]
        %v1803 = vld [vmem:[%s1792 + $0x50] sm:$0xff]
        %v1804 = vld [vmem:[%s1792 + $0x58] sm:$0xff]
        %v1805 = vld [vmem:[%s1792 + $0x60] sm:$0xff]
        %v1806 = vld [vmem:[%s1792 + $0x68] sm:$0xff]
        %v1807 = vld [vmem:[%s1792 + $0x70] sm:$0xff]
        %v1808 = vld [vmem:[%s1792 + $0x78] sm:$0xff]
        %v1809 = vld [vmem:[%s1792 + $0x80] sm:$0xff]
        %v1810 = vld [vmem:[%s1792 + $0x88] sm:$0xff]
        %v1811 = vld [vmem:[%s1792 + $0x90] sm:$0xff]
        %v1812 = vld [vmem:[%s1792 + $0x98] sm:$0xff]
        %v1813 = vld [vmem:[%s1792 + $0xa0] sm:$0xff]
        %v1814 = vld [vmem:[%s1792 + $0xa8] sm:$0xff]
        %v1815 = vld [vmem:[%s1792 + $0xb0] sm:$0xff]
        %v1816 = vld [vmem:[%s1792 + $0xb8] sm:$0xff]
        %v1817 = vld [vmem:[%s1792 + $0xc0] sm:$0xff]
        %v1818 = vld [vmem:[%s1792 + $0xc8] sm:$0xff]
        %v1819 = vld [vmem:[%s1792 + $0xd0] sm:$0xff]
        %v1820 = vld [vmem:[%s1792 + $0xd8] sm:$0xff]
        %v1821 = vld [vmem:[%s1792 + $0xe0] sm:$0xff]
        %v1822 = vld [vmem:[%s1792 + $0xe8] sm:$0xff]
        %s1823 = scalar_lea.vmem %s4, 720
        %v1824 = vld [vmem:[%s1823] sm:$0xff]
        %v1825 = vld [vmem:[%s1823 + $0x8] sm:$0xff]
        %v1826 = vld [vmem:[%s1823 + $0x10] sm:$0xff]
        %v1827 = vld [vmem:[%s1823 + $0x18] sm:$0xff]
        %v1828 = vld [vmem:[%s1823 + $0x20] sm:$0xff]
        %v1829 = vld [vmem:[%s1823 + $0x28] sm:$0xff]
        %v1830 = vld [vmem:[%s1823 + $0x30] sm:$0xff]
        %v1831 = vld [vmem:[%s1823 + $0x38] sm:$0xff]
        %v1832 = vld [vmem:[%s1823 + $0x40] sm:$0xff]
        %v1833 = vld [vmem:[%s1823 + $0x48] sm:$0xff]
        %v1834 = vld [vmem:[%s1823 + $0x50] sm:$0xff]
        %v1835 = vld [vmem:[%s1823 + $0x58] sm:$0xff]
        %v1836 = vld [vmem:[%s1823 + $0x60] sm:$0xff]
        %v1837 = vld [vmem:[%s1823 + $0x68] sm:$0xff]
        %v1838 = vld [vmem:[%s1823 + $0x70] sm:$0xff]
        %v1839 = vld [vmem:[%s1823 + $0x78] sm:$0xff]
        %v1840 = vld [vmem:[%s1823 + $0x80] sm:$0xff]
        %v1841 = vld [vmem:[%s1823 + $0x88] sm:$0xff]
        %v1842 = vld [vmem:[%s1823 + $0x90] sm:$0xff]
        %v1843 = vld [vmem:[%s1823 + $0x98] sm:$0xff]
        %v1844 = vld [vmem:[%s1823 + $0xa0] sm:$0xff]
        %v1845 = vld [vmem:[%s1823 + $0xa8] sm:$0xff]
        %v1846 = vld [vmem:[%s1823 + $0xb0] sm:$0xff]
        %v1847 = vld [vmem:[%s1823 + $0xb8] sm:$0xff]
        %v1848 = vld [vmem:[%s1823 + $0xc0] sm:$0xff]
        %v1849 = vld [vmem:[%s1823 + $0xc8] sm:$0xff]
        %v1850 = vld [vmem:[%s1823 + $0xd0] sm:$0xff]
        %v1851 = vld [vmem:[%s1823 + $0xd8] sm:$0xff]
        %v1852 = vld [vmem:[%s1823 + $0xe0] sm:$0xff]
        %v1853 = vld [vmem:[%s1823 + $0xe8] sm:$0xff]
        %s1854 = scalar_lea.vmem %s4, 960
        %v1855 = vld [vmem:[%s1854] sm:$0xff]
        %v1856 = vld [vmem:[%s1854 + $0x8] sm:$0xff]
        %v1857 = vld [vmem:[%s1854 + $0x10] sm:$0xff]
        %v1858 = vld [vmem:[%s1854 + $0x18] sm:$0xff]
        %v1859 = vld [vmem:[%s1854 + $0x20] sm:$0xff]
        %v1860 = vld [vmem:[%s1854 + $0x28] sm:$0xff]
        %v1861 = vld [vmem:[%s1854 + $0x30] sm:$0xff]
        %v1862 = vld [vmem:[%s1854 + $0x38] sm:$0xff]
        %v1863 = vld [vmem:[%s1854 + $0x40] sm:$0xff]
        %v1864 = vld [vmem:[%s1854 + $0x48] sm:$0xff]
        %v1865 = vld [vmem:[%s1854 + $0x50] sm:$0xff]
        %v1866 = vld [vmem:[%s1854 + $0x58] sm:$0xff]
        %v1867 = vld [vmem:[%s1854 + $0x60] sm:$0xff]
        %v1868 = vld [vmem:[%s1854 + $0x68] sm:$0xff]
        %v1869 = vld [vmem:[%s1854 + $0x70] sm:$0xff]
        %v1870 = vld [vmem:[%s1854 + $0x78] sm:$0xff]
        %v1871 = vld [vmem:[%s1854 + $0x80] sm:$0xff]
        %v1872 = vld [vmem:[%s1854 + $0x88] sm:$0xff]
        %v1873 = vld [vmem:[%s1854 + $0x90] sm:$0xff]
        %v1874 = vld [vmem:[%s1854 + $0x98] sm:$0xff]
        %v1875 = vld [vmem:[%s1854 + $0xa0] sm:$0xff]
        %v1876 = vld [vmem:[%s1854 + $0xa8] sm:$0xff]
        %v1877 = vld [vmem:[%s1854 + $0xb0] sm:$0xff]
        %v1878 = vld [vmem:[%s1854 + $0xb8] sm:$0xff]
        %v1879 = vld [vmem:[%s1854 + $0xc0] sm:$0xff]
        %v1880 = vld [vmem:[%s1854 + $0xc8] sm:$0xff]
        %v1881 = vld [vmem:[%s1854 + $0xd0] sm:$0xff]
        %v1882 = vld [vmem:[%s1854 + $0xd8] sm:$0xff]
        %v1883 = vld [vmem:[%s1854 + $0xe0] sm:$0xff]
        %v1884 = vld [vmem:[%s1854 + $0xe8] sm:$0xff]
        %vm1885 = vcmask 982016
        %v1887 = vsel %vm1885, %v1730, 0
        %1889 = vmatpush.msra.mxu0 0.0
        %1890 = vmatpush.msra.mxu0 %v1790
        %1891 = vmatpush.msra.mxu0 %v1788
        %1892 = vmatpush.msra.mxu0 %v1786
        %1893 = vmatpush.msra.mxu0 %v1784
        %1894 = vmatpush.msra.mxu0 %v1782
        %1895 = vmatpush.msra.mxu0 %v1780
        %1896 = vmatpush.msra.mxu0 %v1778
        %1897 = vmatpush.msra.mxu0 %v1776
        %1898 = vmatpush.msra.mxu0 %v1774
        %1899 = vmatpush.msra.mxu0 %v1772
        %1900 = vmatpush.msra.mxu0 %v1770
        %1901 = vmatpush.msra.mxu0 %v1768
        %1902 = vmatpush.msra.mxu0 %v1766
        %1903 = vmatpush.msra.mxu0 %v1764
        %1904 = vmatpush.msra.mxu0 %v1762
        %1905 = vmatmul.f32.gmra.mxu0 %v1887
        %v1906 = vpop.f32.mrf.mxu0
        %v1907 = vadd.f32 0.0, %v1906
        %1908 = vdwg.mxu0
        %1909 = vmatpush.msra.mxu0 0.0
        %1910 = vmatpush.msra.mxu0 %v1791
        %1911 = vmatpush.msra.mxu0 %v1789
        %1912 = vmatpush.msra.mxu0 %v1787
        %1913 = vmatpush.msra.mxu0 %v1785
        %1914 = vmatpush.msra.mxu0 %v1783
        %1915 = vmatpush.msra.mxu0 %v1781
        %1916 = vmatpush.msra.mxu0 %v1779
        %1917 = vmatpush.msra.mxu0 %v1777
        %1918 = vmatpush.msra.mxu0 %v1775
        %1919 = vmatpush.msra.mxu0 %v1773
        %1920 = vmatpush.msra.mxu0 %v1771
        %1921 = vmatpush.msra.mxu0 %v1769
        %1922 = vmatpush.msra.mxu0 %v1767
        %1923 = vmatpush.msra.mxu0 %v1765
        %1924 = vmatpush.msra.mxu0 %v1763
        %1925 = vmatmul.f32.gmra.mxu0 %v1887
        %v1926 = vpop.f32.mrf.mxu0
        %v1927 = vadd.f32 0.0, %v1926
        %1928 = vdwg.mxu0
        %v1930 = vsel %vm1885, %v1728, 0
        %1932 = vmatpush.msra.mxu0 0.0
        %1933 = vmatpush.msra.mxu0 %v1759
        %1934 = vmatpush.msra.mxu0 %v1757
        %1935 = vmatpush.msra.mxu0 %v1755
        %1936 = vmatpush.msra.mxu0 %v1753
        %1937 = vmatpush.msra.mxu0 %v1751
        %1938 = vmatpush.msra.mxu0 %v1749
        %1939 = vmatpush.msra.mxu0 %v1747
        %1940 = vmatpush.msra.mxu0 %v1745
        %1941 = vmatpush.msra.mxu0 %v1743
        %1942 = vmatpush.msra.mxu0 %v1741
        %1943 = vmatpush.msra.mxu0 %v1739
        %1944 = vmatpush.msra.mxu0 %v1737
        %1945 = vmatpush.msra.mxu0 %v1735
        %1946 = vmatpush.msra.mxu0 %v1733
        %1947 = vmatpush.msra.mxu0 %v1731
        %1948 = vmatmul.f32.gmra.mxu0 %v1930
        %v1949 = vpop.f32.mrf.mxu0
        %v1950 = vadd.f32 %v1907, %v1949
        %1951 = vdwg.mxu0
        %1952 = vmatpush.msra.mxu0 0.0
        %1953 = vmatpush.msra.mxu0 %v1760
        %1954 = vmatpush.msra.mxu0 %v1758
        %1955 = vmatpush.msra.mxu0 %v1756
        %1956 = vmatpush.msra.mxu0 %v1754
        %1957 = vmatpush.msra.mxu0 %v1752
        %1958 = vmatpush.msra.mxu0 %v1750
        %1959 = vmatpush.msra.mxu0 %v1748
        %1960 = vmatpush.msra.mxu0 %v1746
        %1961 = vmatpush.msra.mxu0 %v1744
        %1962 = vmatpush.msra.mxu0 %v1742
        %1963 = vmatpush.msra.mxu0 %v1740
        %1964 = vmatpush.msra.mxu0 %v1738
        %1965 = vmatpush.msra.mxu0 %v1736
        %1966 = vmatpush.msra.mxu0 %v1734
        %1967 = vmatpush.msra.mxu0 %v1732
        %1968 = vmatmul.f32.gmra.mxu0 %v1930
        %v1969 = vpop.f32.mrf.mxu0
        %v1970 = vadd.f32 %v1927, %v1969
        %1971 = vdwg.mxu0
        %v1972 = vrot.slane %v1728, 1
        %v1973 = vsel %vm1885, %v1972, 0
        %1975 = vmatpush.msra.mxu0 0.0
        %1976 = vmatpush.msra.mxu0 %v1821
        %1977 = vmatpush.msra.mxu0 %v1819
        %1978 = vmatpush.msra.mxu0 %v1817
        %1979 = vmatpush.msra.mxu0 %v1815
        %1980 = vmatpush.msra.mxu0 %v1813
        %1981 = vmatpush.msra.mxu0 %v1811
        %1982 = vmatpush.msra.mxu0 %v1809
        %1983 = vmatpush.msra.mxu0 %v1807
        %1984 = vmatpush.msra.mxu0 %v1805
        %1985 = vmatpush.msra.mxu0 %v1803
        %1986 = vmatpush.msra.mxu0 %v1801
        %1987 = vmatpush.msra.mxu0 %v1799
        %1988 = vmatpush.msra.mxu0 %v1797
        %1989 = vmatpush.msra.mxu0 %v1795
        %1990 = vmatpush.msra.mxu0 %v1793
        %1991 = vmatmul.f32.gmra.mxu0 %v1973
        %v1992 = vpop.f32.mrf.mxu0
        %v1993 = vadd.f32 0.0, %v1992
        %1994 = vdwg.mxu0
        %1995 = vmatpush.msra.mxu0 0.0
        %1996 = vmatpush.msra.mxu0 %v1822
        %1997 = vmatpush.msra.mxu0 %v1820
        %1998 = vmatpush.msra.mxu0 %v1818
        %1999 = vmatpush.msra.mxu0 %v1816
        %2000 = vmatpush.msra.mxu0 %v1814
        %2001 = vmatpush.msra.mxu0 %v1812
        %2002 = vmatpush.msra.mxu0 %v1810
        %2003 = vmatpush.msra.mxu0 %v1808
        %2004 = vmatpush.msra.mxu0 %v1806
        %2005 = vmatpush.msra.mxu0 %v1804
        %2006 = vmatpush.msra.mxu0 %v1802
        %2007 = vmatpush.msra.mxu0 %v1800
        %2008 = vmatpush.msra.mxu0 %v1798
        %2009 = vmatpush.msra.mxu0 %v1796
        %2010 = vmatpush.msra.mxu0 %v1794
        %2011 = vmatmul.f32.gmra.mxu0 %v1973
        %v2012 = vpop.f32.mrf.mxu0
        %v2013 = vadd.f32 0.0, %v2012
        %2014 = vdwg.mxu0
        %v2015 = vadd.f32 %v1950, %v1993
        %v2016 = vadd.f32 %v1970, %v2013
        %v2017 = vrot.slane %v1730, 1
        %v2018 = vsel %vm1885, %v2017, 0
        %2020 = vmatpush.msra.mxu0 0.0
        %2021 = vmatpush.msra.mxu0 %v1852
        %2022 = vmatpush.msra.mxu0 %v1850
        %2023 = vmatpush.msra.mxu0 %v1848
        %2024 = vmatpush.msra.mxu0 %v1846
        %2025 = vmatpush.msra.mxu0 %v1844
        %2026 = vmatpush.msra.mxu0 %v1842
        %2027 = vmatpush.msra.mxu0 %v1840
        %2028 = vmatpush.msra.mxu0 %v1838
        %2029 = vmatpush.msra.mxu0 %v1836
        %2030 = vmatpush.msra.mxu0 %v1834
        %2031 = vmatpush.msra.mxu0 %v1832
        %2032 = vmatpush.msra.mxu0 %v1830
        %2033 = vmatpush.msra.mxu0 %v1828
        %2034 = vmatpush.msra.mxu0 %v1826
        %2035 = vmatpush.msra.mxu0 %v1824
        %2036 = vmatmul.f32.gmra.mxu0 %v2018
        %v2037 = vpop.f32.mrf.mxu0
        %v2038 = vadd.f32 0.0, %v2037
        %2039 = vdwg.mxu0
        %2040 = vmatpush.msra.mxu0 0.0
        %2041 = vmatpush.msra.mxu0 %v1853
        %2042 = vmatpush.msra.mxu0 %v1851
        %2043 = vmatpush.msra.mxu0 %v1849
        %2044 = vmatpush.msra.mxu0 %v1847
        %2045 = vmatpush.msra.mxu0 %v1845
        %2046 = vmatpush.msra.mxu0 %v1843
        %2047 = vmatpush.msra.mxu0 %v1841
        %2048 = vmatpush.msra.mxu0 %v1839
        %2049 = vmatpush.msra.mxu0 %v1837
        %2050 = vmatpush.msra.mxu0 %v1835
        %2051 = vmatpush.msra.mxu0 %v1833
        %2052 = vmatpush.msra.mxu0 %v1831
        %2053 = vmatpush.msra.mxu0 %v1829
        %2054 = vmatpush.msra.mxu0 %v1827
        %2055 = vmatpush.msra.mxu0 %v1825
        %2056 = vmatmul.f32.gmra.mxu0 %v2018
        %v2057 = vpop.f32.mrf.mxu0
        %v2058 = vadd.f32 0.0, %v2057
        %2059 = vdwg.mxu0
        %v2060 = vadd.f32 %v2015, %v2038
        %v2061 = vadd.f32 %v2016, %v2058
        %v2062 = vrot.slane %v1728, 2
        %v2063 = vsel %vm1885, %v2062, 0
        %2065 = vmatpush.msra.mxu0 0.0
        %2066 = vmatpush.msra.mxu0 %v1883
        %2067 = vmatpush.msra.mxu0 %v1881
        %2068 = vmatpush.msra.mxu0 %v1879
        %2069 = vmatpush.msra.mxu0 %v1877
        %2070 = vmatpush.msra.mxu0 %v1875
        %2071 = vmatpush.msra.mxu0 %v1873
        %2072 = vmatpush.msra.mxu0 %v1871
        %2073 = vmatpush.msra.mxu0 %v1869
        %2074 = vmatpush.msra.mxu0 %v1867
        %2075 = vmatpush.msra.mxu0 %v1865
        %2076 = vmatpush.msra.mxu0 %v1863
        %2077 = vmatpush.msra.mxu0 %v1861
        %2078 = vmatpush.msra.mxu0 %v1859
        %2079 = vmatpush.msra.mxu0 %v1857
        %2080 = vmatpush.msra.mxu0 %v1855
        %2081 = vmatmul.f32.gmra.mxu0 %v2063
        %v2082 = vpop.f32.mrf.mxu0
        %v2083 = vadd.f32 0.0, %v2082
        %2084 = vdwg.mxu0
        %2085 = vmatpush.msra.mxu0 0.0
        %2086 = vmatpush.msra.mxu0 %v1884
        %2087 = vmatpush.msra.mxu0 %v1882
        %2088 = vmatpush.msra.mxu0 %v1880
        %2089 = vmatpush.msra.mxu0 %v1878
        %2090 = vmatpush.msra.mxu0 %v1876
        %2091 = vmatpush.msra.mxu0 %v1874
        %2092 = vmatpush.msra.mxu0 %v1872
        %2093 = vmatpush.msra.mxu0 %v1870
        %2094 = vmatpush.msra.mxu0 %v1868
        %2095 = vmatpush.msra.mxu0 %v1866
        %2096 = vmatpush.msra.mxu0 %v1864
        %2097 = vmatpush.msra.mxu0 %v1862
        %2098 = vmatpush.msra.mxu0 %v1860
        %2099 = vmatpush.msra.mxu0 %v1858
        %2100 = vmatpush.msra.mxu0 %v1856
        %2101 = vmatmul.f32.gmra.mxu0 %v2063
        %v2102 = vpop.f32.mrf.mxu0
        %v2103 = vadd.f32 0.0, %v2102
        %2104 = vdwg.mxu0
        %v2105 = vadd.f32 %v2060, %v2083
        %v2106 = vadd.f32 %v2061, %v2103
        %v2107 = vld [vmem:[%s5] sm:$0x3]
        %v2109 = vperm.slane %v2107, 0
        %v2110 = vperm.slane %v2107, 1
        %v2113 = vadd.f32 %v2105, %v2109
        %v2114 = vadd.f32 %v2106, %v2110
        %2115 = vmatpush.msra.mxu0 0.0
        %2116 = vmatpush.msra.mxu0 %v1790
        %2117 = vmatpush.msra.mxu0 %v1788
        %2118 = vmatpush.msra.mxu0 %v1786
        %2119 = vmatpush.msra.mxu0 %v1784
        %2120 = vmatpush.msra.mxu0 %v1782
        %2121 = vmatpush.msra.mxu0 %v1780
        %2122 = vmatpush.msra.mxu0 %v1778
        %2123 = vmatpush.msra.mxu0 %v1776
        %2124 = vmatpush.msra.mxu0 %v1774
        %2125 = vmatpush.msra.mxu0 %v1772
        %2126 = vmatpush.msra.mxu0 %v1770
        %2127 = vmatpush.msra.mxu0 %v1768
        %2128 = vmatpush.msra.mxu0 %v1766
        %2129 = vmatpush.msra.mxu0 %v1764
        %2130 = vmatpush.msra.mxu0 %v1762
        %2131 = vmatmul.f32.gmra.mxu0 %v1973
        %v2132 = vpop.f32.mrf.mxu0
        %v2133 = vadd.f32 0.0, %v2132
        %2134 = vdwg.mxu0
        %2135 = vmatpush.msra.mxu0 0.0
        %2136 = vmatpush.msra.mxu0 %v1791
        %2137 = vmatpush.msra.mxu0 %v1789
        %2138 = vmatpush.msra.mxu0 %v1787
        %2139 = vmatpush.msra.mxu0 %v1785
        %2140 = vmatpush.msra.mxu0 %v1783
        %2141 = vmatpush.msra.mxu0 %v1781
        %2142 = vmatpush.msra.mxu0 %v1779
        %2143 = vmatpush.msra.mxu0 %v1777
        %2144 = vmatpush.msra.mxu0 %v1775
        %2145 = vmatpush.msra.mxu0 %v1773
        %2146 = vmatpush.msra.mxu0 %v1771
        %2147 = vmatpush.msra.mxu0 %v1769
        %2148 = vmatpush.msra.mxu0 %v1767
        %2149 = vmatpush.msra.mxu0 %v1765
        %2150 = vmatpush.msra.mxu0 %v1763
        %2151 = vmatmul.f32.gmra.mxu0 %v1973
        %v2152 = vpop.f32.mrf.mxu0
        %v2153 = vadd.f32 0.0, %v2152
        %2154 = vdwg.mxu0
        %2155 = vmatpush.msra.mxu0 0.0
        %2156 = vmatpush.msra.mxu0 %v1759
        %2157 = vmatpush.msra.mxu0 %v1757
        %2158 = vmatpush.msra.mxu0 %v1755
        %2159 = vmatpush.msra.mxu0 %v1753
        %2160 = vmatpush.msra.mxu0 %v1751
        %2161 = vmatpush.msra.mxu0 %v1749
        %2162 = vmatpush.msra.mxu0 %v1747
        %2163 = vmatpush.msra.mxu0 %v1745
        %2164 = vmatpush.msra.mxu0 %v1743
        %2165 = vmatpush.msra.mxu0 %v1741
        %2166 = vmatpush.msra.mxu0 %v1739
        %2167 = vmatpush.msra.mxu0 %v1737
        %2168 = vmatpush.msra.mxu0 %v1735
        %2169 = vmatpush.msra.mxu0 %v1733
        %2170 = vmatpush.msra.mxu0 %v1731
        %2171 = vmatmul.f32.gmra.mxu0 %v1887
        %v2172 = vpop.f32.mrf.mxu0
        %v2173 = vadd.f32 %v2133, %v2172
        %2174 = vdwg.mxu0
        %2175 = vmatpush.msra.mxu0 0.0
        %2176 = vmatpush.msra.mxu0 %v1760
        %2177 = vmatpush.msra.mxu0 %v1758
        %2178 = vmatpush.msra.mxu0 %v1756
        %2179 = vmatpush.msra.mxu0 %v1754
        %2180 = vmatpush.msra.mxu0 %v1752
        %2181 = vmatpush.msra.mxu0 %v1750
        %2182 = vmatpush.msra.mxu0 %v1748
        %2183 = vmatpush.msra.mxu0 %v1746
        %2184 = vmatpush.msra.mxu0 %v1744
        %2185 = vmatpush.msra.mxu0 %v1742
        %2186 = vmatpush.msra.mxu0 %v1740
        %2187 = vmatpush.msra.mxu0 %v1738
        %2188 = vmatpush.msra.mxu0 %v1736
        %2189 = vmatpush.msra.mxu0 %v1734
        %2190 = vmatpush.msra.mxu0 %v1732
        %2191 = vmatmul.f32.gmra.mxu0 %v1887
        %v2192 = vpop.f32.mrf.mxu0
        %v2193 = vadd.f32 %v2153, %v2192
        %2194 = vdwg.mxu0
        %2195 = vmatpush.msra.mxu0 0.0
        %2196 = vmatpush.msra.mxu0 %v1821
        %2197 = vmatpush.msra.mxu0 %v1819
        %2198 = vmatpush.msra.mxu0 %v1817
        %2199 = vmatpush.msra.mxu0 %v1815
        %2200 = vmatpush.msra.mxu0 %v1813
        %2201 = vmatpush.msra.mxu0 %v1811
        %2202 = vmatpush.msra.mxu0 %v1809
        %2203 = vmatpush.msra.mxu0 %v1807
        %2204 = vmatpush.msra.mxu0 %v1805
        %2205 = vmatpush.msra.mxu0 %v1803
        %2206 = vmatpush.msra.mxu0 %v1801
        %2207 = vmatpush.msra.mxu0 %v1799
        %2208 = vmatpush.msra.mxu0 %v1797
        %2209 = vmatpush.msra.mxu0 %v1795
        %2210 = vmatpush.msra.mxu0 %v1793
        %2211 = vmatmul.f32.gmra.mxu0 %v2018
        %v2212 = vpop.f32.mrf.mxu0
        %v2213 = vadd.f32 0.0, %v2212
        %2214 = vdwg.mxu0
        %2215 = vmatpush.msra.mxu0 0.0
        %2216 = vmatpush.msra.mxu0 %v1822
        %2217 = vmatpush.msra.mxu0 %v1820
        %2218 = vmatpush.msra.mxu0 %v1818
        %2219 = vmatpush.msra.mxu0 %v1816
        %2220 = vmatpush.msra.mxu0 %v1814
        %2221 = vmatpush.msra.mxu0 %v1812
        %2222 = vmatpush.msra.mxu0 %v1810
        %2223 = vmatpush.msra.mxu0 %v1808
        %2224 = vmatpush.msra.mxu0 %v1806
        %2225 = vmatpush.msra.mxu0 %v1804
        %2226 = vmatpush.msra.mxu0 %v1802
        %2227 = vmatpush.msra.mxu0 %v1800
        %2228 = vmatpush.msra.mxu0 %v1798
        %2229 = vmatpush.msra.mxu0 %v1796
        %2230 = vmatpush.msra.mxu0 %v1794
        %2231 = vmatmul.f32.gmra.mxu0 %v2018
        %v2232 = vpop.f32.mrf.mxu0
        %v2233 = vadd.f32 0.0, %v2232
        %2234 = vdwg.mxu0
        %v2235 = vadd.f32 %v2173, %v2213
        %v2236 = vadd.f32 %v2193, %v2233
        %2237 = vmatpush.msra.mxu0 0.0
        %2238 = vmatpush.msra.mxu0 %v1852
        %2239 = vmatpush.msra.mxu0 %v1850
        %2240 = vmatpush.msra.mxu0 %v1848
        %2241 = vmatpush.msra.mxu0 %v1846
        %2242 = vmatpush.msra.mxu0 %v1844
        %2243 = vmatpush.msra.mxu0 %v1842
        %2244 = vmatpush.msra.mxu0 %v1840
        %2245 = vmatpush.msra.mxu0 %v1838
        %2246 = vmatpush.msra.mxu0 %v1836
        %2247 = vmatpush.msra.mxu0 %v1834
        %2248 = vmatpush.msra.mxu0 %v1832
        %2249 = vmatpush.msra.mxu0 %v1830
        %2250 = vmatpush.msra.mxu0 %v1828
        %2251 = vmatpush.msra.mxu0 %v1826
        %2252 = vmatpush.msra.mxu0 %v1824
        %2253 = vmatmul.f32.gmra.mxu0 %v2063
        %v2254 = vpop.f32.mrf.mxu0
        %v2255 = vadd.f32 0.0, %v2254
        %2256 = vdwg.mxu0
        %2257 = vmatpush.msra.mxu0 0.0
        %2258 = vmatpush.msra.mxu0 %v1853
        %2259 = vmatpush.msra.mxu0 %v1851
        %2260 = vmatpush.msra.mxu0 %v1849
        %2261 = vmatpush.msra.mxu0 %v1847
        %2262 = vmatpush.msra.mxu0 %v1845
        %2263 = vmatpush.msra.mxu0 %v1843
        %2264 = vmatpush.msra.mxu0 %v1841
        %2265 = vmatpush.msra.mxu0 %v1839
        %2266 = vmatpush.msra.mxu0 %v1837
        %2267 = vmatpush.msra.mxu0 %v1835
        %2268 = vmatpush.msra.mxu0 %v1833
        %2269 = vmatpush.msra.mxu0 %v1831
        %2270 = vmatpush.msra.mxu0 %v1829
        %2271 = vmatpush.msra.mxu0 %v1827
        %2272 = vmatpush.msra.mxu0 %v1825
        %2273 = vmatmul.f32.gmra.mxu0 %v2063
        %v2274 = vpop.f32.mrf.mxu0
        %v2275 = vadd.f32 0.0, %v2274
        %2276 = vdwg.mxu0
        %v2277 = vadd.f32 %v2235, %v2255
        %v2278 = vadd.f32 %v2236, %v2275
        %v2279 = vrot.slane %v1730, 2
        %v2280 = vsel %vm1885, %v2279, 0
        %2282 = vmatpush.msra.mxu0 0.0
        %2283 = vmatpush.msra.mxu0 %v1883
        %2284 = vmatpush.msra.mxu0 %v1881
        %2285 = vmatpush.msra.mxu0 %v1879
        %2286 = vmatpush.msra.mxu0 %v1877
        %2287 = vmatpush.msra.mxu0 %v1875
        %2288 = vmatpush.msra.mxu0 %v1873
        %2289 = vmatpush.msra.mxu0 %v1871
        %2290 = vmatpush.msra.mxu0 %v1869
        %2291 = vmatpush.msra.mxu0 %v1867
        %2292 = vmatpush.msra.mxu0 %v1865
        %2293 = vmatpush.msra.mxu0 %v1863
        %2294 = vmatpush.msra.mxu0 %v1861
        %2295 = vmatpush.msra.mxu0 %v1859
        %2296 = vmatpush.msra.mxu0 %v1857
        %2297 = vmatpush.msra.mxu0 %v1855
        %2298 = vmatmul.f32.gmra.mxu0 %v2280
        %v2299 = vpop.f32.mrf.mxu0
        %v2300 = vadd.f32 0.0, %v2299
        %2301 = vdwg.mxu0
        %2302 = vmatpush.msra.mxu0 0.0
        %2303 = vmatpush.msra.mxu0 %v1884
        %2304 = vmatpush.msra.mxu0 %v1882
        %2305 = vmatpush.msra.mxu0 %v1880
        %2306 = vmatpush.msra.mxu0 %v1878
        %2307 = vmatpush.msra.mxu0 %v1876
        %2308 = vmatpush.msra.mxu0 %v1874
        %2309 = vmatpush.msra.mxu0 %v1872
        %2310 = vmatpush.msra.mxu0 %v1870
        %2311 = vmatpush.msra.mxu0 %v1868
        %2312 = vmatpush.msra.mxu0 %v1866
        %2313 = vmatpush.msra.mxu0 %v1864
        %2314 = vmatpush.msra.mxu0 %v1862
        %2315 = vmatpush.msra.mxu0 %v1860
        %2316 = vmatpush.msra.mxu0 %v1858
        %2317 = vmatpush.msra.mxu0 %v1856
        %2318 = vmatmul.f32.gmra.mxu0 %v2280
        %v2319 = vpop.f32.mrf.mxu0
        %v2320 = vadd.f32 0.0, %v2319
        %2321 = vdwg.mxu0
        %v2322 = vadd.f32 %v2277, %v2300
        %v2323 = vadd.f32 %v2278, %v2320
        %v2324 = vadd.f32 %v2322, %v2109
        %v2325 = vadd.f32 %v2323, %v2110
        %v2326 = vld [vmem:[%s6] sm:$0xff]
        %v2327 = vld [vmem:[%s6 + $0x8] sm:$0xff]
        %v2328 = vld [vmem:[%s6 + $0x10] sm:$0xff]
        %v2329 = vld [vmem:[%s6 + $0x18] sm:$0xff]
        %v2330 = vld [vmem:[%s6 + $0x20] sm:$0xff]
        %v2331 = vld [vmem:[%s6 + $0x28] sm:$0xff]
        %v2332 = vld [vmem:[%s6 + $0x30] sm:$0xff]
        %v2333 = vld [vmem:[%s6 + $0x38] sm:$0xff]
        %v2334 = vld [vmem:[%s6 + $0x40] sm:$0xff]
        %v2335 = vld [vmem:[%s6 + $0x48] sm:$0xff]
        %v2336 = vld [vmem:[%s6 + $0x50] sm:$0xff]
        %v2337 = vld [vmem:[%s6 + $0x58] sm:$0xff]
        %v2338 = vld [vmem:[%s6 + $0x60] sm:$0xff]
        %v2339 = vld [vmem:[%s6 + $0x68] sm:$0xff]
        %v2340 = vld [vmem:[%s6 + $0x70] sm:$0xff]
        %v2341 = vld [vmem:[%s6 + $0x78] sm:$0xff]
        %v2342 = vld [vmem:[%s6 + $0x80] sm:$0xff]
        %v2343 = vld [vmem:[%s6 + $0x88] sm:$0xff]
        %v2344 = vld [vmem:[%s6 + $0x90] sm:$0xff]
        %v2345 = vld [vmem:[%s6 + $0x98] sm:$0xff]
        %s2346 = scalar_lea.vmem %s6, 160
        %v2347 = vld [vmem:[%s2346] sm:$0xff]
        %v2348 = vld [vmem:[%s2346 + $0x8] sm:$0xff]
        %v2349 = vld [vmem:[%s2346 + $0x10] sm:$0xff]
        %v2350 = vld [vmem:[%s2346 + $0x18] sm:$0xff]
        %v2351 = vld [vmem:[%s2346 + $0x20] sm:$0xff]
        %v2352 = vld [vmem:[%s2346 + $0x28] sm:$0xff]
        %v2353 = vld [vmem:[%s2346 + $0x30] sm:$0xff]
        %v2354 = vld [vmem:[%s2346 + $0x38] sm:$0xff]
        %v2355 = vld [vmem:[%s2346 + $0x40] sm:$0xff]
        %v2356 = vld [vmem:[%s2346 + $0x48] sm:$0xff]
        %v2357 = vld [vmem:[%s2346 + $0x50] sm:$0xff]
        %v2358 = vld [vmem:[%s2346 + $0x58] sm:$0xff]
        %v2359 = vld [vmem:[%s2346 + $0x60] sm:$0xff]
        %v2360 = vld [vmem:[%s2346 + $0x68] sm:$0xff]
        %v2361 = vld [vmem:[%s2346 + $0x70] sm:$0xff]
        %v2362 = vld [vmem:[%s2346 + $0x78] sm:$0xff]
        %v2363 = vld [vmem:[%s2346 + $0x80] sm:$0xff]
        %v2364 = vld [vmem:[%s2346 + $0x88] sm:$0xff]
        %v2365 = vld [vmem:[%s2346 + $0x90] sm:$0xff]
        %v2366 = vld [vmem:[%s2346 + $0x98] sm:$0xff]
        %v2367 = vmax.f32 %v2113, %v2324
        %v2368 = vmax.f32 %v2114, %v2325
        %vm2369 = vcmask 261120
        %v2371 = vsel %vm2369, %v2368, 0
        %2373 = vmatpush.msra.mxu0 %v2341
        %2374 = vmatpush.msra.mxu0 %v2340
        %2375 = vmatpush.msra.mxu0 %v2339
        %2376 = vmatpush.msra.mxu0 %v2338
        %2377 = vmatpush.msra.mxu0 %v2337
        %2378 = vmatpush.msra.mxu0 %v2336
        %2379 = vmatpush.msra.mxu0 %v2335
        %2380 = vmatpush.msra.mxu0 %v2334
        %2381 = vmatpush.msra.mxu0 %v2333
        %2382 = vmatpush.msra.mxu0 %v2332
        %2383 = vmatpush.msra.mxu0 %v2331
        %2384 = vmatpush.msra.mxu0 %v2330
        %2385 = vmatpush.msra.mxu0 %v2329
        %2386 = vmatpush.msra.mxu0 %v2328
        %2387 = vmatpush.msra.mxu0 %v2327
        %2388 = vmatpush.msra.mxu0 %v2326
        %2389 = vmatmul.f32.gmra.mxu0 %v2367
        %v2390 = vpop.f32.mrf.mxu0
        %v2391 = vadd.f32 0.0, %v2390
        %2392 = vdwg.mxu0
        %2393 = vmatpush.msra.mxu0 0.0
        %2394 = vmatpush.msra.mxu0 0.0
        %2395 = vmatpush.msra.mxu0 0.0
        %2396 = vmatpush.msra.mxu0 0.0
        %2397 = vmatpush.msra.mxu0 0.0
        %2398 = vmatpush.msra.mxu0 0.0
        %2399 = vmatpush.msra.mxu0 0.0
        %2400 = vmatpush.msra.mxu0 0.0
        %2401 = vmatpush.msra.mxu0 0.0
        %2402 = vmatpush.msra.mxu0 0.0
        %2403 = vmatpush.msra.mxu0 0.0
        %2404 = vmatpush.msra.mxu0 0.0
        %2405 = vmatpush.msra.mxu0 %v2345
        %2406 = vmatpush.msra.mxu0 %v2344
        %2407 = vmatpush.msra.mxu0 %v2343
        %2408 = vmatpush.msra.mxu0 %v2342
        %2409 = vmatmul.f32.gmra.mxu0 %v2371
        %v2410 = vpop.f32.mrf.mxu0
        %v2411 = vadd.f32 %v2391, %v2410
        %2412 = vdwg.mxu0
        %2413 = vmatpush.msra.mxu0 %v2362
        %2414 = vmatpush.msra.mxu0 %v2361
        %2415 = vmatpush.msra.mxu0 %v2360
        %2416 = vmatpush.msra.mxu0 %v2359
        %2417 = vmatpush.msra.mxu0 %v2358
        %2418 = vmatpush.msra.mxu0 %v2357
        %2419 = vmatpush.msra.mxu0 %v2356
        %2420 = vmatpush.msra.mxu0 %v2355
        %2421 = vmatpush.msra.mxu0 %v2354
        %2422 = vmatpush.msra.mxu0 %v2353
        %2423 = vmatpush.msra.mxu0 %v2352
        %2424 = vmatpush.msra.mxu0 %v2351
        %2425 = vmatpush.msra.mxu0 %v2350
        %2426 = vmatpush.msra.mxu0 %v2349
        %2427 = vmatpush.msra.mxu0 %v2348
        %2428 = vmatpush.msra.mxu0 %v2347
        %2429 = vmatmul.f32.gmra.mxu0 %v2367
        %v2430 = vpop.f32.mrf.mxu0
        %v2431 = vadd.f32 0.0, %v2430
        %2432 = vdwg.mxu0
        %2433 = vmatpush.msra.mxu0 0.0
        %2434 = vmatpush.msra.mxu0 0.0
        %2435 = vmatpush.msra.mxu0 0.0
        %2436 = vmatpush.msra.mxu0 0.0
        %2437 = vmatpush.msra.mxu0 0.0
        %2438 = vmatpush.msra.mxu0 0.0
        %2439 = vmatpush.msra.mxu0 0.0
        %2440 = vmatpush.msra.mxu0 0.0
        %2441 = vmatpush.msra.mxu0 0.0
        %2442 = vmatpush.msra.mxu0 0.0
        %2443 = vmatpush.msra.mxu0 0.0
        %2444 = vmatpush.msra.mxu0 0.0
        %2445 = vmatpush.msra.mxu0 %v2366
        %2446 = vmatpush.msra.mxu0 %v2365
        %2447 = vmatpush.msra.mxu0 %v2364
        %2448 = vmatpush.msra.mxu0 %v2363
        %2449 = vmatmul.f32.gmra.mxu0 %v2371
        %v2450 = vpop.f32.mrf.mxu0
        %v2451 = vadd.f32 %v2431, %v2450
        %2452 = vdwg.mxu0
        %v2453 = vmax.f32 %v2411, %v2451
        %v2454 = vmax.f32 %v2453, 0.0
        %v2455 = vld [vmem:[%s8] sm:$0x1]
        %v2456 = vld [vmem:[%s7] sm:$0xff]
        %v2457 = vld [vmem:[%s7 + $0x8] sm:$0xff]
        %v2458 = vld [vmem:[%s7 + $0x10] sm:$0xff]
        %v2459 = vld [vmem:[%s7 + $0x18] sm:$0xff]
        %v2460 = vld [vmem:[%s7 + $0x20] sm:$0xff]
        %v2461 = vld [vmem:[%s7 + $0x28] sm:$0xff]
        %v2462 = vld [vmem:[%s7 + $0x30] sm:$0xff]
        %v2463 = vld [vmem:[%s7 + $0x38] sm:$0xff]
        %v2464 = vld [vmem:[%s7 + $0x40] sm:$0xff]
        %v2465 = vld [vmem:[%s7 + $0x48] sm:$0xff]
        %vm2466 = vcmask 654336
        %v2468 = vsel %vm2466, %v2454, 0
        %2470 = vmatpush.msra.mxu0 0.0
        %2471 = vmatpush.msra.mxu0 0.0
        %2472 = vmatpush.msra.mxu0 0.0
        %2473 = vmatpush.msra.mxu0 0.0
        %2474 = vmatpush.msra.mxu0 0.0
        %2475 = vmatpush.msra.mxu0 0.0
        %2476 = vmatpush.msra.mxu0 %v2465
        %2477 = vmatpush.msra.mxu0 %v2464
        %2478 = vmatpush.msra.mxu0 %v2463
        %2479 = vmatpush.msra.mxu0 %v2462
        %2480 = vmatpush.msra.mxu0 %v2461
        %2481 = vmatpush.msra.mxu0 %v2460
        %2482 = vmatpush.msra.mxu0 %v2459
        %2483 = vmatpush.msra.mxu0 %v2458
        %2484 = vmatpush.msra.mxu0 %v2457
        %2485 = vmatpush.msra.mxu0 %v2456
        %2486 = vmatmul.f32.gmra.mxu0 %v2468
        %v2487 = vpop.f32.mrf.mxu0
        %v2488 = vadd.f32 0.0, %v2487
        %2489 = vdwg.mxu0
        %v2490 = vadd.f32 %v2455, %v2488
        %s2491 = scalar_lea.vmem %s7, 80
        %v2492 = vld [vmem:[%s2491] sm:$0xff]
        %v2493 = vld [vmem:[%s2491 + $0x8] sm:$0xff]
        %v2494 = vld [vmem:[%s2491 + $0x10] sm:$0xff]
        %v2495 = vld [vmem:[%s2491 + $0x18] sm:$0xff]
        %v2496 = vld [vmem:[%s2491 + $0x20] sm:$0xff]
        %v2497 = vld [vmem:[%s2491 + $0x28] sm:$0xff]
        %v2498 = vld [vmem:[%s2491 + $0x30] sm:$0xff]
        %v2499 = vld [vmem:[%s2491 + $0x38] sm:$0xff]
        %v2500 = vld [vmem:[%s2491 + $0x40] sm:$0xff]
        %v2501 = vld [vmem:[%s2491 + $0x48] sm:$0xff]
        %v2502 = vrot.slane %v2454, 1
        %v2503 = vsel %vm2466, %v2502, 0
        %2505 = vmatpush.msra.mxu0 0.0
        %2506 = vmatpush.msra.mxu0 0.0
        %2507 = vmatpush.msra.mxu0 0.0
        %2508 = vmatpush.msra.mxu0 0.0
        %2509 = vmatpush.msra.mxu0 0.0
        %2510 = vmatpush.msra.mxu0 0.0
        %2511 = vmatpush.msra.mxu0 %v2501
        %2512 = vmatpush.msra.mxu0 %v2500
        %2513 = vmatpush.msra.mxu0 %v2499
        %2514 = vmatpush.msra.mxu0 %v2498
        %2515 = vmatpush.msra.mxu0 %v2497
        %2516 = vmatpush.msra.mxu0 %v2496
        %2517 = vmatpush.msra.mxu0 %v2495
        %2518 = vmatpush.msra.mxu0 %v2494
        %2519 = vmatpush.msra.mxu0 %v2493
        %2520 = vmatpush.msra.mxu0 %v2492
        %2521 = vmatmul.f32.gmra.mxu0 %v2503
        %v2522 = vpop.f32.mrf.mxu0
        %v2523 = vadd.f32 0.0, %v2522
        %2524 = vdwg.mxu0
        %v2525 = vadd.f32 %v2490, %v2523
        %s2526 = scalar_lea.vmem %s7, 160
        %v2527 = vld [vmem:[%s2526] sm:$0xff]
        %v2528 = vld [vmem:[%s2526 + $0x8] sm:$0xff]
        %v2529 = vld [vmem:[%s2526 + $0x10] sm:$0xff]
        %v2530 = vld [vmem:[%s2526 + $0x18] sm:$0xff]
        %v2531 = vld [vmem:[%s2526 + $0x20] sm:$0xff]
        %v2532 = vld [vmem:[%s2526 + $0x28] sm:$0xff]
        %v2533 = vld [vmem:[%s2526 + $0x30] sm:$0xff]
        %v2534 = vld [vmem:[%s2526 + $0x38] sm:$0xff]
        %v2535 = vld [vmem:[%s2526 + $0x40] sm:$0xff]
        %v2536 = vld [vmem:[%s2526 + $0x48] sm:$0xff]
        %v2537 = vrot.slane %v2454, 2
        %v2538 = vsel %vm2466, %v2537, 0
        %2540 = vmatpush.msra.mxu0 0.0
        %2541 = vmatpush.msra.mxu0 0.0
        %2542 = vmatpush.msra.mxu0 0.0
        %2543 = vmatpush.msra.mxu0 0.0
        %2544 = vmatpush.msra.mxu0 0.0
        %2545 = vmatpush.msra.mxu0 0.0
        %2546 = vmatpush.msra.mxu0 %v2536
        %2547 = vmatpush.msra.mxu0 %v2535
        %2548 = vmatpush.msra.mxu0 %v2534
        %2549 = vmatpush.msra.mxu0 %v2533
        %2550 = vmatpush.msra.mxu0 %v2532
        %2551 = vmatpush.msra.mxu0 %v2531
        %2552 = vmatpush.msra.mxu0 %v2530
        %2553 = vmatpush.msra.mxu0 %v2529
        %2554 = vmatpush.msra.mxu0 %v2528
        %2555 = vmatpush.msra.mxu0 %v2527
        %2556 = vmatmul.f32.gmra.mxu0 %v2538
        %v2557 = vpop.f32.mrf.mxu0
        %v2558 = vadd.f32 0.0, %v2557
        %2559 = vdwg.mxu0
        %v2560 = vadd.f32 %v2525, %v2558
        %s2561 = scalar_lea.vmem %s7, 240
        %v2562 = vld [vmem:[%s2561] sm:$0xff]
        %v2563 = vld [vmem:[%s2561 + $0x8] sm:$0xff]
        %v2564 = vld [vmem:[%s2561 + $0x10] sm:$0xff]
        %v2565 = vld [vmem:[%s2561 + $0x18] sm:$0xff]
        %v2566 = vld [vmem:[%s2561 + $0x20] sm:$0xff]
        %v2567 = vld [vmem:[%s2561 + $0x28] sm:$0xff]
        %v2568 = vld [vmem:[%s2561 + $0x30] sm:$0xff]
        %v2569 = vld [vmem:[%s2561 + $0x38] sm:$0xff]
        %v2570 = vld [vmem:[%s2561 + $0x40] sm:$0xff]
        %v2571 = vld [vmem:[%s2561 + $0x48] sm:$0xff]
        %v2572 = vrot.slane %v2454, 3
        %v2573 = vsel %vm2466, %v2572, 0
        %2575 = vmatpush.msra.mxu0 0.0
        %2576 = vmatpush.msra.mxu0 0.0
        %2577 = vmatpush.msra.mxu0 0.0
        %2578 = vmatpush.msra.mxu0 0.0
        %2579 = vmatpush.msra.mxu0 0.0
        %2580 = vmatpush.msra.mxu0 0.0
        %2581 = vmatpush.msra.mxu0 %v2571
        %2582 = vmatpush.msra.mxu0 %v2570
        %2583 = vmatpush.msra.mxu0 %v2569
        %2584 = vmatpush.msra.mxu0 %v2568
        %2585 = vmatpush.msra.mxu0 %v2567
        %2586 = vmatpush.msra.mxu0 %v2566
        %2587 = vmatpush.msra.mxu0 %v2565
        %2588 = vmatpush.msra.mxu0 %v2564
        %2589 = vmatpush.msra.mxu0 %v2563
        %2590 = vmatpush.msra.mxu0 %v2562
        %2591 = vmatmul.f32.gmra.mxu0 %v2573
        %v2592 = vpop.f32.mrf.mxu0
        %v2593 = vadd.f32 0.0, %v2592
        %2594 = vdwg.mxu0
        %v2595 = vadd.f32 %v2560, %v2593
        %v2596 = vmax.f32 %v2595, 0.0
        %v2597 = vld [vmem:[%s9] sm:$0xff]
        %v2598 = vld [vmem:[%s9 + $0x8] sm:$0xff]
        %v2599 = vld [vmem:[%s9 + $0x10] sm:$0xff]
        %v2600 = vld [vmem:[%s9 + $0x18] sm:$0xff]
        %v2601 = vld [vmem:[%s9 + $0x20] sm:$0xff]
        %v2602 = vld [vmem:[%s9 + $0x28] sm:$0xff]
        %v2603 = vld [vmem:[%s9 + $0x30] sm:$0x3]
        %v2604 = vld [vmem:[%s10] sm:$0x1]
        %vm2605 = vcmask 408576
        %v2607 = vsel %vm2605, %v2596, 0
        %vm2609 = vcmask 1041408
        %v2611 = vsel %vm2609, %v2603, 0
        %2613 = vmatpush.msra.mxu0 0.0
        %2614 = vmatpush.msra.mxu0 0.0
        %2615 = vmatpush.msra.mxu0 0.0
        %2616 = vmatpush.msra.mxu0 0.0
        %2617 = vmatpush.msra.mxu0 0.0
        %2618 = vmatpush.msra.mxu0 0.0
        %2619 = vmatpush.msra.mxu0 0.0
        %2620 = vmatpush.msra.mxu0 0.0
        %2621 = vmatpush.msra.mxu0 0.0
        %2622 = vmatpush.msra.mxu0 %v2611
        %2623 = vmatpush.msra.mxu0 %v2602
        %2624 = vmatpush.msra.mxu0 %v2601
        %2625 = vmatpush.msra.mxu0 %v2600
        %2626 = vmatpush.msra.mxu0 %v2599
        %2627 = vmatpush.msra.mxu0 %v2598
        %2628 = vmatpush.msra.mxu0 %v2597
        %2629 = vmatmul.f32.gmra.mxu0 %v2607
        %v2630 = vpop.f32.mrf.mxu0
        %v2631 = vadd.f32 %v2604, %v2630
        %2632 = vdwg.mxu0
        %vm2633 = vcmask 73728
        %v2634 = vsel %vm2633, %v2631, -inf
        %2635 = vmax.xlane.f32.xlu0 %v2634
        %v2636 = vpop.xlane.xlu0 %2635
        %v2637 = vsub.f32 %v2631, %v2636
        %v2638 = vmul.f32 %v2637, 1.442695
        %v2639 = vpow.pop %v2638
        %v2640 = vsel %vm2633, %v2639, 0.0
        %2641 = vadd.xlane.f32.xlu0 %v2640
        %v2642 = vpop.xlane.xlu0 %2641
        %v2643 = vlog2.pop %v2642
        %v2644 = vmul.f32 %v2643, 0.6931472
        %v2645 = vsub.f32 %v2637, %v2644
        %2646 = vst.msk [vmem:[%s378] sm:$0x1] %vm2633, %v2645
        %s2647 = sand.u32 %s269, 1
        %s2648 = scalar_lea.sflag [#allocation3], %s2647
        %s2649 = sand.u32 %s269, 1
        %s2650 = scalar_lea.vmem [#allocation2], %s2649
        // Predicated region
        $region65: #{net_forward.1} parent=63 // pred_check
          %p2651 = pneg %p279
        $region66: #{net_forward.1} parent=63 // pred_check_branch
          %2653 = sbr.rel (%p2651) target = $region68
        $region67: #{net_forward.1} parent=63 // pred_region
          %2655 = vsyncadd %s2648, 0
          %s2656 = scalar_lea.hbm %s11, %s25
          %s2658 = sshll.u32 %s2650, 4
          %s2659 = int_to_ptr.vmem [resolvable:$true] %s2658
          %s2660 = sshll.u32 %s2656, 4
          %s2661 = int_to_ptr.hbm [resolvable:$true] %s2660
          %2663 = dma.vmem_to_hbm [thread:$0]  %s2659, 16, %s2661, %s2648
        $region68: #{net_forward.1} parent=63 // pred_fallthru
          _
      $region64: #{net_forward.1} parent=5 // pred_fallthru
        _
      %p2664 = scmp.le.s32.totalorder 2, %s20
      // Predicated region
      $region69: #{net_forward.1} parent=5 // pred_check
        %p2665 = pneg %p2664
      $region70: #{net_forward.1} parent=5 // pred_check_branch
        %2667 = sbr.rel (%p2665) target = $region72
      $region71: #{net_forward.1} parent=5 // pred_region
        %s2668 = ssub.s32 %s20, 2
        // Predicated region
        $region73: #{net_forward.1} parent=71 // pred_check
          %p2669 = pneg %p285
        $region74: #{net_forward.1} parent=71 // pred_check_branch
          %2671 = sbr.rel (%p2669) target = $region76
        $region75: #{net_forward.1} parent=71 // pred_region
          %s2672 = sand.u32 %s270, 1
          %s2673 = scalar_lea.sflag [#allocation3], %s2672
          %s2674 = sand.u32 %s270, 1
          %s2675 = scalar_lea.vmem [#allocation2], %s2674
          %2677 = dma.done %s2673, 16
        $region76: #{net_forward.1} parent=71 // pred_fallthru
          _
      $region72: #{net_forward.1} parent=5 // pred_fallthru
        _
    $region6: #{net_forward.1} parent=1 // loop_footer
      %s24 = sadd.s32 1, %s20
    $region7: #{net_forward.1} parent=1 // loop_footer_branch
      %19 = sbr.rel target = $region3
    $region8: #{net_forward.1} parent=1 // loop_exit
      _
    %2678 = vsyncpa [#allocation3], 1
    %s2679 = scalar_lea.sflag [#allocation3], 1
    %2680 = vsyncpa %s2679, 1

</llo_original>
